<compile_context>
chip_gen: v5e
topology: v5e:2x2
jax: 0.10.0
libtpu: 0.0.40
codegen_flags: <defaults>
</compile_context>

<pallas_src>
import jax
import jax.numpy as jnp
from jax import lax
from jax.experimental import pallas as pl
from jax.experimental.pallas import tpu as pltpu


# ------------------------------- Wrapper + kernel -----------------------------

def bottleneck_forward(x_nchw, params, th=16):
    """Bottleneck with stride=1, groups=1, dilation=1, downsample=None (eval BN)."""
    N, Cin, H, W = x_nchw.shape
    width = params["w1"].shape[1]
    Cout = params["w3"].shape[1]
    assert Cin == Cout, "downsample=None requires inplanes == planes*expansion"
    assert H % th == 0
    n_tiles = H // th
    Wp = ((W + 2 + 7) // 8) * 8          # padded row width, multiple of 8 (aligned taps)
    tm = th * Wp                          # output rows per grid step
    rows_in = (th + 3) * Wp               # conv1 rows per step (+1 top halo, +2 bottom)

    # NCHW -> NHWC bf16, zero-pad: 1 top / 2 bottom rows, 1 left / (Wp-1-W) right cols
    x_nhwc = jnp.transpose(x_nchw, (0, 2, 3, 1)).astype(jnp.bfloat16)
    xp = jnp.pad(x_nhwc, ((0, 0), (1, 2), (1, Wp - 1 - W), (0, 0)))   # (N, H+3, Wp, Cin)
    # ONE overlapping halo'd row-tile per grid step, rows flattened (single HBM copy)
    x_tiles = jnp.stack([xp[:, i * th:i * th + th + 3] for i in range(n_tiles)], axis=1)
    x_tiles = x_tiles.reshape(N, n_tiles, rows_in, Cin)

    # tiny per-tile f32 mask that zeroes conv2's zero-padding ring in t1
    rows = jnp.arange(th + 3)
    cols = jnp.arange(Wp)
    col_ok = (cols >= 1) & (cols <= W)                                 # (Wp,)
    tiles = jnp.arange(n_tiles)
    top_pad = (tiles[:, None] == 0) & (rows[None, :] == 0)
    bot_pad = (tiles[:, None] == n_tiles - 1) & (rows[None, :] == th + 1)
    row_ok = ~(top_pad | bot_pad)                                      # (n_tiles, th+3)
    mask = (row_ok[:, :, None] & col_ok[None, None, :]).reshape(n_tiles, rows_in, 1)
    mask = mask.astype(jnp.float32)

    def kernel(x_ref, mask_ref, w1_ref, s1_ref, b1_ref, w2_ref, s2_ref, b2_ref,
               w3_ref, s3_ref, b3_ref, o_ref):
        xv = x_ref[0, 0]                                       # (rows_in, Cin) bf16

        # ---- conv1x1 + bn1 + relu over the whole halo'd tile (one MXU matmul) ----
        t1 = jnp.dot(xv, w1_ref[...], preferred_element_type=jnp.float32)
        t1 = jnp.maximum(t1 * s1_ref[...] + b1_ref[...], 0.0)
        t1 = (t1 * mask_ref[0]).astype(jnp.bfloat16)           # zero pad ring, single cast

        # ---- conv3x3 == ONE (tm, 9*width) @ (9*width, width) MXU matmul ----------
        # in-VMEM im2col: 9 shifted bf16 slices of t1 (tile has 3 spare bottom rows,
        # so every slice is statically in bounds; no zero append needed)
        taps = jnp.concatenate(
            [t1[ky * Wp + kx: ky * Wp + kx + tm]
             for ky in range(3) for kx in range(3)], axis=-1)
        t2 = jnp.dot(taps, w2_ref[...], preferred_element_type=jnp.float32)
        t2 = jnp.maximum(t2 * s2_ref[...] + b2_ref[...], 0.0).astype(jnp.bfloat16)

        # ---- conv1x1 + bn3 + residual add + relu (bf16 store) --------------------
        t3 = jnp.dot(t2, w3_ref[...], preferred_element_type=jnp.float32)
        t3 = t3 * s3_ref[...] + b3_ref[...]
        ident = xv[Wp + 1: Wp + 1 + tm].astype(jnp.float32)    # identity in flat layout
        o_ref[0] = jnp.maximum(t3 + ident, 0.0).astype(jnp.bfloat16)

    grid = (N, n_tiles)
    out = pl.pallas_call(
        kernel,
        out_shape=jax.ShapeDtypeStruct((N, H * Wp, Cout), jnp.bfloat16),
        grid_spec=pltpu.PrefetchScalarGridSpec(
            num_scalar_prefetch=0, grid=grid,
            in_specs=[
                pl.BlockSpec((1, 1, rows_in, Cin), lambda n, i: (n, i, 0, 0)),  # x tile
                pl.BlockSpec((1, rows_in, 1), lambda n, i: (i, 0, 0)),          # pad mask
                pl.BlockSpec((Cin, width), lambda n, i: (0, 0)),                # w1
                pl.BlockSpec((1, width), lambda n, i: (0, 0)),                  # s1
                pl.BlockSpec((1, width), lambda n, i: (0, 0)),                  # b1
                pl.BlockSpec((9 * width, width), lambda n, i: (0, 0)),          # w2
                pl.BlockSpec((1, width), lambda n, i: (0, 0)),                  # s2
                pl.BlockSpec((1, width), lambda n, i: (0, 0)),                  # b2
                pl.BlockSpec((width, Cout), lambda n, i: (0, 0)),               # w3
                pl.BlockSpec((1, Cout), lambda n, i: (0, 0)),                   # s3
                pl.BlockSpec((1, Cout), lambda n, i: (0, 0)),                   # b3
            ],
            out_specs=pl.BlockSpec((1, tm, Cout), lambda n, i: (n, i, 0)),
        ),
        compiler_params=pltpu.CompilerParams(
            dimension_semantics=("parallel", "parallel"),
            vmem_limit_bytes=32 * 1024 * 1024),
    )(x_tiles, mask,
      params["w1"], params["s1"], params["b1"],
      params["w2"], params["s2"], params["b2"],
      params["w3"], params["s3"], params["b3"])

    # TODO(synk): a real network would keep NHWC/bf16 and fuse this un-pad +
    # transpose into the consumer instead of a separate HBM round trip.
    out = out.reshape(N, H, Wp, Cout)[:, :, :W, :]            # drop junk columns (bf16)
    return jnp.transpose(out, (0, 3, 1, 2)).astype(jnp.float32)   # back to NCHW f32


# --------------------------- Reference (plain JAX) ----------------------------

def reference_forward(x, raw, eps=1e-5):
    def bn(y, g, b, m, v):
        inv = 1.0 / jnp.sqrt(v + eps)
        return (y - m[None, :, None, None]) * inv[None, :, None, None] \
            * g[None, :, None, None] + b[None, :, None, None]

    def conv(y, w, pad):
        return lax.conv_general_dilated(
            y, w, (1, 1), [(pad, pad), (pad, pad)],
            dimension_numbers=("NCHW", "OIHW", "NCHW"))

    out = jax.nn.relu(bn(conv(x, raw["w1_oihw"], 0), *raw["bn1"]))
    out = jax.nn.relu(bn(conv(out, raw["w2_oihw"], 1), *raw["bn2"]))
    out = bn(conv(out, raw["w3_oihw"], 0), *raw["bn3"])
    return jax.nn.relu(out + x)


# --------------------------------- Params --------------------------------------

def make_params(key, inplanes, planes, base_width=64, groups=1, eps=1e-5):
    expansion = 4
    width = int(planes * (base_width / 64.0)) * groups
    cout = planes * expansion
    ks = jax.random.split(key, 6)

    def bn_params(k, c):
        k1, k2, k3, k4 = jax.random.split(k, 4)
        gamma = jax.random.uniform(k1, (c,), jnp.float32, 0.5, 1.5)
        beta = 0.1 * jax.random.normal(k2, (c,), jnp.float32)
        mean = 0.1 * jax.random.normal(k3, (c,), jnp.float32)
        var = jax.random.uniform(k4, (c,), jnp.float32, 0.5, 1.5)
        return gamma, beta, mean, var

    raw = {
        "w1_oihw": 0.05 * jax.random.normal(ks[0], (width, inplanes, 1, 1), jnp.float32),
        "w2_oihw": 0.05 * jax.random.normal(ks[1], (width, width, 3, 3), jnp.float32),
        "w3_oihw": 0.05 * jax.random.normal(ks[2], (cout, width, 1, 1), jnp.float32),
        "bn1": bn_params(ks[3], width),
        "bn2": bn_params(ks[4], width),
        "bn3": bn_params(ks[5], cout),
    }

    def fold(bn):
        g, b, m, v = bn
        s = g / jnp.sqrt(v + eps)
        return s.reshape(1, -1), (b - m * s).reshape(1, -1)

    s1, b1 = fold(raw["bn1"]); s2, b2 = fold(raw["bn2"]); s3, b3 = fold(raw["bn3"])
    params = {
        # (Cin, width) / (kh*kw*Cin, width) / (width, Cout), all bf16 for the MXU
        "w1": jnp.transpose(raw["w1_oihw"][:, :, 0, 0], (1, 0)).astype(jnp.bfloat16),
        "w2": jnp.transpose(raw["w2_oihw"], (2, 3, 1, 0))
                 .reshape(9 * width, width).astype(jnp.bfloat16),
        "w3": jnp.transpose(raw["w3_oihw"][:, :, 0, 0], (1, 0)).astype(jnp.bfloat16),
        "s1": s1, "b1": b1, "s2": s2, "b2": b2, "s3": s3, "b3": b3,
    }
    return params, raw


# ---------------------------------- Main ---------------------------------------

if __name__ == "__main__":
    key = jax.random.PRNGKey(0)
    k_x, k_p = jax.random.split(key)

    # Bottleneck(inplanes=128, planes=32, base_width=256):
    #   width = int(32 * 256/64) = 128, out channels = 32*4 = 128  (lane-dense).
    N, inplanes, H, W = 2, 128, 32, 32
    planes, base_width = 32, 256
    x = jax.random.normal(k_x, (N, inplanes, H, W), jnp.float32)

    params, raw = make_params(k_p, inplanes, planes, base_width=base_width)

    fwd = jax.jit(lambda xx: bottleneck_forward(xx, params, th=16))
    out = jax.block_until_ready(fwd(x))
    ref = jax.block_until_ready(reference_forward(x, raw))

    assert out.shape == ref.shape == (N, planes * 4, H, W)
    err = jnp.max(jnp.abs(out - ref))
    assert jnp.allclose(out, ref, atol=3e-2, rtol=3e-2), f"max abs err {err}"

    print("KERNEL_OK")
</pallas_src>

<mosaic_0001>
module attributes {stable_mosaic.version = 11 : i64} {
  func.func @kernel(%arg0: i32, %arg1: i32, %arg2: memref<1x1x760x128xbf16, #tpu.memory_space<vmem>>, %arg3: memref<1x760x1xf32, #tpu.memory_space<vmem>>, %arg4: memref<128x128xbf16, #tpu.memory_space<vmem>>, %arg5: memref<1x128xf32, #tpu.memory_space<vmem>>, %arg6: memref<1x128xf32, #tpu.memory_space<vmem>>, %arg7: memref<1152x128xbf16, #tpu.memory_space<vmem>>, %arg8: memref<1x128xf32, #tpu.memory_space<vmem>>, %arg9: memref<1x128xf32, #tpu.memory_space<vmem>>, %arg10: memref<128x128xbf16, #tpu.memory_space<vmem>>, %arg11: memref<1x128xf32, #tpu.memory_space<vmem>>, %arg12: memref<1x128xf32, #tpu.memory_space<vmem>>, %arg13: memref<1x640x128xbf16, #tpu.memory_space<vmem>>) attributes {dimension_semantics = [#tpu.dimension_semantics<parallel>, #tpu.dimension_semantics<parallel>], iteration_bounds = array<i64: 2, 2>, scalar_prefetch = 0 : i64, scratch_operands = 0 : i64, tpu.core_type = #tpu.core_type<tc>, window_params = [{transform_indices = @transform_0, window_bounds = array<i64: 1, 1, 760, 128>}, {transform_indices = @transform_1, window_bounds = array<i64: 1, 760, 1>}, {pipeline_mode = #tpu.pipeline_mode<synchronous>, transform_indices = @transform_2, window_bounds = array<i64: 128, 128>}, {pipeline_mode = #tpu.pipeline_mode<synchronous>, transform_indices = @transform_3, window_bounds = array<i64: 1, 128>}, {pipeline_mode = #tpu.pipeline_mode<synchronous>, transform_indices = @transform_4, window_bounds = array<i64: 1, 128>}, {pipeline_mode = #tpu.pipeline_mode<synchronous>, transform_indices = @transform_5, window_bounds = array<i64: 1152, 128>}, {pipeline_mode = #tpu.pipeline_mode<synchronous>, transform_indices = @transform_6, window_bounds = array<i64: 1, 128>}, {pipeline_mode = #tpu.pipeline_mode<synchronous>, transform_indices = @transform_7, window_bounds = array<i64: 1, 128>}, {pipeline_mode = #tpu.pipeline_mode<synchronous>, transform_indices = @transform_8, window_bounds = array<i64: 128, 128>}, {pipeline_mode = #tpu.pipeline_mode<synchronous>, transform_indices = @transform_9, window_bounds = array<i64: 1, 128>}, {pipeline_mode = #tpu.pipeline_mode<synchronous>, transform_indices = @transform_10, window_bounds = array<i64: 1, 128>}, {transform_indices = @transform_11, window_bounds = array<i64: 1, 640, 128>}]} {
    %c0 = arith.constant 0 : index
    %c0_0 = arith.constant 0 : index
    %c0_1 = arith.constant 0 : index
    %c0_2 = arith.constant 0 : index
    %0 = vector.load %arg2[%c0, %c0_0, %c0_1, %c0_2] : memref<1x1x760x128xbf16, #tpu.memory_space<vmem>>, vector<1x1x760x128xbf16>
    %1 = vector.shape_cast %0 : vector<1x1x760x128xbf16> to vector<760x128xbf16>
    %c0_3 = arith.constant 0 : index
    %c0_4 = arith.constant 0 : index
    %2 = vector.load %arg4[%c0_3, %c0_4] : memref<128x128xbf16, #tpu.memory_space<vmem>>, vector<128x128xbf16>
    %cst = arith.constant dense<0.000000e+00> : vector<760x128xf32>
    %3 = tpu.matmul %1, %2, %cst {dimension_numbers = #tpu.dot_dimension_numbers<[1], [0], [0], [1], [0, 0, 1, 1], [], []>} : vector<760x128xbf16>, vector<128x128xbf16>, vector<760x128xf32> -> vector<760x128xf32>
    %c0_5 = arith.constant 0 : index
    %c0_6 = arith.constant 0 : index
    %4 = vector.load %arg5[%c0_5, %c0_6] : memref<1x128xf32, #tpu.memory_space<vmem>>, vector<1x128xf32>
    %5 = vector.broadcast %4 : vector<1x128xf32> to vector<760x128xf32>
    %6 = arith.mulf %3, %5 : vector<760x128xf32>
    %c0_7 = arith.constant 0 : index
    %c0_8 = arith.constant 0 : index
    %7 = vector.load %arg6[%c0_7, %c0_8] : memref<1x128xf32, #tpu.memory_space<vmem>>, vector<1x128xf32>
    %8 = vector.broadcast %7 : vector<1x128xf32> to vector<760x128xf32>
    %9 = arith.addf %6, %8 : vector<760x128xf32>
    %cst_9 = arith.constant 0.000000e+00 : f32
    %10 = vector.broadcast %cst_9 : f32 to vector<760x128xf32>
    %11 = arith.maximumf %9, %10 : vector<760x128xf32>
    %c0_10 = arith.constant 0 : index
    %c0_11 = arith.constant 0 : index
    %c0_12 = arith.constant 0 : index
    %12 = vector.load %arg3[%c0_10, %c0_11, %c0_12] : memref<1x760x1xf32, #tpu.memory_space<vmem>>, vector<1x760x1xf32>
    %13 = vector.shape_cast %12 : vector<1x760x1xf32> to vector<760x1xf32>
    %14 = vector.broadcast %13 : vector<760x1xf32> to vector<760x128xf32>
    %15 = arith.mulf %11, %14 : vector<760x128xf32>
    %16 = arith.truncf %15 : vector<760x128xf32> to vector<760x128xbf16>
    %17 = vector.extract_strided_slice %16 {offsets = [0, 0], sizes = [640, 128], strides = [1, 1]} : vector<760x128xbf16> to vector<640x128xbf16>
    %18 = vector.extract_strided_slice %16 {offsets = [1, 0], sizes = [640, 128], strides = [1, 1]} : vector<760x128xbf16> to vector<640x128xbf16>
    %19 = vector.extract_strided_slice %16 {offsets = [2, 0], sizes = [640, 128], strides = [1, 1]} : vector<760x128xbf16> to vector<640x128xbf16>
    %20 = vector.extract_strided_slice %16 {offsets = [40, 0], sizes = [640, 128], strides = [1, 1]} : vector<760x128xbf16> to vector<640x128xbf16>
    %21 = vector.extract_strided_slice %16 {offsets = [41, 0], sizes = [640, 128], strides = [1, 1]} : vector<760x128xbf16> to vector<640x128xbf16>
    %22 = vector.extract_strided_slice %16 {offsets = [42, 0], sizes = [640, 128], strides = [1, 1]} : vector<760x128xbf16> to vector<640x128xbf16>
    %23 = vector.extract_strided_slice %16 {offsets = [80, 0], sizes = [640, 128], strides = [1, 1]} : vector<760x128xbf16> to vector<640x128xbf16>
    %24 = vector.extract_strided_slice %16 {offsets = [81, 0], sizes = [640, 128], strides = [1, 1]} : vector<760x128xbf16> to vector<640x128xbf16>
    %25 = vector.extract_strided_slice %16 {offsets = [82, 0], sizes = [640, 128], strides = [1, 1]} : vector<760x128xbf16> to vector<640x128xbf16>
    %26 = tpu.concatenate %17, %18, %19, %20, %21, %22, %23, %24, %25 in 1 : vector<640x128xbf16>, vector<640x128xbf16>, vector<640x128xbf16>, vector<640x128xbf16>, vector<640x128xbf16>, vector<640x128xbf16>, vector<640x128xbf16>, vector<640x128xbf16>, vector<640x128xbf16> -> vector<640x1152xbf16>
    %c0_13 = arith.constant 0 : index
    %c0_14 = arith.constant 0 : index
    %27 = vector.load %arg7[%c0_13, %c0_14] : memref<1152x128xbf16, #tpu.memory_space<vmem>>, vector<1152x128xbf16>
    %cst_15 = arith.constant dense<0.000000e+00> : vector<640x128xf32>
    %28 = tpu.matmul %26, %27, %cst_15 {dimension_numbers = #tpu.dot_dimension_numbers<[1], [0], [0], [1], [0, 0, 1, 1], [], []>} : vector<640x1152xbf16>, vector<1152x128xbf16>, vector<640x128xf32> -> vector<640x128xf32>
    %c0_16 = arith.constant 0 : index
    %c0_17 = arith.constant 0 : index
    %29 = vector.load %arg8[%c0_16, %c0_17] : memref<1x128xf32, #tpu.memory_space<vmem>>, vector<1x128xf32>
    %30 = vector.broadcast %29 : vector<1x128xf32> to vector<640x128xf32>
    %31 = arith.mulf %28, %30 : vector<640x128xf32>
    %c0_18 = arith.constant 0 : index
    %c0_19 = arith.constant 0 : index
    %32 = vector.load %arg9[%c0_18, %c0_19] : memref<1x128xf32, #tpu.memory_space<vmem>>, vector<1x128xf32>
    %33 = vector.broadcast %32 : vector<1x128xf32> to vector<640x128xf32>
    %34 = arith.addf %31, %33 : vector<640x128xf32>
    %cst_20 = arith.constant 0.000000e+00 : f32
    %35 = vector.broadcast %cst_20 : f32 to vector<640x128xf32>
    %36 = arith.maximumf %34, %35 : vector<640x128xf32>
    %37 = arith.truncf %36 : vector<640x128xf32> to vector<640x128xbf16>
    %c0_21 = arith.constant 0 : index
    %c0_22 = arith.constant 0 : index
    %38 = vector.load %arg10[%c0_21, %c0_22] : memref<128x128xbf16, #tpu.memory_space<vmem>>, vector<128x128xbf16>
    %cst_23 = arith.constant dense<0.000000e+00> : vector<640x128xf32>
    %39 = tpu.matmul %37, %38, %cst_23 {dimension_numbers = #tpu.dot_dimension_numbers<[1], [0], [0], [1], [0, 0, 1, 1], [], []>} : vector<640x128xbf16>, vector<128x128xbf16>, vector<640x128xf32> -> vector<640x128xf32>
    %c0_24 = arith.constant 0 : index
    %c0_25 = arith.constant 0 : index
    %40 = vector.load %arg11[%c0_24, %c0_25] : memref<1x128xf32, #tpu.memory_space<vmem>>, vector<1x128xf32>
    %41 = vector.broadcast %40 : vector<1x128xf32> to vector<640x128xf32>
    %42 = arith.mulf %39, %41 : vector<640x128xf32>
    %c0_26 = arith.constant 0 : index
    %c0_27 = arith.constant 0 : index
    %43 = vector.load %arg12[%c0_26, %c0_27] : memref<1x128xf32, #tpu.memory_space<vmem>>, vector<1x128xf32>
    %44 = vector.broadcast %43 : vector<1x128xf32> to vector<640x128xf32>
    %45 = arith.addf %42, %44 : vector<640x128xf32>
    %46 = vector.extract_strided_slice %1 {offsets = [41, 0], sizes = [640, 128], strides = [1, 1]} : vector<760x128xbf16> to vector<640x128xbf16>
    %47 = arith.extf %46 : vector<640x128xbf16> to vector<640x128xf32>
    %48 = arith.addf %45, %47 : vector<640x128xf32>
    %cst_28 = arith.constant 0.000000e+00 : f32
    %49 = vector.broadcast %cst_28 : f32 to vector<640x128xf32>
    %50 = arith.maximumf %48, %49 : vector<640x128xf32>
    %51 = arith.truncf %50 : vector<640x128xf32> to vector<640x128xbf16>
    %c0_29 = arith.constant 0 : index
    %c0_30 = arith.constant 0 : index
    %c0_31 = arith.constant 0 : index
    %52 = vector.load %arg13[%c0_29, %c0_30, %c0_31] : memref<1x640x128xbf16, #tpu.memory_space<vmem>>, vector<1x640x128xbf16>
    %53 = vector.shape_cast %52 : vector<1x640x128xbf16> to vector<640x128xbf16>
    %54 = vector.shape_cast %51 : vector<640x128xbf16> to vector<1x640x128xbf16>
    tpu.vector_store %arg13[%c0_29, %c0_30, %c0_31], %54 {strides = array<i32>} : memref<1x640x128xbf16, #tpu.memory_space<vmem>>, vector<1x640x128xbf16>,
    return
  }
  func.func @transform_0(%arg0: i32, %arg1: i32) -> (i32, i32, i32, i32) {
    %c0_i32 = arith.constant 0 : i32
    %c0_i32_0 = arith.constant 0 : i32
    %c0_i32_1 = arith.constant 0 : i32
    return %arg0, %arg1, %c0_i32, %c0_i32_0 : i32, i32, i32, i32
  }
  func.func @transform_1(%arg0: i32, %arg1: i32) -> (i32, i32, i32) {
    %c0_i32 = arith.constant 0 : i32
    %c0_i32_0 = arith.constant 0 : i32
    %c0_i32_1 = arith.constant 0 : i32
    return %arg1, %c0_i32, %c0_i32_0 : i32, i32, i32
  }
  func.func @transform_2(%arg0: i32, %arg1: i32) -> (i32, i32) {
    %c0_i32 = arith.constant 0 : i32
    %c0_i32_0 = arith.constant 0 : i32
    %c0_i32_1 = arith.constant 0 : i32
    return %c0_i32, %c0_i32_0 : i32, i32
  }
  func.func @transform_3(%arg0: i32, %arg1: i32) -> (i32, i32) {
    %c0_i32 = arith.constant 0 : i32
    %c0_i32_0 = arith.constant 0 : i32
    %c0_i32_1 = arith.constant 0 : i32
    return %c0_i32, %c0_i32_0 : i32, i32
  }
  func.func @transform_4(%arg0: i32, %arg1: i32) -> (i32, i32) {
    %c0_i32 = arith.constant 0 : i32
    %c0_i32_0 = arith.constant 0 : i32
    %c0_i32_1 = arith.constant 0 : i32
    return %c0_i32, %c0_i32_0 : i32, i32
  }
  func.func @transform_5(%arg0: i32, %arg1: i32) -> (i32, i32) {
    %c0_i32 = arith.constant 0 : i32
    %c0_i32_0 = arith.constant 0 : i32
    %c0_i32_1 = arith.constant 0 : i32
    return %c0_i32, %c0_i32_0 : i32, i32
  }
  func.func @transform_6(%arg0: i32, %arg1: i32) -> (i32, i32) {
    %c0_i32 = arith.constant 0 : i32
    %c0_i32_0 = arith.constant 0 : i32
    %c0_i32_1 = arith.constant 0 : i32
    return %c0_i32, %c0_i32_0 : i32, i32
  }
  func.func @transform_7(%arg0: i32, %arg1: i32) -> (i32, i32) {
    %c0_i32 = arith.constant 0 : i32
    %c0_i32_0 = arith.constant 0 : i32
    %c0_i32_1 = arith.constant 0 : i32
    return %c0_i32, %c0_i32_0 : i32, i32
  }
  func.func @transform_8(%arg0: i32, %arg1: i32) -> (i32, i32) {
    %c0_i32 = arith.constant 0 : i32
    %c0_i32_0 = arith.constant 0 : i32
    %c0_i32_1 = arith.constant 0 : i32
    return %c0_i32, %c0_i32_0 : i32, i32
  }
  func.func @transform_9(%arg0: i32, %arg1: i32) -> (i32, i32) {
    %c0_i32 = arith.constant 0 : i32
    %c0_i32_0 = arith.constant 0 : i32
    %c0_i32_1 = arith.constant 0 : i32
    return %c0_i32, %c0_i32_0 : i32, i32
  }
  func.func @transform_10(%arg0: i32, %arg1: i32) -> (i32, i32) {
    %c0_i32 = arith.constant 0 : i32
    %c0_i32_0 = arith.constant 0 : i32
    %c0_i32_1 = arith.constant 0 : i32
    return %c0_i32, %c0_i32_0 : i32, i32
  }
  func.func @transform_11(%arg0: i32, %arg1: i32) -> (i32, i32, i32) {
    %c0_i32 = arith.constant 0 : i32
    %c0_i32_0 = arith.constant 0 : i32
    return %arg0, %arg1, %c0_i32 : i32, i32, i32
  }
}

</mosaic_0001>

<llo_original>
// kernel: _lambda_.1
$region0: #{_lambda_.1}
  #allocation0 [shape = 'u32[]', space=smem, size = 0x4, offset = 0x4, fixed_abs, tag = 'smem constant byte address 0x4 - core index']
  #allocation1 [shape = 'u32[72,128]{1,0:T(1,128)}', space=vmem, size = 0x9000, scoped, tag = 'internal scratch']
  %s0 = inlined_call_operand.vmem [shape: bf16[2,2,760,128], index: 0, kind: input, shape index: {}]
  %s1 = inlined_call_operand.vmem [shape: f32[2,760,1], index: 1, kind: input, shape index: {}]
  %s2 = inlined_call_operand.vmem [shape: bf16[128,128], index: 2, kind: input, shape index: {}]
  %s3 = inlined_call_operand.vmem [shape: f32[1,128], index: 3, kind: input, shape index: {}]
  %s4 = inlined_call_operand.vmem [shape: f32[1,128], index: 4, kind: input, shape index: {}]
  %s5 = inlined_call_operand.vmem [shape: bf16[1152,128], index: 5, kind: input, shape index: {}]
  %s6 = inlined_call_operand.vmem [shape: f32[1,128], index: 6, kind: input, shape index: {}]
  %s7 = inlined_call_operand.vmem [shape: f32[1,128], index: 7, kind: input, shape index: {}]
  %s8 = inlined_call_operand.vmem [shape: bf16[128,128], index: 8, kind: input, shape index: {}]
  %s9 = inlined_call_operand.vmem [shape: f32[1,128], index: 9, kind: input, shape index: {}]
  %s10 = inlined_call_operand.vmem [shape: f32[1,128], index: 10, kind: input, shape index: {}]
  %s11 = inlined_call_operand.vmem [shape: bf16[2,1280,128], index: 11, kind: output, shape index: {}]
  %s12 = sld [smem:[#allocation0]]
  $region77: #{_lambda_.1} parent=0
    _
  %s14 = ssub.s32 1, %s12
  %s15 = scalar_select 0, %s14, %s12
  loop: start=0, step=1, limit=6
  $region2: #{_lambda_.1} parent=0 // loop_pre_header
    _
  $region3: #{_lambda_.1} parent=0 // loop_header
    %s17 = sphi 0, %s21
    %p18 = scmp.ge.s32.totalorder %s17, 6
    %s24 = sphi 0, %s36
    %s25 = sphi 0, %s32
    %s26 = sphi 0, %s24
    %s27 = sphi 0, %s25
    %s28 = sphi 0, %s26
    %s29 = sphi 0, %s27
    %s41 = sphi 0, %s43
    %s44 = sphi 0, %s41
    %s45 = sphi 0, %s44
    %s61 = sphi 0, %s45
    %s67 = sphi 0, %s69
    %s70 = sphi 0, %s67
    %s71 = sphi 0, %s70
    %s87 = sphi 0, %s71
    %s91 = sphi 0, %s91
    %s93 = sphi 0, %s91
    %s94 = sphi 0, %s93
    %s108 = sphi 0, %s94
    %s112 = sphi 0, %s112
    %s114 = sphi 0, %s112
    %s115 = sphi 0, %s114
    %s129 = sphi 0, %s115
    %s133 = sphi 0, %s133
    %s135 = sphi 0, %s133
    %s136 = sphi 0, %s135
    %s150 = sphi 0, %s136
    %s154 = sphi 0, %s154
    %s156 = sphi 0, %s154
    %s157 = sphi 0, %s156
    %s171 = sphi 0, %s157
    %s175 = sphi 0, %s175
    %s177 = sphi 0, %s175
    %s178 = sphi 0, %s177
    %s192 = sphi 0, %s178
    %s196 = sphi 0, %s196
    %s198 = sphi 0, %s196
    %s199 = sphi 0, %s198
    %s213 = sphi 0, %s199
    %s217 = sphi 0, %s217
    %s219 = sphi 0, %s217
    %s220 = sphi 0, %s219
    %s234 = sphi 0, %s220
    %s238 = sphi 0, %s238
    %s240 = sphi 0, %s238
    %s241 = sphi 0, %s240
    %s255 = sphi 0, %s241
    %s259 = sphi 0, %s259
    %s261 = sphi 0, %s259
    %s262 = sphi 0, %s261
    %s276 = sphi 0, %s262
    %s284 = sphi 0, %s286
    %s287 = sphi 0, %s284
    %s288 = sphi 0, %s287
    %s304 = sphi 0, %s288
  $region4: #{_lambda_.1} parent=0 // loop_header_branch
    %20 = sbr.rel (%p18) target = $region8
  $region5: #{_lambda_.1} parent=0 // loop_body
    %s22 = ssub.s32 %s17, 1
    %s23 = ssub.s32 %s17, 2
    %s30 = sadd.s32 1, %s25
    %p31 = scmp.ge.s32.totalorder %s30, 2
    %s32 = scalar_select %p31, 0, %s30
    %s33 = sadd.s32 1, %s24
    %s34 = scalar_select %p31, %s33, %s24
    %p35 = scmp.ge.s32.totalorder %s34, 2
    %s36 = scalar_select %p35, 0, %s34
    %s37 = ssub.s32 %s24, %s36
    %s38 = ssub.s32 %s25, %s32
    %s39 = sor.u32 %s37, %s38
    %p40 = scmp.eq.s32.totalorder %s39, 0
    %s42 = sadd.s32 %s41, 1
    %s43 = scalar_select %p40, %s41, %s42
    %p46 = pneg %p40
    %p47 = scmp.eq.s32.totalorder %s17, 3
    %p48 = por %p46, %p47
    %p49 = scmp.ne.s32.totalorder %s41, %s44
    %p50 = scmp.eq.s32.totalorder %s17, 0
    %p51 = por %p49, %p50
    %p52 = scmp.ne.s32.totalorder %s41, %s44
    %p53 = scmp.eq.s32.totalorder %s22, 3
    %p54 = por %p52, %p53
    %p55 = scmp.ne.s32.totalorder %s44, %s45
    %p56 = scmp.eq.s32.totalorder %s22, 0
    %p57 = por %p55, %p56
    %p58 = scmp.ne.s32.totalorder %s44, %s45
    %p59 = scmp.eq.s32.totalorder %s23, 3
    %p60 = por %p58, %p59
    %p62 = scmp.ne.s32.totalorder %s45, %s61
    %p63 = scmp.eq.s32.totalorder %s23, 0
    %p64 = por %p62, %p63
    %s65 = ssub.s32 %s25, %s32
    %p66 = scmp.eq.s32.totalorder %s65, 0
    %s68 = sadd.s32 %s67, 1
    %s69 = scalar_select %p66, %s67, %s68
    %p72 = pneg %p66
    %p73 = scmp.eq.s32.totalorder %s17, 3
    %p74 = por %p72, %p73
    %p75 = scmp.ne.s32.totalorder %s67, %s70
    %p76 = scmp.eq.s32.totalorder %s17, 0
    %p77 = por %p75, %p76
    %p78 = scmp.ne.s32.totalorder %s67, %s70
    %p79 = scmp.eq.s32.totalorder %s22, 3
    %p80 = por %p78, %p79
    %p81 = scmp.ne.s32.totalorder %s70, %s71
    %p82 = scmp.eq.s32.totalorder %s22, 0
    %p83 = por %p81, %p82
    %p84 = scmp.ne.s32.totalorder %s70, %s71
    %p85 = scmp.eq.s32.totalorder %s23, 3
    %p86 = por %p84, %p85
    %p88 = scmp.ne.s32.totalorder %s71, %s87
    %p89 = scmp.eq.s32.totalorder %s23, 0
    %p90 = por %p88, %p89
    %s92 = sadd.s32 %s91, 1
    %p95 = scmp.eq.s32.totalorder %s17, 3
    %p96 = scmp.ne.s32.totalorder %s91, %s93
    %p97 = scmp.eq.s32.totalorder %s17, 0
    %p98 = por %p96, %p97
    %p99 = scmp.ne.s32.totalorder %s91, %s93
    %p100 = scmp.eq.s32.totalorder %s22, 3
    %p101 = por %p99, %p100
    %p102 = scmp.ne.s32.totalorder %s93, %s94
    %p103 = scmp.eq.s32.totalorder %s22, 0
    %p104 = por %p102, %p103
    %p105 = scmp.ne.s32.totalorder %s93, %s94
    %p106 = scmp.eq.s32.totalorder %s23, 3
    %p107 = por %p105, %p106
    %p109 = scmp.ne.s32.totalorder %s94, %s108
    %p110 = scmp.eq.s32.totalorder %s23, 0
    %p111 = por %p109, %p110
    %s113 = sadd.s32 %s112, 1
    %p116 = scmp.eq.s32.totalorder %s17, 3
    %p117 = scmp.ne.s32.totalorder %s112, %s114
    %p118 = scmp.eq.s32.totalorder %s17, 0
    %p119 = por %p117, %p118
    %p120 = scmp.ne.s32.totalorder %s112, %s114
    %p121 = scmp.eq.s32.totalorder %s22, 3
    %p122 = por %p120, %p121
    %p123 = scmp.ne.s32.totalorder %s114, %s115
    %p124 = scmp.eq.s32.totalorder %s22, 0
    %p125 = por %p123, %p124
    %p126 = scmp.ne.s32.totalorder %s114, %s115
    %p127 = scmp.eq.s32.totalorder %s23, 3
    %p128 = por %p126, %p127
    %p130 = scmp.ne.s32.totalorder %s115, %s129
    %p131 = scmp.eq.s32.totalorder %s23, 0
    %p132 = por %p130, %p131
    %s134 = sadd.s32 %s133, 1
    %p137 = scmp.eq.s32.totalorder %s17, 3
    %p138 = scmp.ne.s32.totalorder %s133, %s135
    %p139 = scmp.eq.s32.totalorder %s17, 0
    %p140 = por %p138, %p139
    %p141 = scmp.ne.s32.totalorder %s133, %s135
    %p142 = scmp.eq.s32.totalorder %s22, 3
    %p143 = por %p141, %p142
    %p144 = scmp.ne.s32.totalorder %s135, %s136
    %p145 = scmp.eq.s32.totalorder %s22, 0
    %p146 = por %p144, %p145
    %p147 = scmp.ne.s32.totalorder %s135, %s136
    %p148 = scmp.eq.s32.totalorder %s23, 3
    %p149 = por %p147, %p148
    %p151 = scmp.ne.s32.totalorder %s136, %s150
    %p152 = scmp.eq.s32.totalorder %s23, 0
    %p153 = por %p151, %p152
    %s155 = sadd.s32 %s154, 1
    %p158 = scmp.eq.s32.totalorder %s17, 3
    %p159 = scmp.ne.s32.totalorder %s154, %s156
    %p160 = scmp.eq.s32.totalorder %s17, 0
    %p161 = por %p159, %p160
    %p162 = scmp.ne.s32.totalorder %s154, %s156
    %p163 = scmp.eq.s32.totalorder %s22, 3
    %p164 = por %p162, %p163
    %p165 = scmp.ne.s32.totalorder %s156, %s157
    %p166 = scmp.eq.s32.totalorder %s22, 0
    %p167 = por %p165, %p166
    %p168 = scmp.ne.s32.totalorder %s156, %s157
    %p169 = scmp.eq.s32.totalorder %s23, 3
    %p170 = por %p168, %p169
    %p172 = scmp.ne.s32.totalorder %s157, %s171
    %p173 = scmp.eq.s32.totalorder %s23, 0
    %p174 = por %p172, %p173
    %s176 = sadd.s32 %s175, 1
    %p179 = scmp.eq.s32.totalorder %s17, 3
    %p180 = scmp.ne.s32.totalorder %s175, %s177
    %p181 = scmp.eq.s32.totalorder %s17, 0
    %p182 = por %p180, %p181
    %p183 = scmp.ne.s32.totalorder %s175, %s177
    %p184 = scmp.eq.s32.totalorder %s22, 3
    %p185 = por %p183, %p184
    %p186 = scmp.ne.s32.totalorder %s177, %s178
    %p187 = scmp.eq.s32.totalorder %s22, 0
    %p188 = por %p186, %p187
    %p189 = scmp.ne.s32.totalorder %s177, %s178
    %p190 = scmp.eq.s32.totalorder %s23, 3
    %p191 = por %p189, %p190
    %p193 = scmp.ne.s32.totalorder %s178, %s192
    %p194 = scmp.eq.s32.totalorder %s23, 0
    %p195 = por %p193, %p194
    %s197 = sadd.s32 %s196, 1
    %p200 = scmp.eq.s32.totalorder %s17, 3
    %p201 = scmp.ne.s32.totalorder %s196, %s198
    %p202 = scmp.eq.s32.totalorder %s17, 0
    %p203 = por %p201, %p202
    %p204 = scmp.ne.s32.totalorder %s196, %s198
    %p205 = scmp.eq.s32.totalorder %s22, 3
    %p206 = por %p204, %p205
    %p207 = scmp.ne.s32.totalorder %s198, %s199
    %p208 = scmp.eq.s32.totalorder %s22, 0
    %p209 = por %p207, %p208
    %p210 = scmp.ne.s32.totalorder %s198, %s199
    %p211 = scmp.eq.s32.totalorder %s23, 3
    %p212 = por %p210, %p211
    %p214 = scmp.ne.s32.totalorder %s199, %s213
    %p215 = scmp.eq.s32.totalorder %s23, 0
    %p216 = por %p214, %p215
    %s218 = sadd.s32 %s217, 1
    %p221 = scmp.eq.s32.totalorder %s17, 3
    %p222 = scmp.ne.s32.totalorder %s217, %s219
    %p223 = scmp.eq.s32.totalorder %s17, 0
    %p224 = por %p222, %p223
    %p225 = scmp.ne.s32.totalorder %s217, %s219
    %p226 = scmp.eq.s32.totalorder %s22, 3
    %p227 = por %p225, %p226
    %p228 = scmp.ne.s32.totalorder %s219, %s220
    %p229 = scmp.eq.s32.totalorder %s22, 0
    %p230 = por %p228, %p229
    %p231 = scmp.ne.s32.totalorder %s219, %s220
    %p232 = scmp.eq.s32.totalorder %s23, 3
    %p233 = por %p231, %p232
    %p235 = scmp.ne.s32.totalorder %s220, %s234
    %p236 = scmp.eq.s32.totalorder %s23, 0
    %p237 = por %p235, %p236
    %s239 = sadd.s32 %s238, 1
    %p242 = scmp.eq.s32.totalorder %s17, 3
    %p243 = scmp.ne.s32.totalorder %s238, %s240
    %p244 = scmp.eq.s32.totalorder %s17, 0
    %p245 = por %p243, %p244
    %p246 = scmp.ne.s32.totalorder %s238, %s240
    %p247 = scmp.eq.s32.totalorder %s22, 3
    %p248 = por %p246, %p247
    %p249 = scmp.ne.s32.totalorder %s240, %s241
    %p250 = scmp.eq.s32.totalorder %s22, 0
    %p251 = por %p249, %p250
    %p252 = scmp.ne.s32.totalorder %s240, %s241
    %p253 = scmp.eq.s32.totalorder %s23, 3
    %p254 = por %p252, %p253
    %p256 = scmp.ne.s32.totalorder %s241, %s255
    %p257 = scmp.eq.s32.totalorder %s23, 0
    %p258 = por %p256, %p257
    %s260 = sadd.s32 %s259, 1
    %p263 = scmp.eq.s32.totalorder %s17, 3
    %p264 = scmp.ne.s32.totalorder %s259, %s261
    %p265 = scmp.eq.s32.totalorder %s17, 0
    %p266 = por %p264, %p265
    %p267 = scmp.ne.s32.totalorder %s259, %s261
    %p268 = scmp.eq.s32.totalorder %s22, 3
    %p269 = por %p267, %p268
    %p270 = scmp.ne.s32.totalorder %s261, %s262
    %p271 = scmp.eq.s32.totalorder %s22, 0
    %p272 = por %p270, %p271
    %p273 = scmp.ne.s32.totalorder %s261, %s262
    %p274 = scmp.eq.s32.totalorder %s23, 3
    %p275 = por %p273, %p274
    %p277 = scmp.ne.s32.totalorder %s262, %s276
    %p278 = scmp.eq.s32.totalorder %s23, 0
    %p279 = por %p277, %p278
    %s280 = ssub.s32 %s24, %s36
    %s281 = ssub.s32 %s25, %s32
    %s282 = sor.u32 %s280, %s281
    %p283 = scmp.eq.s32.totalorder %s282, 0
    %s285 = sadd.s32 %s284, 1
    %s286 = scalar_select %p283, %s284, %s285
    %p289 = pneg %p283
    %p290 = scmp.eq.s32.totalorder %s17, 3
    %p291 = por %p289, %p290
    %p292 = scmp.ne.s32.totalorder %s284, %s287
    %p293 = scmp.eq.s32.totalorder %s17, 0
    %p294 = por %p292, %p293
    %p295 = scmp.ne.s32.totalorder %s284, %s287
    %p296 = scmp.eq.s32.totalorder %s22, 3
    %p297 = por %p295, %p296
    %p298 = scmp.ne.s32.totalorder %s287, %s288
    %p299 = scmp.eq.s32.totalorder %s22, 0
    %p300 = por %p298, %p299
    %p301 = scmp.ne.s32.totalorder %s287, %s288
    %p302 = scmp.eq.s32.totalorder %s23, 3
    %p303 = por %p301, %p302
    %p305 = scmp.ne.s32.totalorder %s288, %s304
    %p306 = scmp.eq.s32.totalorder %s23, 0
    %p307 = por %p305, %p306
    %p308 = scmp.le.s32.totalorder 1, %s17
    %p309 = scmp.lt.s32.totalorder %s17, 5
    %p310 = pnand %p308, %p309
    %p311 = pneg %p310
    // Predicated region
    $region9: #{_lambda_.1} parent=5 // pred_check
      _
    $region10: #{_lambda_.1} parent=5 // pred_check_branch
      %313 = sbr.rel (%p310) target = $region12
    $region11: #{_lambda_.1} parent=5 // pred_region
      %s314 = ssub.s32 %s17, 1
      // Predicated region
      $region13: #{_lambda_.1} parent=11 // pred_check
        %p315 = pneg %p104
      $region14: #{_lambda_.1} parent=11 // pred_check_branch
        %317 = sbr.rel (%p315) target = $region16
      $region15: #{_lambda_.1} parent=11 // pred_region
        _
      $region16: #{_lambda_.1} parent=11 // pred_fallthru
        _
      // Predicated region
      $region17: #{_lambda_.1} parent=11 // pred_check
        %p318 = pneg %p125
      $region18: #{_lambda_.1} parent=11 // pred_check_branch
        %320 = sbr.rel (%p318) target = $region20
      $region19: #{_lambda_.1} parent=11 // pred_region
        _
      $region20: #{_lambda_.1} parent=11 // pred_fallthru
        _
      // Predicated region
      $region21: #{_lambda_.1} parent=11 // pred_check
        %p321 = pneg %p146
      $region22: #{_lambda_.1} parent=11 // pred_check_branch
        %323 = sbr.rel (%p321) target = $region24
      $region23: #{_lambda_.1} parent=11 // pred_region
        _
      $region24: #{_lambda_.1} parent=11 // pred_fallthru
        _
      // Predicated region
      $region25: #{_lambda_.1} parent=11 // pred_check
        %p324 = pneg %p167
      $region26: #{_lambda_.1} parent=11 // pred_check_branch
        %326 = sbr.rel (%p324) target = $region28
      $region27: #{_lambda_.1} parent=11 // pred_region
        _
      $region28: #{_lambda_.1} parent=11 // pred_fallthru
        _
      // Predicated region
      $region29: #{_lambda_.1} parent=11 // pred_check
        %p327 = pneg %p188
      $region30: #{_lambda_.1} parent=11 // pred_check_branch
        %329 = sbr.rel (%p327) target = $region32
      $region31: #{_lambda_.1} parent=11 // pred_region
        _
      $region32: #{_lambda_.1} parent=11 // pred_fallthru
        _
      // Predicated region
      $region33: #{_lambda_.1} parent=11 // pred_check
        %p330 = pneg %p209
      $region34: #{_lambda_.1} parent=11 // pred_check_branch
        %332 = sbr.rel (%p330) target = $region36
      $region35: #{_lambda_.1} parent=11 // pred_region
        _
      $region36: #{_lambda_.1} parent=11 // pred_fallthru
        _
      // Predicated region
      $region37: #{_lambda_.1} parent=11 // pred_check
        %p333 = pneg %p230
      $region38: #{_lambda_.1} parent=11 // pred_check_branch
        %335 = sbr.rel (%p333) target = $region40
      $region39: #{_lambda_.1} parent=11 // pred_region
        _
      $region40: #{_lambda_.1} parent=11 // pred_fallthru
        _
      // Predicated region
      $region41: #{_lambda_.1} parent=11 // pred_check
        %p336 = pneg %p251
      $region42: #{_lambda_.1} parent=11 // pred_check_branch
        %338 = sbr.rel (%p336) target = $region44
      $region43: #{_lambda_.1} parent=11 // pred_region
        _
      $region44: #{_lambda_.1} parent=11 // pred_fallthru
        _
      // Predicated region
      $region45: #{_lambda_.1} parent=11 // pred_check
        %p339 = pneg %p272
      $region46: #{_lambda_.1} parent=11 // pred_check_branch
        %341 = sbr.rel (%p339) target = $region48
      $region47: #{_lambda_.1} parent=11 // pred_region
        _
      $region48: #{_lambda_.1} parent=11 // pred_fallthru
        _
    $region12: #{_lambda_.1} parent=5 // pred_fallthru
      _
    %p342 = scmp.lt.s32.totalorder %s17, 4
    // Predicated region
    $region49: #{_lambda_.1} parent=5 // pred_check
      %p343 = pneg %p342
    $region50: #{_lambda_.1} parent=5 // pred_check_branch
      %345 = sbr.rel (%p343) target = $region52
    $region51: #{_lambda_.1} parent=5 // pred_region
      // Predicated region
      $region53: #{_lambda_.1} parent=51 // pred_check
        %p346 = pneg %p51
      $region54: #{_lambda_.1} parent=51 // pred_check_branch
        %348 = sbr.rel (%p346) target = $region56
      $region55: #{_lambda_.1} parent=51 // pred_region
        %p349 = scmp.lt.s32.totalorder %s24, 1
        %s350 = scalar_select %p349, %s24, 1
        %p351 = scmp.lt.s32.totalorder %s25, 1
        %s352 = scalar_select %p351, %s25, 1
        %s353 = smul.addr %s352, 95
        %s354 = smul.addr %s350, 190
        %s355 = sadd.s32 %s353, %s354
        %s356 = smul.addr %s355, 4
        %s357 = scalar_lea.vmem %s0, %s356
      $region56: #{_lambda_.1} parent=51 // pred_fallthru
        _
      // Predicated region
      $region57: #{_lambda_.1} parent=51 // pred_check
        %p358 = pneg %p77
      $region58: #{_lambda_.1} parent=51 // pred_check_branch
        %360 = sbr.rel (%p358) target = $region60
      $region59: #{_lambda_.1} parent=51 // pred_region
        %p361 = scmp.lt.s32.totalorder %s25, 1
        %s362 = scalar_select %p361, %s25, 1
        %s363 = smul.addr %s362, 95
        %s364 = smul.addr %s363, 8
        %s365 = scalar_lea.vmem %s1, %s364
      $region60: #{_lambda_.1} parent=51 // pred_fallthru
        _
    $region52: #{_lambda_.1} parent=5 // pred_fallthru
      _
    %p366 = scmp.le.s32.totalorder 1, %s17
    %p367 = scmp.lt.s32.totalorder %s17, 5
    %p368 = pnand %p366, %p367
    %p369 = pneg %p368
    // Predicated region
    $region61: #{_lambda_.1} parent=5 // pred_check
      _
    $region62: #{_lambda_.1} parent=5 // pred_check_branch
      %371 = sbr.rel (%p368) target = $region64
    $region63: #{_lambda_.1} parent=5 // pred_region
      %s372 = ssub.s32 %s17, 1
      %p373 = scmp.lt.s32.totalorder %s26, 1
      %s374 = scalar_select %p373, %s26, 1
      %p375 = scmp.lt.s32.totalorder %s27, 1
      %s376 = scalar_select %p375, %s27, 1
      %s377 = smul.addr %s376, 95
      %s378 = smul.addr %s374, 190
      %s379 = sadd.s32 %s377, %s378
      %s380 = smul.addr %s379, 4
      %s381 = scalar_lea.vmem %s0, %s380
      %p382 = pneg %p57
      %p383 = pneg %p54
      %p384 = scmp.lt.s32.totalorder %s27, 1
      %s385 = scalar_select %p384, %s27, 1
      %s386 = smul.addr %s385, 95
      %s387 = smul.addr %s386, 8
      %s388 = scalar_lea.vmem %s1, %s387
      %p389 = pneg %p83
      %p390 = pneg %p80
      %p391 = pneg %p104
      %p392 = pneg %p101
      %p393 = pneg %p125
      %p394 = pneg %p122
      %p395 = pneg %p146
      %p396 = pneg %p143
      %p397 = pneg %p167
      %p398 = pneg %p164
      %p399 = pneg %p188
      %p400 = pneg %p185
      %p401 = pneg %p209
      %p402 = pneg %p206
      %p403 = pneg %p230
      %p404 = pneg %p227
      %p405 = pneg %p251
      %p406 = pneg %p248
      %p407 = pneg %p272
      %p408 = pneg %p269
      %p409 = pneg %p300
      %p410 = pneg %p297
      %s411 = smul.u32 80, %s27
      %p412 = scmp.lt.s32.totalorder %s26, 1
      %s413 = scalar_select %p412, %s26, 1
      %p414 = scmp.lt.s32.totalorder %s411, 159
      %s415 = scalar_select %p414, %s411, 159
      %s416 = smul.addr %s413, 160
      %s417 = sadd.s32 %s415, %s416
      %s418 = smul.addr %s417, 4
      %s419 = scalar_lea.vmem %s11, %s418
      %p420 = scmp.lt.s32.totalorder %s26, 1
      %s421 = scalar_select %p420, %s26, 1
      %p422 = scmp.lt.s32.totalorder %s27, 1
      %s423 = scalar_select %p422, %s27, 1
      %s424 = smul.addr %s423, 95
      %s425 = smul.addr %s421, 190
      %s426 = sadd.s32 %s424, %s425
      %s427 = smul.addr %s426, 4
      %s428 = scalar_lea.vmem %s0, %s427
      %p429 = scmp.lt.s32.totalorder %s27, 1
      %s430 = scalar_select %p429, %s27, 1
      %s431 = smul.addr %s430, 95
      %s432 = smul.addr %s431, 8
      %s433 = scalar_lea.vmem %s1, %s432
      %s434 = smul.u32 80, %s27
      %p435 = scmp.lt.s32.totalorder %s26, 1
      %s436 = scalar_select %p435, %s26, 1
      %p437 = scmp.lt.s32.totalorder %s434, 159
      %s438 = scalar_select %p437, %s434, 159
      %s439 = smul.addr %s436, 160
      %s440 = sadd.s32 %s438, %s439
      %s441 = smul.addr %s440, 4
      %s442 = scalar_lea.vmem %s11, %s441
      %s443 = smul.u32 80, %s27
      %v444 = vld [vmem:[%s428] sm:$0xf]
      %v445 = vld [vmem:[%s428 + $0x4] sm:$0xf]
      %v446 = vld [vmem:[%s428 + $0x8] sm:$0xf]
      %v447 = vld [vmem:[%s428 + $0xc] sm:$0xf]
      %v448 = vld [vmem:[%s428 + $0x10] sm:$0xf]
      %v449 = vld [vmem:[%s428 + $0x14] sm:$0xf]
      %v450 = vld [vmem:[%s428 + $0x18] sm:$0xf]
      %v451 = vld [vmem:[%s428 + $0x1c] sm:$0xf]
      %v452 = vld [vmem:[%s428 + $0x20] sm:$0xf]
      %v453 = vld [vmem:[%s428 + $0x24] sm:$0xf]
      %v454 = vld [vmem:[%s428 + $0x28] sm:$0xf]
      %v455 = vld [vmem:[%s428 + $0x2c] sm:$0xf]
      %v456 = vld [vmem:[%s428 + $0x30] sm:$0xf]
      %v457 = vld [vmem:[%s428 + $0x34] sm:$0xf]
      %v458 = vld [vmem:[%s428 + $0x38] sm:$0xf]
      %v459 = vld [vmem:[%s428 + $0x3c] sm:$0xf]
      %v460 = vld [vmem:[%s428 + $0x40] sm:$0xf]
      %v461 = vld [vmem:[%s428 + $0x44] sm:$0xf]
      %v462 = vld [vmem:[%s428 + $0x48] sm:$0xf]
      %v463 = vld [vmem:[%s428 + $0x4c] sm:$0xf]
      %v464 = vld [vmem:[%s428 + $0x50] sm:$0xf]
      %v465 = vld [vmem:[%s428 + $0x54] sm:$0xf]
      %v466 = vld [vmem:[%s428 + $0x58] sm:$0xf]
      %v467 = vld [vmem:[%s428 + $0x5c] sm:$0xf]
      %v468 = vld [vmem:[%s428 + $0x60] sm:$0xf]
      %v469 = vld [vmem:[%s428 + $0x64] sm:$0xf]
      %v470 = vld [vmem:[%s428 + $0x68] sm:$0xf]
      %v471 = vld [vmem:[%s428 + $0x6c] sm:$0xf]
      %v472 = vld [vmem:[%s428 + $0x70] sm:$0xf]
      %v473 = vld [vmem:[%s428 + $0x74] sm:$0xf]
      %v474 = vld [vmem:[%s428 + $0x78] sm:$0xf]
      %v475 = vld [vmem:[%s428 + $0x7c] sm:$0xf]
      %v476 = vld [vmem:[%s428 + $0x80] sm:$0xf]
      %v477 = vld [vmem:[%s428 + $0x84] sm:$0xf]
      %v478 = vld [vmem:[%s428 + $0x88] sm:$0xf]
      %v479 = vld [vmem:[%s428 + $0x8c] sm:$0xf]
      %v480 = vld [vmem:[%s428 + $0x90] sm:$0xf]
      %v481 = vld [vmem:[%s428 + $0x94] sm:$0xf]
      %v482 = vld [vmem:[%s428 + $0x98] sm:$0xf]
      %v483 = vld [vmem:[%s428 + $0x9c] sm:$0xf]
      %v484 = vld [vmem:[%s428 + $0xa0] sm:$0xf]
      %v485 = vld [vmem:[%s428 + $0xa4] sm:$0xf]
      %v486 = vld [vmem:[%s428 + $0xa8] sm:$0xf]
      %v487 = vld [vmem:[%s428 + $0xac] sm:$0xf]
      %v488 = vld [vmem:[%s428 + $0xb0] sm:$0xf]
      %v489 = vld [vmem:[%s428 + $0xb4] sm:$0xf]
      %v490 = vld [vmem:[%s428 + $0xb8] sm:$0xf]
      %v491 = vld [vmem:[%s428 + $0xbc] sm:$0xf]
      %v492 = vld [vmem:[%s428 + $0xc0] sm:$0xf]
      %v493 = vld [vmem:[%s428 + $0xc4] sm:$0xf]
      %v494 = vld [vmem:[%s428 + $0xc8] sm:$0xf]
      %v495 = vld [vmem:[%s428 + $0xcc] sm:$0xf]
      %v496 = vld [vmem:[%s428 + $0xd0] sm:$0xf]
      %v497 = vld [vmem:[%s428 + $0xd4] sm:$0xf]
      %v498 = vld [vmem:[%s428 + $0xd8] sm:$0xf]
      %v499 = vld [vmem:[%s428 + $0xdc] sm:$0xf]
      %v500 = vld [vmem:[%s428 + $0xe0] sm:$0xf]
      %v501 = vld [vmem:[%s428 + $0xe4] sm:$0xf]
      %v502 = vld [vmem:[%s428 + $0xe8] sm:$0xf]
      %v503 = vld [vmem:[%s428 + $0xec] sm:$0xf]
      %v504 = vld [vmem:[%s428 + $0xf0] sm:$0xf]
      %v505 = vld [vmem:[%s428 + $0xf4] sm:$0xf]
      %v506 = vld [vmem:[%s428 + $0xf8] sm:$0xf]
      %v507 = vld [vmem:[%s428 + $0xfc] sm:$0xf]
      %v508 = vld [vmem:[%s428 + $0x100] sm:$0xf]
      %v509 = vld [vmem:[%s428 + $0x104] sm:$0xf]
      %v510 = vld [vmem:[%s428 + $0x108] sm:$0xf]
      %v511 = vld [vmem:[%s428 + $0x10c] sm:$0xf]
      %v512 = vld [vmem:[%s428 + $0x110] sm:$0xf]
      %v513 = vld [vmem:[%s428 + $0x114] sm:$0xf]
      %v514 = vld [vmem:[%s428 + $0x118] sm:$0xf]
      %v515 = vld [vmem:[%s428 + $0x11c] sm:$0xf]
      %v516 = vld [vmem:[%s428 + $0x120] sm:$0xf]
      %v517 = vld [vmem:[%s428 + $0x124] sm:$0xf]
      %v518 = vld [vmem:[%s428 + $0x128] sm:$0xf]
      %v519 = vld [vmem:[%s428 + $0x12c] sm:$0xf]
      %v520 = vld [vmem:[%s428 + $0x130] sm:$0xf]
      %v521 = vld [vmem:[%s428 + $0x134] sm:$0xf]
      %v522 = vld [vmem:[%s428 + $0x138] sm:$0xf]
      %v523 = vld [vmem:[%s428 + $0x13c] sm:$0xf]
      %v524 = vld [vmem:[%s428 + $0x140] sm:$0xf]
      %v525 = vld [vmem:[%s428 + $0x144] sm:$0xf]
      %v526 = vld [vmem:[%s428 + $0x148] sm:$0xf]
      %v527 = vld [vmem:[%s428 + $0x14c] sm:$0xf]
      %v528 = vld [vmem:[%s428 + $0x150] sm:$0xf]
      %v529 = vld [vmem:[%s428 + $0x154] sm:$0xf]
      %v530 = vld [vmem:[%s428 + $0x158] sm:$0xf]
      %v531 = vld [vmem:[%s428 + $0x15c] sm:$0xf]
      %v532 = vld [vmem:[%s428 + $0x160] sm:$0xf]
      %v533 = vld [vmem:[%s428 + $0x164] sm:$0xf]
      %v534 = vld [vmem:[%s428 + $0x168] sm:$0xf]
      %v535 = vld [vmem:[%s428 + $0x16c] sm:$0xf]
      %v536 = vld [vmem:[%s428 + $0x170] sm:$0xf]
      %v537 = vld [vmem:[%s428 + $0x174] sm:$0xf]
      %v538 = vld [vmem:[%s428 + $0x178] sm:$0xf]
      %v539 = vld [vmem:[%s2] sm:$0xf]
      %v540 = vld [vmem:[%s2 + $0x4] sm:$0xf]
      %v541 = vld [vmem:[%s2 + $0x8] sm:$0xf]
      %v542 = vld [vmem:[%s2 + $0xc] sm:$0xf]
      %v543 = vld [vmem:[%s2 + $0x10] sm:$0xf]
      %v544 = vld [vmem:[%s2 + $0x14] sm:$0xf]
      %v545 = vld [vmem:[%s2 + $0x18] sm:$0xf]
      %v546 = vld [vmem:[%s2 + $0x1c] sm:$0xf]
      %v547 = vld [vmem:[%s2 + $0x20] sm:$0xf]
      %v548 = vld [vmem:[%s2 + $0x24] sm:$0xf]
      %v549 = vld [vmem:[%s2 + $0x28] sm:$0xf]
      %v550 = vld [vmem:[%s2 + $0x2c] sm:$0xf]
      %v551 = vld [vmem:[%s2 + $0x30] sm:$0xf]
      %v552 = vld [vmem:[%s2 + $0x34] sm:$0xf]
      %v553 = vld [vmem:[%s2 + $0x38] sm:$0xf]
      %v554 = vld [vmem:[%s2 + $0x3c] sm:$0xf]
      %v650 = vunpack.c.l.b16 %v444
      %v651 = vunpack.c.l.b16 %v445
      %v652 = vunpack.c.l.b16 %v446
      %v653 = vunpack.c.l.b16 %v447
      %v654 = vunpack.c.l.b16 %v448
      %v655 = vunpack.c.l.b16 %v449
      %v656 = vunpack.c.l.b16 %v450
      %v657 = vunpack.c.l.b16 %v451
      %v658 = vunpack.c.l.b16 %v452
      %v659 = vunpack.c.l.b16 %v453
      %v660 = vunpack.c.l.b16 %v454
      %v661 = vunpack.c.l.b16 %v455
      %v662 = vunpack.c.l.b16 %v456
      %v663 = vunpack.c.l.b16 %v457
      %v664 = vunpack.c.l.b16 %v458
      %v665 = vunpack.c.l.b16 %v459
      %v666 = vunpack.c.l.b16 %v460
      %v667 = vunpack.c.l.b16 %v461
      %v668 = vunpack.c.l.b16 %v462
      %v669 = vunpack.c.l.b16 %v463
      %v670 = vunpack.c.l.b16 %v464
      %v671 = vunpack.c.l.b16 %v465
      %v672 = vunpack.c.l.b16 %v466
      %v673 = vunpack.c.l.b16 %v467
      %v674 = vunpack.c.l.b16 %v468
      %v675 = vunpack.c.l.b16 %v469
      %v676 = vunpack.c.l.b16 %v470
      %v677 = vunpack.c.l.b16 %v471
      %v678 = vunpack.c.l.b16 %v472
      %v679 = vunpack.c.l.b16 %v473
      %v680 = vunpack.c.l.b16 %v474
      %v681 = vunpack.c.l.b16 %v475
      %v682 = vunpack.c.l.b16 %v476
      %v683 = vunpack.c.l.b16 %v477
      %v684 = vunpack.c.l.b16 %v478
      %v685 = vunpack.c.l.b16 %v479
      %v686 = vunpack.c.l.b16 %v480
      %v687 = vunpack.c.l.b16 %v481
      %v688 = vunpack.c.l.b16 %v482
      %v689 = vunpack.c.l.b16 %v483
      %v690 = vunpack.c.l.b16 %v484
      %v691 = vunpack.c.l.b16 %v485
      %v692 = vunpack.c.l.b16 %v486
      %v693 = vunpack.c.l.b16 %v487
      %v694 = vunpack.c.l.b16 %v488
      %v695 = vunpack.c.l.b16 %v489
      %v696 = vunpack.c.l.b16 %v490
      %v697 = vunpack.c.l.b16 %v491
      %v698 = vunpack.c.l.b16 %v492
      %v699 = vunpack.c.l.b16 %v493
      %v700 = vunpack.c.l.b16 %v494
      %v701 = vunpack.c.l.b16 %v495
      %v702 = vunpack.c.l.b16 %v496
      %v703 = vunpack.c.l.b16 %v497
      %v704 = vunpack.c.l.b16 %v498
      %v705 = vunpack.c.l.b16 %v499
      %v706 = vunpack.c.l.b16 %v500
      %v707 = vunpack.c.l.b16 %v501
      %v708 = vunpack.c.l.b16 %v502
      %v709 = vunpack.c.l.b16 %v503
      %v710 = vunpack.c.l.b16 %v504
      %v711 = vunpack.c.l.b16 %v505
      %v712 = vunpack.c.l.b16 %v506
      %v713 = vunpack.c.l.b16 %v507
      %v714 = vunpack.c.l.b16 %v508
      %v715 = vunpack.c.l.b16 %v509
      %v716 = vunpack.c.l.b16 %v510
      %v717 = vunpack.c.l.b16 %v511
      %v718 = vunpack.c.l.b16 %v512
      %v719 = vunpack.c.l.b16 %v513
      %v720 = vunpack.c.l.b16 %v514
      %v721 = vunpack.c.l.b16 %v515
      %v722 = vunpack.c.l.b16 %v516
      %v723 = vunpack.c.l.b16 %v517
      %v724 = vunpack.c.l.b16 %v518
      %v725 = vunpack.c.l.b16 %v519
      %v726 = vunpack.c.l.b16 %v520
      %v727 = vunpack.c.l.b16 %v521
      %v728 = vunpack.c.l.b16 %v522
      %v729 = vunpack.c.l.b16 %v523
      %v730 = vunpack.c.l.b16 %v524
      %v731 = vunpack.c.l.b16 %v525
      %v732 = vunpack.c.l.b16 %v526
      %v733 = vunpack.c.l.b16 %v527
      %v734 = vunpack.c.l.b16 %v528
      %v735 = vunpack.c.l.b16 %v529
      %v736 = vunpack.c.l.b16 %v530
      %v737 = vunpack.c.l.b16 %v531
      %v738 = vunpack.c.l.b16 %v532
      %v739 = vunpack.c.l.b16 %v533
      %v740 = vunpack.c.l.b16 %v534
      %v741 = vunpack.c.l.b16 %v535
      %v742 = vunpack.c.l.b16 %v536
      %v743 = vunpack.c.l.b16 %v537
      %v744 = vunpack.c.l.b16 %v538
      %v745 = vpack.c.b16 %v651, %v650
      %v746 = vpack.c.b16 %v653, %v652
      %v747 = vpack.c.b16 %v655, %v654
      %v748 = vpack.c.b16 %v657, %v656
      %v749 = vpack.c.b16 %v659, %v658
      %v750 = vpack.c.b16 %v661, %v660
      %v751 = vpack.c.b16 %v663, %v662
      %v752 = vpack.c.b16 %v665, %v664
      %v753 = vpack.c.b16 %v667, %v666
      %v754 = vpack.c.b16 %v669, %v668
      %v755 = vpack.c.b16 %v671, %v670
      %v756 = vpack.c.b16 %v673, %v672
      %v757 = vpack.c.b16 %v675, %v674
      %v758 = vpack.c.b16 %v677, %v676
      %v759 = vpack.c.b16 %v679, %v678
      %v760 = vpack.c.b16 %v681, %v680
      %v761 = vpack.c.b16 %v683, %v682
      %v762 = vpack.c.b16 %v685, %v684
      %v763 = vpack.c.b16 %v687, %v686
      %v764 = vpack.c.b16 %v689, %v688
      %v765 = vpack.c.b16 %v691, %v690
      %v766 = vpack.c.b16 %v693, %v692
      %v767 = vpack.c.b16 %v695, %v694
      %v768 = vpack.c.b16 %v697, %v696
      %v769 = vpack.c.b16 %v699, %v698
      %v770 = vpack.c.b16 %v701, %v700
      %v771 = vpack.c.b16 %v703, %v702
      %v772 = vpack.c.b16 %v705, %v704
      %v773 = vpack.c.b16 %v707, %v706
      %v774 = vpack.c.b16 %v709, %v708
      %v775 = vpack.c.b16 %v711, %v710
      %v776 = vpack.c.b16 %v713, %v712
      %v777 = vpack.c.b16 %v715, %v714
      %v778 = vpack.c.b16 %v717, %v716
      %v779 = vpack.c.b16 %v719, %v718
      %v780 = vpack.c.b16 %v721, %v720
      %v781 = vpack.c.b16 %v723, %v722
      %v782 = vpack.c.b16 %v725, %v724
      %v783 = vpack.c.b16 %v727, %v726
      %v784 = vpack.c.b16 %v729, %v728
      %v785 = vpack.c.b16 %v731, %v730
      %v786 = vpack.c.b16 %v733, %v732
      %v787 = vpack.c.b16 %v735, %v734
      %v788 = vpack.c.b16 %v737, %v736
      %v789 = vpack.c.b16 %v739, %v738
      %v790 = vpack.c.b16 %v741, %v740
      %v791 = vpack.c.b16 %v743, %v742
      %v792 = vpack.c.b16 %v744, %v744
      %v857 = vunpack.c.l.b16 %v539
      %v858 = vunpack.c.l.b16 %v540
      %v859 = vunpack.c.l.b16 %v541
      %v860 = vunpack.c.l.b16 %v542
      %v861 = vunpack.c.l.b16 %v543
      %v862 = vunpack.c.l.b16 %v544
      %v863 = vunpack.c.l.b16 %v545
      %v864 = vunpack.c.l.b16 %v546
      %v865 = vunpack.c.l.b16 %v547
      %v866 = vunpack.c.l.b16 %v548
      %v867 = vunpack.c.l.b16 %v549
      %v868 = vunpack.c.l.b16 %v550
      %v869 = vunpack.c.l.b16 %v551
      %v870 = vunpack.c.l.b16 %v552
      %v871 = vunpack.c.l.b16 %v553
      %v872 = vunpack.c.l.b16 %v554
      %v873 = vpack.c.b16 %v858, %v857
      %v874 = vpack.c.b16 %v860, %v859
      %v875 = vpack.c.b16 %v862, %v861
      %v876 = vpack.c.b16 %v864, %v863
      %v877 = vpack.c.b16 %v866, %v865
      %v878 = vpack.c.b16 %v868, %v867
      %v879 = vpack.c.b16 %v870, %v869
      %v880 = vpack.c.b16 %v872, %v871
      %889 = vmatpush.bf16.msra.mxu0 %v880
      %890 = vmatpush.bf16.msra.mxu0 %v879
      %891 = vmatpush.bf16.msra.mxu0 %v878
      %892 = vmatpush.bf16.msra.mxu0 %v877
      %893 = vmatpush.bf16.msra.mxu0 %v876
      %894 = vmatpush.bf16.msra.mxu0 %v875
      %895 = vmatpush.bf16.msra.mxu0 %v874
      %896 = vmatpush.bf16.msra.mxu0 %v873
      %897 = vmatmul.bf16.gmra.mxu0 %v745
      %v898 = vpop.f32.mrf.mxu0
      %v899 = vadd.f32 0.0, %v898
      %v900 = vpop.f32.mrf.mxu0
      %v901 = vadd.f32 0.0, %v900
      %902 = vmatmul.bf16.gmra.mxu0 %v746
      %v903 = vpop.f32.mrf.mxu0
      %v904 = vadd.f32 0.0, %v903
      %v905 = vpop.f32.mrf.mxu0
      %v906 = vadd.f32 0.0, %v905
      %907 = vmatmul.bf16.gmra.mxu0 %v747
      %v908 = vpop.f32.mrf.mxu0
      %v909 = vadd.f32 0.0, %v908
      %v910 = vpop.f32.mrf.mxu0
      %v911 = vadd.f32 0.0, %v910
      %912 = vmatmul.bf16.gmra.mxu0 %v748
      %v913 = vpop.f32.mrf.mxu0
      %v914 = vadd.f32 0.0, %v913
      %v915 = vpop.f32.mrf.mxu0
      %v916 = vadd.f32 0.0, %v915
      %917 = vmatmul.bf16.gmra.mxu0 %v749
      %v918 = vpop.f32.mrf.mxu0
      %v919 = vadd.f32 0.0, %v918
      %v920 = vpop.f32.mrf.mxu0
      %v921 = vadd.f32 0.0, %v920
      %922 = vmatmul.bf16.gmra.mxu0 %v750
      %v923 = vpop.f32.mrf.mxu0
      %v924 = vadd.f32 0.0, %v923
      %v925 = vpop.f32.mrf.mxu0
      %v926 = vadd.f32 0.0, %v925
      %927 = vmatmul.bf16.gmra.mxu0 %v751
      %v928 = vpop.f32.mrf.mxu0
      %v929 = vadd.f32 0.0, %v928
      %v930 = vpop.f32.mrf.mxu0
      %v931 = vadd.f32 0.0, %v930
      %932 = vmatmul.bf16.gmra.mxu0 %v752
      %v933 = vpop.f32.mrf.mxu0
      %v934 = vadd.f32 0.0, %v933
      %v935 = vpop.f32.mrf.mxu0
      %v936 = vadd.f32 0.0, %v935
      %937 = vmatmul.bf16.gmra.mxu0 %v753
      %v938 = vpop.f32.mrf.mxu0
      %v939 = vadd.f32 0.0, %v938
      %v940 = vpop.f32.mrf.mxu0
      %v941 = vadd.f32 0.0, %v940
      %942 = vmatmul.bf16.gmra.mxu0 %v754
      %v943 = vpop.f32.mrf.mxu0
      %v944 = vadd.f32 0.0, %v943
      %v945 = vpop.f32.mrf.mxu0
      %v946 = vadd.f32 0.0, %v945
      %947 = vmatmul.bf16.gmra.mxu0 %v755
      %v948 = vpop.f32.mrf.mxu0
      %v949 = vadd.f32 0.0, %v948
      %v950 = vpop.f32.mrf.mxu0
      %v951 = vadd.f32 0.0, %v950
      %952 = vmatmul.bf16.gmra.mxu0 %v756
      %v953 = vpop.f32.mrf.mxu0
      %v954 = vadd.f32 0.0, %v953
      %v955 = vpop.f32.mrf.mxu0
      %v956 = vadd.f32 0.0, %v955
      %957 = vmatmul.bf16.gmra.mxu0 %v757
      %v958 = vpop.f32.mrf.mxu0
      %v959 = vadd.f32 0.0, %v958
      %v960 = vpop.f32.mrf.mxu0
      %v961 = vadd.f32 0.0, %v960
      %962 = vmatmul.bf16.gmra.mxu0 %v758
      %v963 = vpop.f32.mrf.mxu0
      %v964 = vadd.f32 0.0, %v963
      %v965 = vpop.f32.mrf.mxu0
      %v966 = vadd.f32 0.0, %v965
      %967 = vmatmul.bf16.gmra.mxu0 %v759
      %v968 = vpop.f32.mrf.mxu0
      %v969 = vadd.f32 0.0, %v968
      %v970 = vpop.f32.mrf.mxu0
      %v971 = vadd.f32 0.0, %v970
      %972 = vmatmul.bf16.gmra.mxu0 %v760
      %v973 = vpop.f32.mrf.mxu0
      %v974 = vadd.f32 0.0, %v973
      %v975 = vpop.f32.mrf.mxu0
      %v976 = vadd.f32 0.0, %v975
      %977 = vmatmul.bf16.gmra.mxu0 %v761
      %v978 = vpop.f32.mrf.mxu0
      %v979 = vadd.f32 0.0, %v978
      %v980 = vpop.f32.mrf.mxu0
      %v981 = vadd.f32 0.0, %v980
      %982 = vmatmul.bf16.gmra.mxu0 %v762
      %v983 = vpop.f32.mrf.mxu0
      %v984 = vadd.f32 0.0, %v983
      %v985 = vpop.f32.mrf.mxu0
      %v986 = vadd.f32 0.0, %v985
      %987 = vmatmul.bf16.gmra.mxu0 %v763
      %v988 = vpop.f32.mrf.mxu0
      %v989 = vadd.f32 0.0, %v988
      %v990 = vpop.f32.mrf.mxu0
      %v991 = vadd.f32 0.0, %v990
      %992 = vmatmul.bf16.gmra.mxu0 %v764
      %v993 = vpop.f32.mrf.mxu0
      %v994 = vadd.f32 0.0, %v993
      %v995 = vpop.f32.mrf.mxu0
      %v996 = vadd.f32 0.0, %v995
      %997 = vmatmul.bf16.gmra.mxu0 %v765
      %v998 = vpop.f32.mrf.mxu0
      %v999 = vadd.f32 0.0, %v998
      %v1000 = vpop.f32.mrf.mxu0
      %v1001 = vadd.f32 0.0, %v1000
      %1002 = vmatmul.bf16.gmra.mxu0 %v766
      %v1003 = vpop.f32.mrf.mxu0
      %v1004 = vadd.f32 0.0, %v1003
      %v1005 = vpop.f32.mrf.mxu0
      %v1006 = vadd.f32 0.0, %v1005
      %1007 = vmatmul.bf16.gmra.mxu0 %v767
      %v1008 = vpop.f32.mrf.mxu0
      %v1009 = vadd.f32 0.0, %v1008
      %v1010 = vpop.f32.mrf.mxu0
      %v1011 = vadd.f32 0.0, %v1010
      %1012 = vmatmul.bf16.gmra.mxu0 %v768
      %v1013 = vpop.f32.mrf.mxu0
      %v1014 = vadd.f32 0.0, %v1013
      %v1015 = vpop.f32.mrf.mxu0
      %v1016 = vadd.f32 0.0, %v1015
      %1017 = vmatmul.bf16.gmra.mxu0 %v769
      %v1018 = vpop.f32.mrf.mxu0
      %v1019 = vadd.f32 0.0, %v1018
      %v1020 = vpop.f32.mrf.mxu0
      %v1021 = vadd.f32 0.0, %v1020
      %1022 = vmatmul.bf16.gmra.mxu0 %v770
      %v1023 = vpop.f32.mrf.mxu0
      %v1024 = vadd.f32 0.0, %v1023
      %v1025 = vpop.f32.mrf.mxu0
      %v1026 = vadd.f32 0.0, %v1025
      %1027 = vmatmul.bf16.gmra.mxu0 %v771
      %v1028 = vpop.f32.mrf.mxu0
      %v1029 = vadd.f32 0.0, %v1028
      %v1030 = vpop.f32.mrf.mxu0
      %v1031 = vadd.f32 0.0, %v1030
      %1032 = vmatmul.bf16.gmra.mxu0 %v772
      %v1033 = vpop.f32.mrf.mxu0
      %v1034 = vadd.f32 0.0, %v1033
      %v1035 = vpop.f32.mrf.mxu0
      %v1036 = vadd.f32 0.0, %v1035
      %1037 = vmatmul.bf16.gmra.mxu0 %v773
      %v1038 = vpop.f32.mrf.mxu0
      %v1039 = vadd.f32 0.0, %v1038
      %v1040 = vpop.f32.mrf.mxu0
      %v1041 = vadd.f32 0.0, %v1040
      %1042 = vmatmul.bf16.gmra.mxu0 %v774
      %v1043 = vpop.f32.mrf.mxu0
      %v1044 = vadd.f32 0.0, %v1043
      %v1045 = vpop.f32.mrf.mxu0
      %v1046 = vadd.f32 0.0, %v1045
      %1047 = vmatmul.bf16.gmra.mxu0 %v775
      %v1048 = vpop.f32.mrf.mxu0
      %v1049 = vadd.f32 0.0, %v1048
      %v1050 = vpop.f32.mrf.mxu0
      %v1051 = vadd.f32 0.0, %v1050
      %1052 = vmatmul.bf16.gmra.mxu0 %v776
      %v1053 = vpop.f32.mrf.mxu0
      %v1054 = vadd.f32 0.0, %v1053
      %v1055 = vpop.f32.mrf.mxu0
      %v1056 = vadd.f32 0.0, %v1055
      %1057 = vmatmul.bf16.gmra.mxu0 %v777
      %v1058 = vpop.f32.mrf.mxu0
      %v1059 = vadd.f32 0.0, %v1058
      %v1060 = vpop.f32.mrf.mxu0
      %v1061 = vadd.f32 0.0, %v1060
      %1062 = vmatmul.bf16.gmra.mxu0 %v778
      %v1063 = vpop.f32.mrf.mxu0
      %v1064 = vadd.f32 0.0, %v1063
      %v1065 = vpop.f32.mrf.mxu0
      %v1066 = vadd.f32 0.0, %v1065
      %1067 = vmatmul.bf16.gmra.mxu0 %v779
      %v1068 = vpop.f32.mrf.mxu0
      %v1069 = vadd.f32 0.0, %v1068
      %v1070 = vpop.f32.mrf.mxu0
      %v1071 = vadd.f32 0.0, %v1070
      %1072 = vmatmul.bf16.gmra.mxu0 %v780
      %v1073 = vpop.f32.mrf.mxu0
      %v1074 = vadd.f32 0.0, %v1073
      %v1075 = vpop.f32.mrf.mxu0
      %v1076 = vadd.f32 0.0, %v1075
      %1077 = vmatmul.bf16.gmra.mxu0 %v781
      %v1078 = vpop.f32.mrf.mxu0
      %v1079 = vadd.f32 0.0, %v1078
      %v1080 = vpop.f32.mrf.mxu0
      %v1081 = vadd.f32 0.0, %v1080
      %1082 = vmatmul.bf16.gmra.mxu0 %v782
      %v1083 = vpop.f32.mrf.mxu0
      %v1084 = vadd.f32 0.0, %v1083
      %v1085 = vpop.f32.mrf.mxu0
      %v1086 = vadd.f32 0.0, %v1085
      %1087 = vmatmul.bf16.gmra.mxu0 %v783
      %v1088 = vpop.f32.mrf.mxu0
      %v1089 = vadd.f32 0.0, %v1088
      %v1090 = vpop.f32.mrf.mxu0
      %v1091 = vadd.f32 0.0, %v1090
      %1092 = vmatmul.bf16.gmra.mxu0 %v784
      %v1093 = vpop.f32.mrf.mxu0
      %v1094 = vadd.f32 0.0, %v1093
      %v1095 = vpop.f32.mrf.mxu0
      %v1096 = vadd.f32 0.0, %v1095
      %1097 = vmatmul.bf16.gmra.mxu0 %v785
      %v1098 = vpop.f32.mrf.mxu0
      %v1099 = vadd.f32 0.0, %v1098
      %v1100 = vpop.f32.mrf.mxu0
      %v1101 = vadd.f32 0.0, %v1100
      %1102 = vmatmul.bf16.gmra.mxu0 %v786
      %v1103 = vpop.f32.mrf.mxu0
      %v1104 = vadd.f32 0.0, %v1103
      %v1105 = vpop.f32.mrf.mxu0
      %v1106 = vadd.f32 0.0, %v1105
      %1107 = vmatmul.bf16.gmra.mxu0 %v787
      %v1108 = vpop.f32.mrf.mxu0
      %v1109 = vadd.f32 0.0, %v1108
      %v1110 = vpop.f32.mrf.mxu0
      %v1111 = vadd.f32 0.0, %v1110
      %1112 = vmatmul.bf16.gmra.mxu0 %v788
      %v1113 = vpop.f32.mrf.mxu0
      %v1114 = vadd.f32 0.0, %v1113
      %v1115 = vpop.f32.mrf.mxu0
      %v1116 = vadd.f32 0.0, %v1115
      %1117 = vmatmul.bf16.gmra.mxu0 %v789
      %v1118 = vpop.f32.mrf.mxu0
      %v1119 = vadd.f32 0.0, %v1118
      %v1120 = vpop.f32.mrf.mxu0
      %v1121 = vadd.f32 0.0, %v1120
      %1122 = vmatmul.bf16.gmra.mxu0 %v790
      %v1123 = vpop.f32.mrf.mxu0
      %v1124 = vadd.f32 0.0, %v1123
      %v1125 = vpop.f32.mrf.mxu0
      %1126 = vmatmul.bf16.gmra.mxu0 %v791
      %v1127 = vpop.f32.mrf.mxu0
      %v1128 = vpop.f32.mrf.mxu0
      %1129 = vmatmul.bf16.gmra.mxu0 %v792
      %v1130 = vpop.f32.mrf.mxu0
      %v1131 = vpop.f32.mrf.mxu0
      %1132 = vdwg.mxu0
      %v1133 = vld [vmem:[%s3] sm:$0x1]
      %v1135 = vperm.slane %v1133, 0
      %v1137 = vmul.f32 %v899, %v1135
      %v1138 = vmul.f32 %v901, %v1135
      %v1139 = vmul.f32 %v904, %v1135
      %v1140 = vmul.f32 %v906, %v1135
      %v1141 = vmul.f32 %v909, %v1135
      %v1142 = vmul.f32 %v911, %v1135
      %v1143 = vmul.f32 %v914, %v1135
      %v1144 = vmul.f32 %v916, %v1135
      %v1145 = vmul.f32 %v919, %v1135
      %v1146 = vmul.f32 %v921, %v1135
      %v1147 = vmul.f32 %v924, %v1135
      %v1148 = vmul.f32 %v926, %v1135
      %v1149 = vmul.f32 %v929, %v1135
      %v1150 = vmul.f32 %v931, %v1135
      %v1151 = vmul.f32 %v934, %v1135
      %v1152 = vmul.f32 %v936, %v1135
      %v1153 = vmul.f32 %v939, %v1135
      %v1154 = vmul.f32 %v941, %v1135
      %v1155 = vmul.f32 %v944, %v1135
      %v1156 = vmul.f32 %v946, %v1135
      %v1157 = vmul.f32 %v949, %v1135
      %v1158 = vmul.f32 %v951, %v1135
      %v1159 = vmul.f32 %v954, %v1135
      %v1160 = vmul.f32 %v956, %v1135
      %v1161 = vmul.f32 %v959, %v1135
      %v1162 = vmul.f32 %v961, %v1135
      %v1163 = vmul.f32 %v964, %v1135
      %v1164 = vmul.f32 %v966, %v1135
      %v1165 = vmul.f32 %v969, %v1135
      %v1166 = vmul.f32 %v971, %v1135
      %v1167 = vmul.f32 %v974, %v1135
      %v1168 = vmul.f32 %v976, %v1135
      %v1169 = vmul.f32 %v979, %v1135
      %v1170 = vmul.f32 %v981, %v1135
      %v1171 = vmul.f32 %v984, %v1135
      %v1172 = vmul.f32 %v986, %v1135
      %v1173 = vmul.f32 %v989, %v1135
      %v1174 = vmul.f32 %v991, %v1135
      %v1175 = vmul.f32 %v994, %v1135
      %v1176 = vmul.f32 %v996, %v1135
      %v1177 = vmul.f32 %v999, %v1135
      %v1178 = vmul.f32 %v1001, %v1135
      %v1179 = vmul.f32 %v1004, %v1135
      %v1180 = vmul.f32 %v1006, %v1135
      %v1181 = vmul.f32 %v1009, %v1135
      %v1182 = vmul.f32 %v1011, %v1135
      %v1183 = vmul.f32 %v1014, %v1135
      %v1184 = vmul.f32 %v1016, %v1135
      %v1185 = vmul.f32 %v1019, %v1135
      %v1186 = vmul.f32 %v1021, %v1135
      %v1187 = vmul.f32 %v1024, %v1135
      %v1188 = vmul.f32 %v1026, %v1135
      %v1189 = vmul.f32 %v1029, %v1135
      %v1190 = vmul.f32 %v1031, %v1135
      %v1191 = vmul.f32 %v1034, %v1135
      %v1192 = vmul.f32 %v1036, %v1135
      %v1193 = vmul.f32 %v1039, %v1135
      %v1194 = vmul.f32 %v1041, %v1135
      %v1195 = vmul.f32 %v1044, %v1135
      %v1196 = vmul.f32 %v1046, %v1135
      %v1197 = vmul.f32 %v1049, %v1135
      %v1198 = vmul.f32 %v1051, %v1135
      %v1199 = vmul.f32 %v1054, %v1135
      %v1200 = vmul.f32 %v1056, %v1135
      %v1201 = vmul.f32 %v1059, %v1135
      %v1202 = vmul.f32 %v1061, %v1135
      %v1203 = vmul.f32 %v1064, %v1135
      %v1204 = vmul.f32 %v1066, %v1135
      %v1205 = vmul.f32 %v1069, %v1135
      %v1206 = vmul.f32 %v1071, %v1135
      %v1207 = vmul.f32 %v1074, %v1135
      %v1208 = vmul.f32 %v1076, %v1135
      %v1209 = vmul.f32 %v1079, %v1135
      %v1210 = vmul.f32 %v1081, %v1135
      %v1211 = vmul.f32 %v1084, %v1135
      %v1212 = vmul.f32 %v1086, %v1135
      %v1213 = vmul.f32 %v1089, %v1135
      %v1214 = vmul.f32 %v1091, %v1135
      %v1215 = vmul.f32 %v1094, %v1135
      %v1216 = vmul.f32 %v1096, %v1135
      %v1217 = vmul.f32 %v1099, %v1135
      %v1218 = vmul.f32 %v1101, %v1135
      %v1219 = vmul.f32 %v1104, %v1135
      %v1220 = vmul.f32 %v1106, %v1135
      %v1221 = vmul.f32 %v1109, %v1135
      %v1222 = vmul.f32 %v1111, %v1135
      %v1223 = vmul.f32 %v1114, %v1135
      %v1224 = vmul.f32 %v1116, %v1135
      %v1225 = vmul.f32 %v1119, %v1135
      %v1226 = vmul.f32 %v1121, %v1135
      %v1227 = vmul.f32 %v1124, %v1135
      %v1228 = vld [vmem:[%s4] sm:$0x1]
      %v1230 = vperm.slane %v1228, 0
      %v1232 = vadd.f32 %v1137, %v1230
      %v1233 = vadd.f32 %v1138, %v1230
      %v1234 = vadd.f32 %v1139, %v1230
      %v1235 = vadd.f32 %v1140, %v1230
      %v1236 = vadd.f32 %v1141, %v1230
      %v1237 = vadd.f32 %v1142, %v1230
      %v1238 = vadd.f32 %v1143, %v1230
      %v1239 = vadd.f32 %v1144, %v1230
      %v1240 = vadd.f32 %v1145, %v1230
      %v1241 = vadd.f32 %v1146, %v1230
      %v1242 = vadd.f32 %v1147, %v1230
      %v1243 = vadd.f32 %v1148, %v1230
      %v1244 = vadd.f32 %v1149, %v1230
      %v1245 = vadd.f32 %v1150, %v1230
      %v1246 = vadd.f32 %v1151, %v1230
      %v1247 = vadd.f32 %v1152, %v1230
      %v1248 = vadd.f32 %v1153, %v1230
      %v1249 = vadd.f32 %v1154, %v1230
      %v1250 = vadd.f32 %v1155, %v1230
      %v1251 = vadd.f32 %v1156, %v1230
      %v1252 = vadd.f32 %v1157, %v1230
      %v1253 = vadd.f32 %v1158, %v1230
      %v1254 = vadd.f32 %v1159, %v1230
      %v1255 = vadd.f32 %v1160, %v1230
      %v1256 = vadd.f32 %v1161, %v1230
      %v1257 = vadd.f32 %v1162, %v1230
      %v1258 = vadd.f32 %v1163, %v1230
      %v1259 = vadd.f32 %v1164, %v1230
      %v1260 = vadd.f32 %v1165, %v1230
      %v1261 = vadd.f32 %v1166, %v1230
      %v1262 = vadd.f32 %v1167, %v1230
      %v1263 = vadd.f32 %v1168, %v1230
      %v1264 = vadd.f32 %v1169, %v1230
      %v1265 = vadd.f32 %v1170, %v1230
      %v1266 = vadd.f32 %v1171, %v1230
      %v1267 = vadd.f32 %v1172, %v1230
      %v1268 = vadd.f32 %v1173, %v1230
      %v1269 = vadd.f32 %v1174, %v1230
      %v1270 = vadd.f32 %v1175, %v1230
      %v1271 = vadd.f32 %v1176, %v1230
      %v1272 = vadd.f32 %v1177, %v1230
      %v1273 = vadd.f32 %v1178, %v1230
      %v1274 = vadd.f32 %v1179, %v1230
      %v1275 = vadd.f32 %v1180, %v1230
      %v1276 = vadd.f32 %v1181, %v1230
      %v1277 = vadd.f32 %v1182, %v1230
      %v1278 = vadd.f32 %v1183, %v1230
      %v1279 = vadd.f32 %v1184, %v1230
      %v1280 = vadd.f32 %v1185, %v1230
      %v1281 = vadd.f32 %v1186, %v1230
      %v1282 = vadd.f32 %v1187, %v1230
      %v1283 = vadd.f32 %v1188, %v1230
      %v1284 = vadd.f32 %v1189, %v1230
      %v1285 = vadd.f32 %v1190, %v1230
      %v1286 = vadd.f32 %v1191, %v1230
      %v1287 = vadd.f32 %v1192, %v1230
      %v1288 = vadd.f32 %v1193, %v1230
      %v1289 = vadd.f32 %v1194, %v1230
      %v1290 = vadd.f32 %v1195, %v1230
      %v1291 = vadd.f32 %v1196, %v1230
      %v1292 = vadd.f32 %v1197, %v1230
      %v1293 = vadd.f32 %v1198, %v1230
      %v1294 = vadd.f32 %v1199, %v1230
      %v1295 = vadd.f32 %v1200, %v1230
      %v1296 = vadd.f32 %v1201, %v1230
      %v1297 = vadd.f32 %v1202, %v1230
      %v1298 = vadd.f32 %v1203, %v1230
      %v1299 = vadd.f32 %v1204, %v1230
      %v1300 = vadd.f32 %v1205, %v1230
      %v1301 = vadd.f32 %v1206, %v1230
      %v1302 = vadd.f32 %v1207, %v1230
      %v1303 = vadd.f32 %v1208, %v1230
      %v1304 = vadd.f32 %v1209, %v1230
      %v1305 = vadd.f32 %v1210, %v1230
      %v1306 = vadd.f32 %v1211, %v1230
      %v1307 = vadd.f32 %v1212, %v1230
      %v1308 = vadd.f32 %v1213, %v1230
      %v1309 = vadd.f32 %v1214, %v1230
      %v1310 = vadd.f32 %v1215, %v1230
      %v1311 = vadd.f32 %v1216, %v1230
      %v1312 = vadd.f32 %v1217, %v1230
      %v1313 = vadd.f32 %v1218, %v1230
      %v1314 = vadd.f32 %v1219, %v1230
      %v1315 = vadd.f32 %v1220, %v1230
      %v1316 = vadd.f32 %v1221, %v1230
      %v1317 = vadd.f32 %v1222, %v1230
      %v1318 = vadd.f32 %v1223, %v1230
      %v1319 = vadd.f32 %v1224, %v1230
      %v1320 = vadd.f32 %v1225, %v1230
      %v1321 = vadd.f32 %v1226, %v1230
      %v1322 = vadd.f32 %v1227, %v1230
      %v1323 = vmax.f32 %v1232, 0.0
      %v1324 = vmax.f32 %v1233, 0.0
      %v1325 = vmax.f32 %v1234, 0.0
      %v1326 = vmax.f32 %v1235, 0.0
      %v1327 = vmax.f32 %v1236, 0.0
      %v1328 = vmax.f32 %v1237, 0.0
      %v1329 = vmax.f32 %v1238, 0.0
      %v1330 = vmax.f32 %v1239, 0.0
      %v1331 = vmax.f32 %v1240, 0.0
      %v1332 = vmax.f32 %v1241, 0.0
      %v1333 = vmax.f32 %v1242, 0.0
      %v1334 = vmax.f32 %v1243, 0.0
      %v1335 = vmax.f32 %v1244, 0.0
      %v1336 = vmax.f32 %v1245, 0.0
      %v1337 = vmax.f32 %v1246, 0.0
      %v1338 = vmax.f32 %v1247, 0.0
      %v1339 = vmax.f32 %v1248, 0.0
      %v1340 = vmax.f32 %v1249, 0.0
      %v1341 = vmax.f32 %v1250, 0.0
      %v1342 = vmax.f32 %v1251, 0.0
      %v1343 = vmax.f32 %v1252, 0.0
      %v1344 = vmax.f32 %v1253, 0.0
      %v1345 = vmax.f32 %v1254, 0.0
      %v1346 = vmax.f32 %v1255, 0.0
      %v1347 = vmax.f32 %v1256, 0.0
      %v1348 = vmax.f32 %v1257, 0.0
      %v1349 = vmax.f32 %v1258, 0.0
      %v1350 = vmax.f32 %v1259, 0.0
      %v1351 = vmax.f32 %v1260, 0.0
      %v1352 = vmax.f32 %v1261, 0.0
      %v1353 = vmax.f32 %v1262, 0.0
      %v1354 = vmax.f32 %v1263, 0.0
      %v1355 = vmax.f32 %v1264, 0.0
      %v1356 = vmax.f32 %v1265, 0.0
      %v1357 = vmax.f32 %v1266, 0.0
      %v1358 = vmax.f32 %v1267, 0.0
      %v1359 = vmax.f32 %v1268, 0.0
      %v1360 = vmax.f32 %v1269, 0.0
      %v1361 = vmax.f32 %v1270, 0.0
      %v1362 = vmax.f32 %v1271, 0.0
      %v1363 = vmax.f32 %v1272, 0.0
      %v1364 = vmax.f32 %v1273, 0.0
      %v1365 = vmax.f32 %v1274, 0.0
      %v1366 = vmax.f32 %v1275, 0.0
      %v1367 = vmax.f32 %v1276, 0.0
      %v1368 = vmax.f32 %v1277, 0.0
      %v1369 = vmax.f32 %v1278, 0.0
      %v1370 = vmax.f32 %v1279, 0.0
      %v1371 = vmax.f32 %v1280, 0.0
      %v1372 = vmax.f32 %v1281, 0.0
      %v1373 = vmax.f32 %v1282, 0.0
      %v1374 = vmax.f32 %v1283, 0.0
      %v1375 = vmax.f32 %v1284, 0.0
      %v1376 = vmax.f32 %v1285, 0.0
      %v1377 = vmax.f32 %v1286, 0.0
      %v1378 = vmax.f32 %v1287, 0.0
      %v1379 = vmax.f32 %v1288, 0.0
      %v1380 = vmax.f32 %v1289, 0.0
      %v1381 = vmax.f32 %v1290, 0.0
      %v1382 = vmax.f32 %v1291, 0.0
      %v1383 = vmax.f32 %v1292, 0.0
      %v1384 = vmax.f32 %v1293, 0.0
      %v1385 = vmax.f32 %v1294, 0.0
      %v1386 = vmax.f32 %v1295, 0.0
      %v1387 = vmax.f32 %v1296, 0.0
      %v1388 = vmax.f32 %v1297, 0.0
      %v1389 = vmax.f32 %v1298, 0.0
      %v1390 = vmax.f32 %v1299, 0.0
      %v1391 = vmax.f32 %v1300, 0.0
      %v1392 = vmax.f32 %v1301, 0.0
      %v1393 = vmax.f32 %v1302, 0.0
      %v1394 = vmax.f32 %v1303, 0.0
      %v1395 = vmax.f32 %v1304, 0.0
      %v1396 = vmax.f32 %v1305, 0.0
      %v1397 = vmax.f32 %v1306, 0.0
      %v1398 = vmax.f32 %v1307, 0.0
      %v1399 = vmax.f32 %v1308, 0.0
      %v1400 = vmax.f32 %v1309, 0.0
      %v1401 = vmax.f32 %v1310, 0.0
      %v1402 = vmax.f32 %v1311, 0.0
      %v1403 = vmax.f32 %v1312, 0.0
      %v1404 = vmax.f32 %v1313, 0.0
      %v1405 = vmax.f32 %v1314, 0.0
      %v1406 = vmax.f32 %v1315, 0.0
      %v1407 = vmax.f32 %v1316, 0.0
      %v1408 = vmax.f32 %v1317, 0.0
      %v1409 = vmax.f32 %v1318, 0.0
      %v1410 = vmax.f32 %v1319, 0.0
      %v1411 = vmax.f32 %v1320, 0.0
      %v1412 = vmax.f32 %v1321, 0.0
      %v1413 = vmax.f32 %v1322, 0.0
      %v1414 = vld [vmem:[%s433] sm:$0xff]
      %v1415 = vld [vmem:[%s433 + $0x8] sm:$0xff]
      %v1416 = vld [vmem:[%s433 + $0x10] sm:$0xff]
      %v1417 = vld [vmem:[%s433 + $0x18] sm:$0xff]
      %v1418 = vld [vmem:[%s433 + $0x20] sm:$0xff]
      %v1419 = vld [vmem:[%s433 + $0x28] sm:$0xff]
      %v1420 = vld [vmem:[%s433 + $0x30] sm:$0xff]
      %v1421 = vld [vmem:[%s433 + $0x38] sm:$0xff]
      %v1422 = vld [vmem:[%s433 + $0x40] sm:$0xff]
      %v1423 = vld [vmem:[%s433 + $0x48] sm:$0xff]
      %v1424 = vld [vmem:[%s433 + $0x50] sm:$0xff]
      %v1425 = vld [vmem:[%s433 + $0x58] sm:$0xff]
      %v1426 = vld [vmem:[%s433 + $0x60] sm:$0xff]
      %v1427 = vld [vmem:[%s433 + $0x68] sm:$0xff]
      %v1428 = vld [vmem:[%s433 + $0x70] sm:$0xff]
      %v1429 = vld [vmem:[%s433 + $0x78] sm:$0xff]
      %v1430 = vld [vmem:[%s433 + $0x80] sm:$0xff]
      %v1431 = vld [vmem:[%s433 + $0x88] sm:$0xff]
      %v1432 = vld [vmem:[%s433 + $0x90] sm:$0xff]
      %v1433 = vld [vmem:[%s433 + $0x98] sm:$0xff]
      %v1434 = vld [vmem:[%s433 + $0xa0] sm:$0xff]
      %v1435 = vld [vmem:[%s433 + $0xa8] sm:$0xff]
      %v1436 = vld [vmem:[%s433 + $0xb0] sm:$0xff]
      %v1437 = vld [vmem:[%s433 + $0xb8] sm:$0xff]
      %v1438 = vld [vmem:[%s433 + $0xc0] sm:$0xff]
      %v1439 = vld [vmem:[%s433 + $0xc8] sm:$0xff]
      %v1440 = vld [vmem:[%s433 + $0xd0] sm:$0xff]
      %v1441 = vld [vmem:[%s433 + $0xd8] sm:$0xff]
      %v1442 = vld [vmem:[%s433 + $0xe0] sm:$0xff]
      %v1443 = vld [vmem:[%s433 + $0xe8] sm:$0xff]
      %v1444 = vld [vmem:[%s433 + $0xf0] sm:$0xff]
      %v1445 = vld [vmem:[%s433 + $0xf8] sm:$0xff]
      %v1446 = vld [vmem:[%s433 + $0x100] sm:$0xff]
      %v1447 = vld [vmem:[%s433 + $0x108] sm:$0xff]
      %v1448 = vld [vmem:[%s433 + $0x110] sm:$0xff]
      %v1449 = vld [vmem:[%s433 + $0x118] sm:$0xff]
      %v1450 = vld [vmem:[%s433 + $0x120] sm:$0xff]
      %v1451 = vld [vmem:[%s433 + $0x128] sm:$0xff]
      %v1452 = vld [vmem:[%s433 + $0x130] sm:$0xff]
      %v1453 = vld [vmem:[%s433 + $0x138] sm:$0xff]
      %v1454 = vld [vmem:[%s433 + $0x140] sm:$0xff]
      %v1455 = vld [vmem:[%s433 + $0x148] sm:$0xff]
      %v1456 = vld [vmem:[%s433 + $0x150] sm:$0xff]
      %v1457 = vld [vmem:[%s433 + $0x158] sm:$0xff]
      %v1458 = vld [vmem:[%s433 + $0x160] sm:$0xff]
      %v1459 = vld [vmem:[%s433 + $0x168] sm:$0xff]
      %v1460 = vld [vmem:[%s433 + $0x170] sm:$0xff]
      %v1461 = vld [vmem:[%s433 + $0x178] sm:$0xff]
      %v1462 = vld [vmem:[%s433 + $0x180] sm:$0xff]
      %v1463 = vld [vmem:[%s433 + $0x188] sm:$0xff]
      %v1464 = vld [vmem:[%s433 + $0x190] sm:$0xff]
      %v1465 = vld [vmem:[%s433 + $0x198] sm:$0xff]
      %v1466 = vld [vmem:[%s433 + $0x1a0] sm:$0xff]
      %v1467 = vld [vmem:[%s433 + $0x1a8] sm:$0xff]
      %v1468 = vld [vmem:[%s433 + $0x1b0] sm:$0xff]
      %v1469 = vld [vmem:[%s433 + $0x1b8] sm:$0xff]
      %v1470 = vld [vmem:[%s433 + $0x1c0] sm:$0xff]
      %v1471 = vld [vmem:[%s433 + $0x1c8] sm:$0xff]
      %v1472 = vld [vmem:[%s433 + $0x1d0] sm:$0xff]
      %v1473 = vld [vmem:[%s433 + $0x1d8] sm:$0xff]
      %v1474 = vld [vmem:[%s433 + $0x1e0] sm:$0xff]
      %v1475 = vld [vmem:[%s433 + $0x1e8] sm:$0xff]
      %v1476 = vld [vmem:[%s433 + $0x1f0] sm:$0xff]
      %v1477 = vld [vmem:[%s433 + $0x1f8] sm:$0xff]
      %v1478 = vld [vmem:[%s433 + $0x200] sm:$0xff]
      %v1479 = vld [vmem:[%s433 + $0x208] sm:$0xff]
      %v1480 = vld [vmem:[%s433 + $0x210] sm:$0xff]
      %v1481 = vld [vmem:[%s433 + $0x218] sm:$0xff]
      %v1482 = vld [vmem:[%s433 + $0x220] sm:$0xff]
      %v1483 = vld [vmem:[%s433 + $0x228] sm:$0xff]
      %v1484 = vld [vmem:[%s433 + $0x230] sm:$0xff]
      %v1485 = vld [vmem:[%s433 + $0x238] sm:$0xff]
      %v1486 = vld [vmem:[%s433 + $0x240] sm:$0xff]
      %v1487 = vld [vmem:[%s433 + $0x248] sm:$0xff]
      %v1488 = vld [vmem:[%s433 + $0x250] sm:$0xff]
      %v1489 = vld [vmem:[%s433 + $0x258] sm:$0xff]
      %v1490 = vld [vmem:[%s433 + $0x260] sm:$0xff]
      %v1491 = vld [vmem:[%s433 + $0x268] sm:$0xff]
      %v1492 = vld [vmem:[%s433 + $0x270] sm:$0xff]
      %v1493 = vld [vmem:[%s433 + $0x278] sm:$0xff]
      %v1494 = vld [vmem:[%s433 + $0x280] sm:$0xff]
      %v1495 = vld [vmem:[%s433 + $0x288] sm:$0xff]
      %v1496 = vld [vmem:[%s433 + $0x290] sm:$0xff]
      %v1497 = vld [vmem:[%s433 + $0x298] sm:$0xff]
      %v1498 = vld [vmem:[%s433 + $0x2a0] sm:$0xff]
      %v1499 = vld [vmem:[%s433 + $0x2a8] sm:$0xff]
      %v1500 = vld [vmem:[%s433 + $0x2b0] sm:$0xff]
      %v1501 = vld [vmem:[%s433 + $0x2b8] sm:$0xff]
      %v1502 = vld [vmem:[%s433 + $0x2c0] sm:$0xff]
      %v1503 = vld [vmem:[%s433 + $0x2c8] sm:$0xff]
      %v1504 = vld [vmem:[%s433 + $0x2d0] sm:$0xff]
      %1506 = vset.pattern.permute.xlu0 0
      %1507 = vperm.xlu0 %1506, %v1414
      %v1508 = vpop.permute.xlu0 %1507
      %1511 = vset.pattern.permute.xlu0 0
      %1512 = vperm.xlu0 %1511, %v1415
      %v1513 = vpop.permute.xlu0 %1512
      %1516 = vset.pattern.permute.xlu0 0
      %1517 = vperm.xlu0 %1516, %v1416
      %v1518 = vpop.permute.xlu0 %1517
      %1521 = vset.pattern.permute.xlu0 0
      %1522 = vperm.xlu0 %1521, %v1417
      %v1523 = vpop.permute.xlu0 %1522
      %1526 = vset.pattern.permute.xlu0 0
      %1527 = vperm.xlu0 %1526, %v1418
      %v1528 = vpop.permute.xlu0 %1527
      %1531 = vset.pattern.permute.xlu0 0
      %1532 = vperm.xlu0 %1531, %v1419
      %v1533 = vpop.permute.xlu0 %1532
      %1536 = vset.pattern.permute.xlu0 0
      %1537 = vperm.xlu0 %1536, %v1420
      %v1538 = vpop.permute.xlu0 %1537
      %1541 = vset.pattern.permute.xlu0 0
      %1542 = vperm.xlu0 %1541, %v1421
      %v1543 = vpop.permute.xlu0 %1542
      %1546 = vset.pattern.permute.xlu0 0
      %1547 = vperm.xlu0 %1546, %v1422
      %v1548 = vpop.permute.xlu0 %1547
      %1551 = vset.pattern.permute.xlu0 0
      %1552 = vperm.xlu0 %1551, %v1423
      %v1553 = vpop.permute.xlu0 %1552
      %1556 = vset.pattern.permute.xlu0 0
      %1557 = vperm.xlu0 %1556, %v1424
      %v1558 = vpop.permute.xlu0 %1557
      %1561 = vset.pattern.permute.xlu0 0
      %1562 = vperm.xlu0 %1561, %v1425
      %v1563 = vpop.permute.xlu0 %1562
      %1566 = vset.pattern.permute.xlu0 0
      %1567 = vperm.xlu0 %1566, %v1426
      %v1568 = vpop.permute.xlu0 %1567
      %1571 = vset.pattern.permute.xlu0 0
      %1572 = vperm.xlu0 %1571, %v1427
      %v1573 = vpop.permute.xlu0 %1572
      %1576 = vset.pattern.permute.xlu0 0
      %1577 = vperm.xlu0 %1576, %v1428
      %v1578 = vpop.permute.xlu0 %1577
      %1581 = vset.pattern.permute.xlu0 0
      %1582 = vperm.xlu0 %1581, %v1429
      %v1583 = vpop.permute.xlu0 %1582
      %1586 = vset.pattern.permute.xlu0 0
      %1587 = vperm.xlu0 %1586, %v1430
      %v1588 = vpop.permute.xlu0 %1587
      %1591 = vset.pattern.permute.xlu0 0
      %1592 = vperm.xlu0 %1591, %v1431
      %v1593 = vpop.permute.xlu0 %1592
      %1596 = vset.pattern.permute.xlu0 0
      %1597 = vperm.xlu0 %1596, %v1432
      %v1598 = vpop.permute.xlu0 %1597
      %1601 = vset.pattern.permute.xlu0 0
      %1602 = vperm.xlu0 %1601, %v1433
      %v1603 = vpop.permute.xlu0 %1602
      %1606 = vset.pattern.permute.xlu0 0
      %1607 = vperm.xlu0 %1606, %v1434
      %v1608 = vpop.permute.xlu0 %1607
      %1611 = vset.pattern.permute.xlu0 0
      %1612 = vperm.xlu0 %1611, %v1435
      %v1613 = vpop.permute.xlu0 %1612
      %1616 = vset.pattern.permute.xlu0 0
      %1617 = vperm.xlu0 %1616, %v1436
      %v1618 = vpop.permute.xlu0 %1617
      %1621 = vset.pattern.permute.xlu0 0
      %1622 = vperm.xlu0 %1621, %v1437
      %v1623 = vpop.permute.xlu0 %1622
      %1626 = vset.pattern.permute.xlu0 0
      %1627 = vperm.xlu0 %1626, %v1438
      %v1628 = vpop.permute.xlu0 %1627
      %1631 = vset.pattern.permute.xlu0 0
      %1632 = vperm.xlu0 %1631, %v1439
      %v1633 = vpop.permute.xlu0 %1632
      %1636 = vset.pattern.permute.xlu0 0
      %1637 = vperm.xlu0 %1636, %v1440
      %v1638 = vpop.permute.xlu0 %1637
      %1641 = vset.pattern.permute.xlu0 0
      %1642 = vperm.xlu0 %1641, %v1441
      %v1643 = vpop.permute.xlu0 %1642
      %1646 = vset.pattern.permute.xlu0 0
      %1647 = vperm.xlu0 %1646, %v1442
      %v1648 = vpop.permute.xlu0 %1647
      %1651 = vset.pattern.permute.xlu0 0
      %1652 = vperm.xlu0 %1651, %v1443
      %v1653 = vpop.permute.xlu0 %1652
      %1656 = vset.pattern.permute.xlu0 0
      %1657 = vperm.xlu0 %1656, %v1444
      %v1658 = vpop.permute.xlu0 %1657
      %1661 = vset.pattern.permute.xlu0 0
      %1662 = vperm.xlu0 %1661, %v1445
      %v1663 = vpop.permute.xlu0 %1662
      %1666 = vset.pattern.permute.xlu0 0
      %1667 = vperm.xlu0 %1666, %v1446
      %v1668 = vpop.permute.xlu0 %1667
      %1671 = vset.pattern.permute.xlu0 0
      %1672 = vperm.xlu0 %1671, %v1447
      %v1673 = vpop.permute.xlu0 %1672
      %1676 = vset.pattern.permute.xlu0 0
      %1677 = vperm.xlu0 %1676, %v1448
      %v1678 = vpop.permute.xlu0 %1677
      %1681 = vset.pattern.permute.xlu0 0
      %1682 = vperm.xlu0 %1681, %v1449
      %v1683 = vpop.permute.xlu0 %1682
      %1686 = vset.pattern.permute.xlu0 0
      %1687 = vperm.xlu0 %1686, %v1450
      %v1688 = vpop.permute.xlu0 %1687
      %1691 = vset.pattern.permute.xlu0 0
      %1692 = vperm.xlu0 %1691, %v1451
      %v1693 = vpop.permute.xlu0 %1692
      %1696 = vset.pattern.permute.xlu0 0
      %1697 = vperm.xlu0 %1696, %v1452
      %v1698 = vpop.permute.xlu0 %1697
      %1701 = vset.pattern.permute.xlu0 0
      %1702 = vperm.xlu0 %1701, %v1453
      %v1703 = vpop.permute.xlu0 %1702
      %1706 = vset.pattern.permute.xlu0 0
      %1707 = vperm.xlu0 %1706, %v1454
      %v1708 = vpop.permute.xlu0 %1707
      %1711 = vset.pattern.permute.xlu0 0
      %1712 = vperm.xlu0 %1711, %v1455
      %v1713 = vpop.permute.xlu0 %1712
      %1716 = vset.pattern.permute.xlu0 0
      %1717 = vperm.xlu0 %1716, %v1456
      %v1718 = vpop.permute.xlu0 %1717
      %1721 = vset.pattern.permute.xlu0 0
      %1722 = vperm.xlu0 %1721, %v1457
      %v1723 = vpop.permute.xlu0 %1722
      %1726 = vset.pattern.permute.xlu0 0
      %1727 = vperm.xlu0 %1726, %v1458
      %v1728 = vpop.permute.xlu0 %1727
      %1731 = vset.pattern.permute.xlu0 0
      %1732 = vperm.xlu0 %1731, %v1459
      %v1733 = vpop.permute.xlu0 %1732
      %1736 = vset.pattern.permute.xlu0 0
      %1737 = vperm.xlu0 %1736, %v1460
      %v1738 = vpop.permute.xlu0 %1737
      %1741 = vset.pattern.permute.xlu0 0
      %1742 = vperm.xlu0 %1741, %v1461
      %v1743 = vpop.permute.xlu0 %1742
      %1746 = vset.pattern.permute.xlu0 0
      %1747 = vperm.xlu0 %1746, %v1462
      %v1748 = vpop.permute.xlu0 %1747
      %1751 = vset.pattern.permute.xlu0 0
      %1752 = vperm.xlu0 %1751, %v1463
      %v1753 = vpop.permute.xlu0 %1752
      %1756 = vset.pattern.permute.xlu0 0
      %1757 = vperm.xlu0 %1756, %v1464
      %v1758 = vpop.permute.xlu0 %1757
      %1761 = vset.pattern.permute.xlu0 0
      %1762 = vperm.xlu0 %1761, %v1465
      %v1763 = vpop.permute.xlu0 %1762
      %1766 = vset.pattern.permute.xlu0 0
      %1767 = vperm.xlu0 %1766, %v1466
      %v1768 = vpop.permute.xlu0 %1767
      %1771 = vset.pattern.permute.xlu0 0
      %1772 = vperm.xlu0 %1771, %v1467
      %v1773 = vpop.permute.xlu0 %1772
      %1776 = vset.pattern.permute.xlu0 0
      %1777 = vperm.xlu0 %1776, %v1468
      %v1778 = vpop.permute.xlu0 %1777
      %1781 = vset.pattern.permute.xlu0 0
      %1782 = vperm.xlu0 %1781, %v1469
      %v1783 = vpop.permute.xlu0 %1782
      %1786 = vset.pattern.permute.xlu0 0
      %1787 = vperm.xlu0 %1786, %v1470
      %v1788 = vpop.permute.xlu0 %1787
      %1791 = vset.pattern.permute.xlu0 0
      %1792 = vperm.xlu0 %1791, %v1471
      %v1793 = vpop.permute.xlu0 %1792
      %1796 = vset.pattern.permute.xlu0 0
      %1797 = vperm.xlu0 %1796, %v1472
      %v1798 = vpop.permute.xlu0 %1797
      %1801 = vset.pattern.permute.xlu0 0
      %1802 = vperm.xlu0 %1801, %v1473
      %v1803 = vpop.permute.xlu0 %1802
      %1806 = vset.pattern.permute.xlu0 0
      %1807 = vperm.xlu0 %1806, %v1474
      %v1808 = vpop.permute.xlu0 %1807
      %1811 = vset.pattern.permute.xlu0 0
      %1812 = vperm.xlu0 %1811, %v1475
      %v1813 = vpop.permute.xlu0 %1812
      %1816 = vset.pattern.permute.xlu0 0
      %1817 = vperm.xlu0 %1816, %v1476
      %v1818 = vpop.permute.xlu0 %1817
      %1821 = vset.pattern.permute.xlu0 0
      %1822 = vperm.xlu0 %1821, %v1477
      %v1823 = vpop.permute.xlu0 %1822
      %1826 = vset.pattern.permute.xlu0 0
      %1827 = vperm.xlu0 %1826, %v1478
      %v1828 = vpop.permute.xlu0 %1827
      %1831 = vset.pattern.permute.xlu0 0
      %1832 = vperm.xlu0 %1831, %v1479
      %v1833 = vpop.permute.xlu0 %1832
      %1836 = vset.pattern.permute.xlu0 0
      %1837 = vperm.xlu0 %1836, %v1480
      %v1838 = vpop.permute.xlu0 %1837
      %1841 = vset.pattern.permute.xlu0 0
      %1842 = vperm.xlu0 %1841, %v1481
      %v1843 = vpop.permute.xlu0 %1842
      %1846 = vset.pattern.permute.xlu0 0
      %1847 = vperm.xlu0 %1846, %v1482
      %v1848 = vpop.permute.xlu0 %1847
      %1851 = vset.pattern.permute.xlu0 0
      %1852 = vperm.xlu0 %1851, %v1483
      %v1853 = vpop.permute.xlu0 %1852
      %1856 = vset.pattern.permute.xlu0 0
      %1857 = vperm.xlu0 %1856, %v1484
      %v1858 = vpop.permute.xlu0 %1857
      %1861 = vset.pattern.permute.xlu0 0
      %1862 = vperm.xlu0 %1861, %v1485
      %v1863 = vpop.permute.xlu0 %1862
      %1866 = vset.pattern.permute.xlu0 0
      %1867 = vperm.xlu0 %1866, %v1486
      %v1868 = vpop.permute.xlu0 %1867
      %1871 = vset.pattern.permute.xlu0 0
      %1872 = vperm.xlu0 %1871, %v1487
      %v1873 = vpop.permute.xlu0 %1872
      %1876 = vset.pattern.permute.xlu0 0
      %1877 = vperm.xlu0 %1876, %v1488
      %v1878 = vpop.permute.xlu0 %1877
      %1881 = vset.pattern.permute.xlu0 0
      %1882 = vperm.xlu0 %1881, %v1489
      %v1883 = vpop.permute.xlu0 %1882
      %1886 = vset.pattern.permute.xlu0 0
      %1887 = vperm.xlu0 %1886, %v1490
      %v1888 = vpop.permute.xlu0 %1887
      %1891 = vset.pattern.permute.xlu0 0
      %1892 = vperm.xlu0 %1891, %v1491
      %v1893 = vpop.permute.xlu0 %1892
      %1896 = vset.pattern.permute.xlu0 0
      %1897 = vperm.xlu0 %1896, %v1492
      %v1898 = vpop.permute.xlu0 %1897
      %1901 = vset.pattern.permute.xlu0 0
      %1902 = vperm.xlu0 %1901, %v1493
      %v1903 = vpop.permute.xlu0 %1902
      %1906 = vset.pattern.permute.xlu0 0
      %1907 = vperm.xlu0 %1906, %v1494
      %v1908 = vpop.permute.xlu0 %1907
      %1911 = vset.pattern.permute.xlu0 0
      %1912 = vperm.xlu0 %1911, %v1495
      %v1913 = vpop.permute.xlu0 %1912
      %1916 = vset.pattern.permute.xlu0 0
      %1917 = vperm.xlu0 %1916, %v1496
      %v1918 = vpop.permute.xlu0 %1917
      %1921 = vset.pattern.permute.xlu0 0
      %1922 = vperm.xlu0 %1921, %v1497
      %v1923 = vpop.permute.xlu0 %1922
      %1926 = vset.pattern.permute.xlu0 0
      %1927 = vperm.xlu0 %1926, %v1498
      %v1928 = vpop.permute.xlu0 %1927
      %1931 = vset.pattern.permute.xlu0 0
      %1932 = vperm.xlu0 %1931, %v1499
      %v1933 = vpop.permute.xlu0 %1932
      %1936 = vset.pattern.permute.xlu0 0
      %1937 = vperm.xlu0 %1936, %v1500
      %v1938 = vpop.permute.xlu0 %1937
      %1941 = vset.pattern.permute.xlu0 0
      %1942 = vperm.xlu0 %1941, %v1501
      %v1943 = vpop.permute.xlu0 %1942
      %1946 = vset.pattern.permute.xlu0 0
      %1947 = vperm.xlu0 %1946, %v1502
      %v1948 = vpop.permute.xlu0 %1947
      %1951 = vset.pattern.permute.xlu0 0
      %1952 = vperm.xlu0 %1951, %v1503
      %v1953 = vpop.permute.xlu0 %1952
      %1956 = vset.pattern.permute.xlu0 0
      %1957 = vperm.xlu0 %1956, %v1504
      %v1958 = vpop.permute.xlu0 %1957
      %v1960 = vmul.f32 %v1323, %v1508
      %v1961 = vmul.f32 %v1324, %v1513
      %v1962 = vmul.f32 %v1325, %v1518
      %v1963 = vmul.f32 %v1326, %v1523
      %v1964 = vmul.f32 %v1327, %v1528
      %v1965 = vmul.f32 %v1328, %v1533
      %v1966 = vmul.f32 %v1329, %v1538
      %v1967 = vmul.f32 %v1330, %v1543
      %v1968 = vmul.f32 %v1331, %v1548
      %v1969 = vmul.f32 %v1332, %v1553
      %v1970 = vmul.f32 %v1333, %v1558
      %v1971 = vmul.f32 %v1334, %v1563
      %v1972 = vmul.f32 %v1335, %v1568
      %v1973 = vmul.f32 %v1336, %v1573
      %v1974 = vmul.f32 %v1337, %v1578
      %v1975 = vmul.f32 %v1338, %v1583
      %v1976 = vmul.f32 %v1339, %v1588
      %v1977 = vmul.f32 %v1340, %v1593
      %v1978 = vmul.f32 %v1341, %v1598
      %v1979 = vmul.f32 %v1342, %v1603
      %v1980 = vmul.f32 %v1343, %v1608
      %v1981 = vmul.f32 %v1344, %v1613
      %v1982 = vmul.f32 %v1345, %v1618
      %v1983 = vmul.f32 %v1346, %v1623
      %v1984 = vmul.f32 %v1347, %v1628
      %v1985 = vmul.f32 %v1348, %v1633
      %v1986 = vmul.f32 %v1349, %v1638
      %v1987 = vmul.f32 %v1350, %v1643
      %v1988 = vmul.f32 %v1351, %v1648
      %v1989 = vmul.f32 %v1352, %v1653
      %v1990 = vmul.f32 %v1353, %v1658
      %v1991 = vmul.f32 %v1354, %v1663
      %v1992 = vmul.f32 %v1355, %v1668
      %v1993 = vmul.f32 %v1356, %v1673
      %v1994 = vmul.f32 %v1357, %v1678
      %v1995 = vmul.f32 %v1358, %v1683
      %v1996 = vmul.f32 %v1359, %v1688
      %v1997 = vmul.f32 %v1360, %v1693
      %v1998 = vmul.f32 %v1361, %v1698
      %v1999 = vmul.f32 %v1362, %v1703
      %v2000 = vmul.f32 %v1363, %v1708
      %v2001 = vmul.f32 %v1364, %v1713
      %v2002 = vmul.f32 %v1365, %v1718
      %v2003 = vmul.f32 %v1366, %v1723
      %v2004 = vmul.f32 %v1367, %v1728
      %v2005 = vmul.f32 %v1368, %v1733
      %v2006 = vmul.f32 %v1369, %v1738
      %v2007 = vmul.f32 %v1370, %v1743
      %v2008 = vmul.f32 %v1371, %v1748
      %v2009 = vmul.f32 %v1372, %v1753
      %v2010 = vmul.f32 %v1373, %v1758
      %v2011 = vmul.f32 %v1374, %v1763
      %v2012 = vmul.f32 %v1375, %v1768
      %v2013 = vmul.f32 %v1376, %v1773
      %v2014 = vmul.f32 %v1377, %v1778
      %v2015 = vmul.f32 %v1378, %v1783
      %v2016 = vmul.f32 %v1379, %v1788
      %v2017 = vmul.f32 %v1380, %v1793
      %v2018 = vmul.f32 %v1381, %v1798
      %v2019 = vmul.f32 %v1382, %v1803
      %v2020 = vmul.f32 %v1383, %v1808
      %v2021 = vmul.f32 %v1384, %v1813
      %v2022 = vmul.f32 %v1385, %v1818
      %v2023 = vmul.f32 %v1386, %v1823
      %v2024 = vmul.f32 %v1387, %v1828
      %v2025 = vmul.f32 %v1388, %v1833
      %v2026 = vmul.f32 %v1389, %v1838
      %v2027 = vmul.f32 %v1390, %v1843
      %v2028 = vmul.f32 %v1391, %v1848
      %v2029 = vmul.f32 %v1392, %v1853
      %v2030 = vmul.f32 %v1393, %v1858
      %v2031 = vmul.f32 %v1394, %v1863
      %v2032 = vmul.f32 %v1395, %v1868
      %v2033 = vmul.f32 %v1396, %v1873
      %v2034 = vmul.f32 %v1397, %v1878
      %v2035 = vmul.f32 %v1398, %v1883
      %v2036 = vmul.f32 %v1399, %v1888
      %v2037 = vmul.f32 %v1400, %v1893
      %v2038 = vmul.f32 %v1401, %v1898
      %v2039 = vmul.f32 %v1402, %v1903
      %v2040 = vmul.f32 %v1403, %v1908
      %v2041 = vmul.f32 %v1404, %v1913
      %v2042 = vmul.f32 %v1405, %v1918
      %v2043 = vmul.f32 %v1406, %v1923
      %v2044 = vmul.f32 %v1407, %v1928
      %v2045 = vmul.f32 %v1408, %v1933
      %v2046 = vmul.f32 %v1409, %v1938
      %v2047 = vmul.f32 %v1410, %v1943
      %v2048 = vmul.f32 %v1411, %v1948
      %v2049 = vmul.f32 %v1412, %v1953
      %v2050 = vmul.f32 %v1413, %v1958
      %v2051 = vpack.c.bf16 %v1960, %v1960
      %v2052 = vpack.c.bf16 %v1961, %v1961
      %v2053 = vpack.c.bf16 %v1962, %v1962
      %v2054 = vpack.c.bf16 %v1963, %v1963
      %v2055 = vpack.c.bf16 %v1964, %v1964
      %v2056 = vpack.c.bf16 %v1965, %v1965
      %v2057 = vpack.c.bf16 %v1966, %v1966
      %v2058 = vpack.c.bf16 %v1967, %v1967
      %v2059 = vpack.c.bf16 %v1968, %v1968
      %v2060 = vpack.c.bf16 %v1969, %v1969
      %v2061 = vpack.c.bf16 %v1970, %v1970
      %v2062 = vpack.c.bf16 %v1971, %v1971
      %v2063 = vpack.c.bf16 %v1972, %v1972
      %v2064 = vpack.c.bf16 %v1973, %v1973
      %v2065 = vpack.c.bf16 %v1974, %v1974
      %v2066 = vpack.c.bf16 %v1975, %v1975
      %v2067 = vpack.c.bf16 %v1976, %v1976
      %v2068 = vpack.c.bf16 %v1977, %v1977
      %v2069 = vpack.c.bf16 %v1978, %v1978
      %v2070 = vpack.c.bf16 %v1979, %v1979
      %v2071 = vpack.c.bf16 %v1980, %v1980
      %v2072 = vpack.c.bf16 %v1981, %v1981
      %v2073 = vpack.c.bf16 %v1982, %v1982
      %v2074 = vpack.c.bf16 %v1983, %v1983
      %v2075 = vpack.c.bf16 %v1984, %v1984
      %v2076 = vpack.c.bf16 %v1985, %v1985
      %v2077 = vpack.c.bf16 %v1986, %v1986
      %v2078 = vpack.c.bf16 %v1987, %v1987
      %v2079 = vpack.c.bf16 %v1988, %v1988
      %v2080 = vpack.c.bf16 %v1989, %v1989
      %v2081 = vpack.c.bf16 %v1990, %v1990
      %v2082 = vpack.c.bf16 %v1991, %v1991
      %v2083 = vpack.c.bf16 %v1992, %v1992
      %v2084 = vpack.c.bf16 %v1993, %v1993
      %v2085 = vpack.c.bf16 %v1994, %v1994
      %v2086 = vpack.c.bf16 %v1995, %v1995
      %v2087 = vpack.c.bf16 %v1996, %v1996
      %v2088 = vpack.c.bf16 %v1997, %v1997
      %v2089 = vpack.c.bf16 %v1998, %v1998
      %v2090 = vpack.c.bf16 %v1999, %v1999
      %v2091 = vpack.c.bf16 %v2000, %v2000
      %v2092 = vpack.c.bf16 %v2001, %v2001
      %v2093 = vpack.c.bf16 %v2002, %v2002
      %v2094 = vpack.c.bf16 %v2003, %v2003
      %v2095 = vpack.c.bf16 %v2004, %v2004
      %v2096 = vpack.c.bf16 %v2005, %v2005
      %v2097 = vpack.c.bf16 %v2006, %v2006
      %v2098 = vpack.c.bf16 %v2007, %v2007
      %v2099 = vpack.c.bf16 %v2008, %v2008
      %v2100 = vpack.c.bf16 %v2009, %v2009
      %v2101 = vpack.c.bf16 %v2010, %v2010
      %v2102 = vpack.c.bf16 %v2011, %v2011
      %v2103 = vpack.c.bf16 %v2012, %v2012
      %v2104 = vpack.c.bf16 %v2013, %v2013
      %v2105 = vpack.c.bf16 %v2014, %v2014
      %v2106 = vpack.c.bf16 %v2015, %v2015
      %v2107 = vpack.c.bf16 %v2016, %v2016
      %v2108 = vpack.c.bf16 %v2017, %v2017
      %v2109 = vpack.c.bf16 %v2018, %v2018
      %v2110 = vpack.c.bf16 %v2019, %v2019
      %v2111 = vpack.c.bf16 %v2020, %v2020
      %v2112 = vpack.c.bf16 %v2021, %v2021
      %v2113 = vpack.c.bf16 %v2022, %v2022
      %v2114 = vpack.c.bf16 %v2023, %v2023
      %v2115 = vpack.c.bf16 %v2024, %v2024
      %v2116 = vpack.c.bf16 %v2025, %v2025
      %v2117 = vpack.c.bf16 %v2026, %v2026
      %v2118 = vpack.c.bf16 %v2027, %v2027
      %v2119 = vpack.c.bf16 %v2028, %v2028
      %v2120 = vpack.c.bf16 %v2029, %v2029
      %v2121 = vpack.c.bf16 %v2030, %v2030
      %v2122 = vpack.c.bf16 %v2031, %v2031
      %v2123 = vpack.c.bf16 %v2032, %v2032
      %v2124 = vpack.c.bf16 %v2033, %v2033
      %v2125 = vpack.c.bf16 %v2034, %v2034
      %v2126 = vpack.c.bf16 %v2035, %v2035
      %v2127 = vpack.c.bf16 %v2036, %v2036
      %v2128 = vpack.c.bf16 %v2037, %v2037
      %v2129 = vpack.c.bf16 %v2038, %v2038
      %v2130 = vpack.c.bf16 %v2039, %v2039
      %v2131 = vpack.c.bf16 %v2040, %v2040
      %v2132 = vpack.c.bf16 %v2041, %v2041
      %v2133 = vpack.c.bf16 %v2042, %v2042
      %v2134 = vpack.c.bf16 %v2043, %v2043
      %v2135 = vpack.c.bf16 %v2044, %v2044
      %v2136 = vpack.c.bf16 %v2045, %v2045
      %v2137 = vpack.c.bf16 %v2046, %v2046
      %v2138 = vpack.c.bf16 %v2047, %v2047
      %v2139 = vpack.c.bf16 %v2048, %v2048
      %v2140 = vpack.c.bf16 %v2049, %v2049
      %v2141 = vpack.c.bf16 %v2050, %v2050
      %v2222 = vunpack.c.l.b16 %v2051
      %v2223 = vunpack.c.l.b16 %v2052
      %v2224 = vunpack.c.l.b16 %v2053
      %v2225 = vunpack.c.l.b16 %v2054
      %v2226 = vunpack.c.l.b16 %v2055
      %v2227 = vunpack.c.l.b16 %v2056
      %v2228 = vunpack.c.l.b16 %v2057
      %v2229 = vunpack.c.l.b16 %v2058
      %v2230 = vunpack.c.l.b16 %v2059
      %v2231 = vunpack.c.l.b16 %v2060
      %v2232 = vunpack.c.l.b16 %v2061
      %v2233 = vunpack.c.l.b16 %v2062
      %v2234 = vunpack.c.l.b16 %v2063
      %v2235 = vunpack.c.l.b16 %v2064
      %v2236 = vunpack.c.l.b16 %v2065
      %v2237 = vunpack.c.l.b16 %v2066
      %v2238 = vunpack.c.l.b16 %v2067
      %v2239 = vunpack.c.l.b16 %v2068
      %v2240 = vunpack.c.l.b16 %v2069
      %v2241 = vunpack.c.l.b16 %v2070
      %v2242 = vunpack.c.l.b16 %v2071
      %v2243 = vunpack.c.l.b16 %v2072
      %v2244 = vunpack.c.l.b16 %v2073
      %v2245 = vunpack.c.l.b16 %v2074
      %v2246 = vunpack.c.l.b16 %v2075
      %v2247 = vunpack.c.l.b16 %v2076
      %v2248 = vunpack.c.l.b16 %v2077
      %v2249 = vunpack.c.l.b16 %v2078
      %v2250 = vunpack.c.l.b16 %v2079
      %v2251 = vunpack.c.l.b16 %v2080
      %v2252 = vunpack.c.l.b16 %v2081
      %v2253 = vunpack.c.l.b16 %v2082
      %v2254 = vunpack.c.l.b16 %v2083
      %v2255 = vunpack.c.l.b16 %v2084
      %v2256 = vunpack.c.l.b16 %v2085
      %v2257 = vunpack.c.l.b16 %v2086
      %v2258 = vunpack.c.l.b16 %v2087
      %v2259 = vunpack.c.l.b16 %v2088
      %v2260 = vunpack.c.l.b16 %v2089
      %v2261 = vunpack.c.l.b16 %v2090
      %v2262 = vunpack.c.l.b16 %v2091
      %v2263 = vunpack.c.l.b16 %v2092
      %v2264 = vunpack.c.l.b16 %v2093
      %v2265 = vunpack.c.l.b16 %v2094
      %v2266 = vunpack.c.l.b16 %v2095
      %v2267 = vunpack.c.l.b16 %v2096
      %v2268 = vunpack.c.l.b16 %v2097
      %v2269 = vunpack.c.l.b16 %v2098
      %v2270 = vunpack.c.l.b16 %v2099
      %v2271 = vunpack.c.l.b16 %v2100
      %v2272 = vunpack.c.l.b16 %v2101
      %v2273 = vunpack.c.l.b16 %v2102
      %v2274 = vunpack.c.l.b16 %v2103
      %v2275 = vunpack.c.l.b16 %v2104
      %v2276 = vunpack.c.l.b16 %v2105
      %v2277 = vunpack.c.l.b16 %v2106
      %v2278 = vunpack.c.l.b16 %v2107
      %v2279 = vunpack.c.l.b16 %v2108
      %v2280 = vunpack.c.l.b16 %v2109
      %v2281 = vunpack.c.l.b16 %v2110
      %v2282 = vunpack.c.l.b16 %v2111
      %v2283 = vunpack.c.l.b16 %v2112
      %v2284 = vunpack.c.l.b16 %v2113
      %v2285 = vunpack.c.l.b16 %v2114
      %v2286 = vunpack.c.l.b16 %v2115
      %v2287 = vunpack.c.l.b16 %v2116
      %v2288 = vunpack.c.l.b16 %v2117
      %v2289 = vunpack.c.l.b16 %v2118
      %v2290 = vunpack.c.l.b16 %v2119
      %v2291 = vunpack.c.l.b16 %v2120
      %v2292 = vunpack.c.l.b16 %v2121
      %v2293 = vunpack.c.l.b16 %v2122
      %v2294 = vunpack.c.l.b16 %v2123
      %v2295 = vunpack.c.l.b16 %v2124
      %v2296 = vunpack.c.l.b16 %v2125
      %v2297 = vunpack.c.l.b16 %v2126
      %v2298 = vunpack.c.l.b16 %v2127
      %v2299 = vunpack.c.l.b16 %v2128
      %v2300 = vunpack.c.l.b16 %v2129
      %v2301 = vunpack.c.l.b16 %v2130
      %v2302 = vpack.c.b16 %v2223, %v2222
      %v2303 = vpack.c.b16 %v2225, %v2224
      %v2304 = vpack.c.b16 %v2227, %v2226
      %v2305 = vpack.c.b16 %v2229, %v2228
      %v2306 = vpack.c.b16 %v2231, %v2230
      %v2307 = vpack.c.b16 %v2233, %v2232
      %v2308 = vpack.c.b16 %v2235, %v2234
      %v2309 = vpack.c.b16 %v2237, %v2236
      %v2310 = vpack.c.b16 %v2239, %v2238
      %v2311 = vpack.c.b16 %v2241, %v2240
      %v2312 = vpack.c.b16 %v2243, %v2242
      %v2313 = vpack.c.b16 %v2245, %v2244
      %v2314 = vpack.c.b16 %v2247, %v2246
      %v2315 = vpack.c.b16 %v2249, %v2248
      %v2316 = vpack.c.b16 %v2251, %v2250
      %v2317 = vpack.c.b16 %v2253, %v2252
      %v2318 = vpack.c.b16 %v2255, %v2254
      %v2319 = vpack.c.b16 %v2257, %v2256
      %v2320 = vpack.c.b16 %v2259, %v2258
      %v2321 = vpack.c.b16 %v2261, %v2260
      %v2322 = vpack.c.b16 %v2263, %v2262
      %v2323 = vpack.c.b16 %v2265, %v2264
      %v2324 = vpack.c.b16 %v2267, %v2266
      %v2325 = vpack.c.b16 %v2269, %v2268
      %v2326 = vpack.c.b16 %v2271, %v2270
      %v2327 = vpack.c.b16 %v2273, %v2272
      %v2328 = vpack.c.b16 %v2275, %v2274
      %v2329 = vpack.c.b16 %v2277, %v2276
      %v2330 = vpack.c.b16 %v2279, %v2278
      %v2331 = vpack.c.b16 %v2281, %v2280
      %v2332 = vpack.c.b16 %v2283, %v2282
      %v2333 = vpack.c.b16 %v2285, %v2284
      %v2334 = vpack.c.b16 %v2287, %v2286
      %v2335 = vpack.c.b16 %v2289, %v2288
      %v2336 = vpack.c.b16 %v2291, %v2290
      %v2337 = vpack.c.b16 %v2293, %v2292
      %v2338 = vpack.c.b16 %v2295, %v2294
      %v2339 = vpack.c.b16 %v2297, %v2296
      %v2340 = vpack.c.b16 %v2299, %v2298
      %v2341 = vpack.c.b16 %v2301, %v2300
      %v2383 = vunpack.c.l.b16 %v2131
      %v2384 = vpack.c.b16 %v2383, %v2383
      %vm2385 = vsmask.f32 7424
      %v2387 = vshrl.u32 %v2302, 16
      %v2389 = vshll.u32 %v2302, 16
      %v2391 = vrot.slane %v2389, 1
      %v2392 = vor.u32 %v2387, %v2391
      %v2394 = vshll.u32 %v2303, 16
      %v2396 = vrot.slane %v2394, 1
      %v2397 = vsel %vm2385, %v2392, %v2396
      %v2398 = vshrl.u32 %v2303, 16
      %v2400 = vor.u32 %v2398, %v2396
      %v2402 = vshll.u32 %v2304, 16
      %v2404 = vrot.slane %v2402, 1
      %v2405 = vsel %vm2385, %v2400, %v2404
      %v2406 = vshrl.u32 %v2304, 16
      %v2408 = vor.u32 %v2406, %v2404
      %v2410 = vshll.u32 %v2305, 16
      %v2412 = vrot.slane %v2410, 1
      %v2413 = vsel %vm2385, %v2408, %v2412
      %v2414 = vshrl.u32 %v2305, 16
      %v2416 = vor.u32 %v2414, %v2412
      %v2418 = vshll.u32 %v2306, 16
      %v2420 = vrot.slane %v2418, 1
      %v2421 = vsel %vm2385, %v2416, %v2420
      %v2422 = vshrl.u32 %v2306, 16
      %v2424 = vor.u32 %v2422, %v2420
      %v2426 = vshll.u32 %v2307, 16
      %v2428 = vrot.slane %v2426, 1
      %v2429 = vsel %vm2385, %v2424, %v2428
      %v2430 = vshrl.u32 %v2307, 16
      %v2432 = vor.u32 %v2430, %v2428
      %v2434 = vshll.u32 %v2308, 16
      %v2436 = vrot.slane %v2434, 1
      %v2437 = vsel %vm2385, %v2432, %v2436
      %v2438 = vshrl.u32 %v2308, 16
      %v2440 = vor.u32 %v2438, %v2436
      %v2442 = vshll.u32 %v2309, 16
      %v2444 = vrot.slane %v2442, 1
      %v2445 = vsel %vm2385, %v2440, %v2444
      %v2446 = vshrl.u32 %v2309, 16
      %v2448 = vor.u32 %v2446, %v2444
      %v2450 = vshll.u32 %v2310, 16
      %v2452 = vrot.slane %v2450, 1
      %v2453 = vsel %vm2385, %v2448, %v2452
      %v2454 = vshrl.u32 %v2310, 16
      %v2456 = vor.u32 %v2454, %v2452
      %v2458 = vshll.u32 %v2311, 16
      %v2460 = vrot.slane %v2458, 1
      %v2461 = vsel %vm2385, %v2456, %v2460
      %v2462 = vshrl.u32 %v2311, 16
      %v2464 = vor.u32 %v2462, %v2460
      %v2466 = vshll.u32 %v2312, 16
      %v2468 = vrot.slane %v2466, 1
      %v2469 = vsel %vm2385, %v2464, %v2468
      %v2470 = vshrl.u32 %v2312, 16
      %v2472 = vor.u32 %v2470, %v2468
      %v2474 = vshll.u32 %v2313, 16
      %v2476 = vrot.slane %v2474, 1
      %v2477 = vsel %vm2385, %v2472, %v2476
      %v2478 = vshrl.u32 %v2313, 16
      %v2480 = vor.u32 %v2478, %v2476
      %v2482 = vshll.u32 %v2314, 16
      %v2484 = vrot.slane %v2482, 1
      %v2485 = vsel %vm2385, %v2480, %v2484
      %v2486 = vshrl.u32 %v2314, 16
      %v2488 = vor.u32 %v2486, %v2484
      %v2490 = vshll.u32 %v2315, 16
      %v2492 = vrot.slane %v2490, 1
      %v2493 = vsel %vm2385, %v2488, %v2492
      %v2494 = vshrl.u32 %v2315, 16
      %v2496 = vor.u32 %v2494, %v2492
      %v2498 = vshll.u32 %v2316, 16
      %v2500 = vrot.slane %v2498, 1
      %v2501 = vsel %vm2385, %v2496, %v2500
      %v2502 = vshrl.u32 %v2316, 16
      %v2504 = vor.u32 %v2502, %v2500
      %v2506 = vshll.u32 %v2317, 16
      %v2508 = vrot.slane %v2506, 1
      %v2509 = vsel %vm2385, %v2504, %v2508
      %v2510 = vshrl.u32 %v2317, 16
      %v2512 = vor.u32 %v2510, %v2508
      %v2514 = vshll.u32 %v2318, 16
      %v2516 = vrot.slane %v2514, 1
      %v2517 = vsel %vm2385, %v2512, %v2516
      %v2518 = vshrl.u32 %v2318, 16
      %v2520 = vor.u32 %v2518, %v2516
      %v2522 = vshll.u32 %v2319, 16
      %v2524 = vrot.slane %v2522, 1
      %v2525 = vsel %vm2385, %v2520, %v2524
      %v2526 = vshrl.u32 %v2319, 16
      %v2528 = vor.u32 %v2526, %v2524
      %v2530 = vshll.u32 %v2320, 16
      %v2532 = vrot.slane %v2530, 1
      %v2533 = vsel %vm2385, %v2528, %v2532
      %v2534 = vshrl.u32 %v2320, 16
      %v2536 = vor.u32 %v2534, %v2532
      %v2538 = vshll.u32 %v2321, 16
      %v2540 = vrot.slane %v2538, 1
      %v2541 = vsel %vm2385, %v2536, %v2540
      %v2542 = vshrl.u32 %v2321, 16
      %v2544 = vor.u32 %v2542, %v2540
      %v2546 = vshll.u32 %v2322, 16
      %v2548 = vrot.slane %v2546, 1
      %v2549 = vsel %vm2385, %v2544, %v2548
      %v2550 = vshrl.u32 %v2322, 16
      %v2552 = vor.u32 %v2550, %v2548
      %v2554 = vshll.u32 %v2323, 16
      %v2556 = vrot.slane %v2554, 1
      %v2557 = vsel %vm2385, %v2552, %v2556
      %v2558 = vshrl.u32 %v2323, 16
      %v2560 = vor.u32 %v2558, %v2556
      %v2562 = vshll.u32 %v2324, 16
      %v2564 = vrot.slane %v2562, 1
      %v2565 = vsel %vm2385, %v2560, %v2564
      %v2566 = vshrl.u32 %v2324, 16
      %v2568 = vor.u32 %v2566, %v2564
      %v2570 = vshll.u32 %v2325, 16
      %v2572 = vrot.slane %v2570, 1
      %v2573 = vsel %vm2385, %v2568, %v2572
      %v2574 = vshrl.u32 %v2325, 16
      %v2576 = vor.u32 %v2574, %v2572
      %v2578 = vshll.u32 %v2326, 16
      %v2580 = vrot.slane %v2578, 1
      %v2581 = vsel %vm2385, %v2576, %v2580
      %v2582 = vshrl.u32 %v2326, 16
      %v2584 = vor.u32 %v2582, %v2580
      %v2586 = vshll.u32 %v2327, 16
      %v2588 = vrot.slane %v2586, 1
      %v2589 = vsel %vm2385, %v2584, %v2588
      %v2590 = vshrl.u32 %v2327, 16
      %v2592 = vor.u32 %v2590, %v2588
      %v2594 = vshll.u32 %v2328, 16
      %v2596 = vrot.slane %v2594, 1
      %v2597 = vsel %vm2385, %v2592, %v2596
      %v2598 = vshrl.u32 %v2328, 16
      %v2600 = vor.u32 %v2598, %v2596
      %v2602 = vshll.u32 %v2329, 16
      %v2604 = vrot.slane %v2602, 1
      %v2605 = vsel %vm2385, %v2600, %v2604
      %v2606 = vshrl.u32 %v2329, 16
      %v2608 = vor.u32 %v2606, %v2604
      %v2610 = vshll.u32 %v2330, 16
      %v2612 = vrot.slane %v2610, 1
      %v2613 = vsel %vm2385, %v2608, %v2612
      %v2614 = vshrl.u32 %v2330, 16
      %v2616 = vor.u32 %v2614, %v2612
      %v2618 = vshll.u32 %v2331, 16
      %v2620 = vrot.slane %v2618, 1
      %v2621 = vsel %vm2385, %v2616, %v2620
      %v2622 = vshrl.u32 %v2331, 16
      %v2624 = vor.u32 %v2622, %v2620
      %v2626 = vshll.u32 %v2332, 16
      %v2628 = vrot.slane %v2626, 1
      %v2629 = vsel %vm2385, %v2624, %v2628
      %v2630 = vshrl.u32 %v2332, 16
      %v2632 = vor.u32 %v2630, %v2628
      %v2634 = vshll.u32 %v2333, 16
      %v2636 = vrot.slane %v2634, 1
      %v2637 = vsel %vm2385, %v2632, %v2636
      %v2638 = vshrl.u32 %v2333, 16
      %v2640 = vor.u32 %v2638, %v2636
      %v2642 = vshll.u32 %v2334, 16
      %v2644 = vrot.slane %v2642, 1
      %v2645 = vsel %vm2385, %v2640, %v2644
      %v2646 = vshrl.u32 %v2334, 16
      %v2648 = vor.u32 %v2646, %v2644
      %v2650 = vshll.u32 %v2335, 16
      %v2652 = vrot.slane %v2650, 1
      %v2653 = vsel %vm2385, %v2648, %v2652
      %v2654 = vshrl.u32 %v2335, 16
      %v2656 = vor.u32 %v2654, %v2652
      %v2658 = vshll.u32 %v2336, 16
      %v2660 = vrot.slane %v2658, 1
      %v2661 = vsel %vm2385, %v2656, %v2660
      %v2662 = vshrl.u32 %v2336, 16
      %v2664 = vor.u32 %v2662, %v2660
      %v2666 = vshll.u32 %v2337, 16
      %v2668 = vrot.slane %v2666, 1
      %v2669 = vsel %vm2385, %v2664, %v2668
      %v2670 = vshrl.u32 %v2337, 16
      %v2672 = vor.u32 %v2670, %v2668
      %v2674 = vshll.u32 %v2338, 16
      %v2676 = vrot.slane %v2674, 1
      %v2677 = vsel %vm2385, %v2672, %v2676
      %v2678 = vshrl.u32 %v2338, 16
      %v2680 = vor.u32 %v2678, %v2676
      %v2682 = vshll.u32 %v2339, 16
      %v2684 = vrot.slane %v2682, 1
      %v2685 = vsel %vm2385, %v2680, %v2684
      %v2686 = vshrl.u32 %v2339, 16
      %v2688 = vor.u32 %v2686, %v2684
      %v2690 = vshll.u32 %v2340, 16
      %v2692 = vrot.slane %v2690, 1
      %v2693 = vsel %vm2385, %v2688, %v2692
      %v2694 = vshrl.u32 %v2340, 16
      %v2696 = vor.u32 %v2694, %v2692
      %v2698 = vshll.u32 %v2341, 16
      %v2700 = vrot.slane %v2698, 1
      %v2701 = vsel %vm2385, %v2696, %v2700
      %v2702 = vshrl.u32 %v2341, 16
      %v2704 = vor.u32 %v2702, %v2700
      %v2706 = vshll.u32 %v2384, 16
      %v2708 = vrot.slane %v2706, 1
      %v2709 = vsel %vm2385, %v2704, %v2708
      %vm2750 = vcmask 1046528
      %v2751 = vrot.slane %v2302, 1
      %v2752 = vrot.slane %v2303, 1
      %v2753 = vsel %vm2750, %v2751, %v2752
      %v2754 = vrot.slane %v2304, 1
      %v2755 = vsel %vm2750, %v2752, %v2754
      %v2756 = vrot.slane %v2305, 1
      %v2757 = vsel %vm2750, %v2754, %v2756
      %v2758 = vrot.slane %v2306, 1
      %v2759 = vsel %vm2750, %v2756, %v2758
      %v2760 = vrot.slane %v2307, 1
      %v2761 = vsel %vm2750, %v2758, %v2760
      %v2762 = vrot.slane %v2308, 1
      %v2763 = vsel %vm2750, %v2760, %v2762
      %v2764 = vrot.slane %v2309, 1
      %v2765 = vsel %vm2750, %v2762, %v2764
      %v2766 = vrot.slane %v2310, 1
      %v2767 = vsel %vm2750, %v2764, %v2766
      %v2768 = vrot.slane %v2311, 1
      %v2769 = vsel %vm2750, %v2766, %v2768
      %v2770 = vrot.slane %v2312, 1
      %v2771 = vsel %vm2750, %v2768, %v2770
      %v2772 = vrot.slane %v2313, 1
      %v2773 = vsel %vm2750, %v2770, %v2772
      %v2774 = vrot.slane %v2314, 1
      %v2775 = vsel %vm2750, %v2772, %v2774
      %v2776 = vrot.slane %v2315, 1
      %v2777 = vsel %vm2750, %v2774, %v2776
      %v2778 = vrot.slane %v2316, 1
      %v2779 = vsel %vm2750, %v2776, %v2778
      %v2780 = vrot.slane %v2317, 1
      %v2781 = vsel %vm2750, %v2778, %v2780
      %v2782 = vrot.slane %v2318, 1
      %v2783 = vsel %vm2750, %v2780, %v2782
      %v2784 = vrot.slane %v2319, 1
      %v2785 = vsel %vm2750, %v2782, %v2784
      %v2786 = vrot.slane %v2320, 1
      %v2787 = vsel %vm2750, %v2784, %v2786
      %v2788 = vrot.slane %v2321, 1
      %v2789 = vsel %vm2750, %v2786, %v2788
      %v2790 = vrot.slane %v2322, 1
      %v2791 = vsel %vm2750, %v2788, %v2790
      %v2792 = vrot.slane %v2323, 1
      %v2793 = vsel %vm2750, %v2790, %v2792
      %v2794 = vrot.slane %v2324, 1
      %v2795 = vsel %vm2750, %v2792, %v2794
      %v2796 = vrot.slane %v2325, 1
      %v2797 = vsel %vm2750, %v2794, %v2796
      %v2798 = vrot.slane %v2326, 1
      %v2799 = vsel %vm2750, %v2796, %v2798
      %v2800 = vrot.slane %v2327, 1
      %v2801 = vsel %vm2750, %v2798, %v2800
      %v2802 = vrot.slane %v2328, 1
      %v2803 = vsel %vm2750, %v2800, %v2802
      %v2804 = vrot.slane %v2329, 1
      %v2805 = vsel %vm2750, %v2802, %v2804
      %v2806 = vrot.slane %v2330, 1
      %v2807 = vsel %vm2750, %v2804, %v2806
      %v2808 = vrot.slane %v2331, 1
      %v2809 = vsel %vm2750, %v2806, %v2808
      %v2810 = vrot.slane %v2332, 1
      %v2811 = vsel %vm2750, %v2808, %v2810
      %v2812 = vrot.slane %v2333, 1
      %v2813 = vsel %vm2750, %v2810, %v2812
      %v2814 = vrot.slane %v2334, 1
      %v2815 = vsel %vm2750, %v2812, %v2814
      %v2816 = vrot.slane %v2335, 1
      %v2817 = vsel %vm2750, %v2814, %v2816
      %v2818 = vrot.slane %v2336, 1
      %v2819 = vsel %vm2750, %v2816, %v2818
      %v2820 = vrot.slane %v2337, 1
      %v2821 = vsel %vm2750, %v2818, %v2820
      %v2822 = vrot.slane %v2338, 1
      %v2823 = vsel %vm2750, %v2820, %v2822
      %v2824 = vrot.slane %v2339, 1
      %v2825 = vsel %vm2750, %v2822, %v2824
      %v2826 = vrot.slane %v2340, 1
      %v2827 = vsel %vm2750, %v2824, %v2826
      %v2828 = vrot.slane %v2341, 1
      %v2829 = vsel %vm2750, %v2826, %v2828
      %v2830 = vrot.slane %v2384, 1
      %v2831 = vsel %vm2750, %v2828, %v2830
      %v2876 = vunpack.c.l.b16 %v2132
      %v2877 = vunpack.c.l.b16 %v2133
      %v2878 = vunpack.c.l.b16 %v2134
      %v2879 = vunpack.c.l.b16 %v2135
      %v2880 = vpack.c.b16 %v2228, %v2227
      %v2881 = vpack.c.b16 %v2230, %v2229
      %v2882 = vpack.c.b16 %v2232, %v2231
      %v2883 = vpack.c.b16 %v2234, %v2233
      %v2884 = vpack.c.b16 %v2236, %v2235
      %v2885 = vpack.c.b16 %v2238, %v2237
      %v2886 = vpack.c.b16 %v2240, %v2239
      %v2887 = vpack.c.b16 %v2242, %v2241
      %v2888 = vpack.c.b16 %v2244, %v2243
      %v2889 = vpack.c.b16 %v2246, %v2245
      %v2890 = vpack.c.b16 %v2248, %v2247
      %v2891 = vpack.c.b16 %v2250, %v2249
      %v2892 = vpack.c.b16 %v2252, %v2251
      %v2893 = vpack.c.b16 %v2254, %v2253
      %v2894 = vpack.c.b16 %v2256, %v2255
      %v2895 = vpack.c.b16 %v2258, %v2257
      %v2896 = vpack.c.b16 %v2260, %v2259
      %v2897 = vpack.c.b16 %v2262, %v2261
      %v2898 = vpack.c.b16 %v2264, %v2263
      %v2899 = vpack.c.b16 %v2266, %v2265
      %v2900 = vpack.c.b16 %v2268, %v2267
      %v2901 = vpack.c.b16 %v2270, %v2269
      %v2902 = vpack.c.b16 %v2272, %v2271
      %v2903 = vpack.c.b16 %v2274, %v2273
      %v2904 = vpack.c.b16 %v2276, %v2275
      %v2905 = vpack.c.b16 %v2278, %v2277
      %v2906 = vpack.c.b16 %v2280, %v2279
      %v2907 = vpack.c.b16 %v2282, %v2281
      %v2908 = vpack.c.b16 %v2284, %v2283
      %v2909 = vpack.c.b16 %v2286, %v2285
      %v2910 = vpack.c.b16 %v2288, %v2287
      %v2911 = vpack.c.b16 %v2290, %v2289
      %v2912 = vpack.c.b16 %v2292, %v2291
      %v2913 = vpack.c.b16 %v2294, %v2293
      %v2914 = vpack.c.b16 %v2296, %v2295
      %v2915 = vpack.c.b16 %v2298, %v2297
      %v2916 = vpack.c.b16 %v2300, %v2299
      %v2917 = vpack.c.b16 %v2383, %v2301
      %v2918 = vpack.c.b16 %v2877, %v2876
      %v2919 = vpack.c.b16 %v2879, %v2878
      %v2961 = vunpack.c.l.b16 %v2136
      %v2962 = vpack.c.b16 %v2961, %v2961
      %v2964 = vshrl.u32 %v2880, 16
      %v2966 = vshll.u32 %v2880, 16
      %v2968 = vrot.slane %v2966, 1
      %v2969 = vor.u32 %v2964, %v2968
      %v2971 = vshll.u32 %v2881, 16
      %v2973 = vrot.slane %v2971, 1
      %v2974 = vsel %vm2385, %v2969, %v2973
      %v2975 = vshrl.u32 %v2881, 16
      %v2977 = vor.u32 %v2975, %v2973
      %v2979 = vshll.u32 %v2882, 16
      %v2981 = vrot.slane %v2979, 1
      %v2982 = vsel %vm2385, %v2977, %v2981
      %v2983 = vshrl.u32 %v2882, 16
      %v2985 = vor.u32 %v2983, %v2981
      %v2987 = vshll.u32 %v2883, 16
      %v2989 = vrot.slane %v2987, 1
      %v2990 = vsel %vm2385, %v2985, %v2989
      %v2991 = vshrl.u32 %v2883, 16
      %v2993 = vor.u32 %v2991, %v2989
      %v2995 = vshll.u32 %v2884, 16
      %v2997 = vrot.slane %v2995, 1
      %v2998 = vsel %vm2385, %v2993, %v2997
      %v2999 = vshrl.u32 %v2884, 16
      %v3001 = vor.u32 %v2999, %v2997
      %v3003 = vshll.u32 %v2885, 16
      %v3005 = vrot.slane %v3003, 1
      %v3006 = vsel %vm2385, %v3001, %v3005
      %v3007 = vshrl.u32 %v2885, 16
      %v3009 = vor.u32 %v3007, %v3005
      %v3011 = vshll.u32 %v2886, 16
      %v3013 = vrot.slane %v3011, 1
      %v3014 = vsel %vm2385, %v3009, %v3013
      %v3015 = vshrl.u32 %v2886, 16
      %v3017 = vor.u32 %v3015, %v3013
      %v3019 = vshll.u32 %v2887, 16
      %v3021 = vrot.slane %v3019, 1
      %v3022 = vsel %vm2385, %v3017, %v3021
      %v3023 = vshrl.u32 %v2887, 16
      %v3025 = vor.u32 %v3023, %v3021
      %v3027 = vshll.u32 %v2888, 16
      %v3029 = vrot.slane %v3027, 1
      %v3030 = vsel %vm2385, %v3025, %v3029
      %v3031 = vshrl.u32 %v2888, 16
      %v3033 = vor.u32 %v3031, %v3029
      %v3035 = vshll.u32 %v2889, 16
      %v3037 = vrot.slane %v3035, 1
      %v3038 = vsel %vm2385, %v3033, %v3037
      %v3039 = vshrl.u32 %v2889, 16
      %v3041 = vor.u32 %v3039, %v3037
      %v3043 = vshll.u32 %v2890, 16
      %v3045 = vrot.slane %v3043, 1
      %v3046 = vsel %vm2385, %v3041, %v3045
      %v3047 = vshrl.u32 %v2890, 16
      %v3049 = vor.u32 %v3047, %v3045
      %v3051 = vshll.u32 %v2891, 16
      %v3053 = vrot.slane %v3051, 1
      %v3054 = vsel %vm2385, %v3049, %v3053
      %v3055 = vshrl.u32 %v2891, 16
      %v3057 = vor.u32 %v3055, %v3053
      %v3059 = vshll.u32 %v2892, 16
      %v3061 = vrot.slane %v3059, 1
      %v3062 = vsel %vm2385, %v3057, %v3061
      %v3063 = vshrl.u32 %v2892, 16
      %v3065 = vor.u32 %v3063, %v3061
      %v3067 = vshll.u32 %v2893, 16
      %v3069 = vrot.slane %v3067, 1
      %v3070 = vsel %vm2385, %v3065, %v3069
      %v3071 = vshrl.u32 %v2893, 16
      %v3073 = vor.u32 %v3071, %v3069
      %v3075 = vshll.u32 %v2894, 16
      %v3077 = vrot.slane %v3075, 1
      %v3078 = vsel %vm2385, %v3073, %v3077
      %v3079 = vshrl.u32 %v2894, 16
      %v3081 = vor.u32 %v3079, %v3077
      %v3083 = vshll.u32 %v2895, 16
      %v3085 = vrot.slane %v3083, 1
      %v3086 = vsel %vm2385, %v3081, %v3085
      %v3087 = vshrl.u32 %v2895, 16
      %v3089 = vor.u32 %v3087, %v3085
      %v3091 = vshll.u32 %v2896, 16
      %v3093 = vrot.slane %v3091, 1
      %v3094 = vsel %vm2385, %v3089, %v3093
      %v3095 = vshrl.u32 %v2896, 16
      %v3097 = vor.u32 %v3095, %v3093
      %v3099 = vshll.u32 %v2897, 16
      %v3101 = vrot.slane %v3099, 1
      %v3102 = vsel %vm2385, %v3097, %v3101
      %v3103 = vshrl.u32 %v2897, 16
      %v3105 = vor.u32 %v3103, %v3101
      %v3107 = vshll.u32 %v2898, 16
      %v3109 = vrot.slane %v3107, 1
      %v3110 = vsel %vm2385, %v3105, %v3109
      %v3111 = vshrl.u32 %v2898, 16
      %v3113 = vor.u32 %v3111, %v3109
      %v3115 = vshll.u32 %v2899, 16
      %v3117 = vrot.slane %v3115, 1
      %v3118 = vsel %vm2385, %v3113, %v3117
      %v3119 = vshrl.u32 %v2899, 16
      %v3121 = vor.u32 %v3119, %v3117
      %v3123 = vshll.u32 %v2900, 16
      %v3125 = vrot.slane %v3123, 1
      %v3126 = vsel %vm2385, %v3121, %v3125
      %v3127 = vshrl.u32 %v2900, 16
      %v3129 = vor.u32 %v3127, %v3125
      %v3131 = vshll.u32 %v2901, 16
      %v3133 = vrot.slane %v3131, 1
      %v3134 = vsel %vm2385, %v3129, %v3133
      %v3135 = vshrl.u32 %v2901, 16
      %v3137 = vor.u32 %v3135, %v3133
      %v3139 = vshll.u32 %v2902, 16
      %v3141 = vrot.slane %v3139, 1
      %v3142 = vsel %vm2385, %v3137, %v3141
      %v3143 = vshrl.u32 %v2902, 16
      %v3145 = vor.u32 %v3143, %v3141
      %v3147 = vshll.u32 %v2903, 16
      %v3149 = vrot.slane %v3147, 1
      %v3150 = vsel %vm2385, %v3145, %v3149
      %v3151 = vshrl.u32 %v2903, 16
      %v3153 = vor.u32 %v3151, %v3149
      %v3155 = vshll.u32 %v2904, 16
      %v3157 = vrot.slane %v3155, 1
      %v3158 = vsel %vm2385, %v3153, %v3157
      %v3159 = vshrl.u32 %v2904, 16
      %v3161 = vor.u32 %v3159, %v3157
      %v3163 = vshll.u32 %v2905, 16
      %v3165 = vrot.slane %v3163, 1
      %v3166 = vsel %vm2385, %v3161, %v3165
      %v3167 = vshrl.u32 %v2905, 16
      %v3169 = vor.u32 %v3167, %v3165
      %v3171 = vshll.u32 %v2906, 16
      %v3173 = vrot.slane %v3171, 1
      %v3174 = vsel %vm2385, %v3169, %v3173
      %v3175 = vshrl.u32 %v2906, 16
      %v3177 = vor.u32 %v3175, %v3173
      %v3179 = vshll.u32 %v2907, 16
      %v3181 = vrot.slane %v3179, 1
      %v3182 = vsel %vm2385, %v3177, %v3181
      %v3183 = vshrl.u32 %v2907, 16
      %v3185 = vor.u32 %v3183, %v3181
      %v3187 = vshll.u32 %v2908, 16
      %v3189 = vrot.slane %v3187, 1
      %v3190 = vsel %vm2385, %v3185, %v3189
      %v3191 = vshrl.u32 %v2908, 16
      %v3193 = vor.u32 %v3191, %v3189
      %v3195 = vshll.u32 %v2909, 16
      %v3197 = vrot.slane %v3195, 1
      %v3198 = vsel %vm2385, %v3193, %v3197
      %v3199 = vshrl.u32 %v2909, 16
      %v3201 = vor.u32 %v3199, %v3197
      %v3203 = vshll.u32 %v2910, 16
      %v3205 = vrot.slane %v3203, 1
      %v3206 = vsel %vm2385, %v3201, %v3205
      %v3207 = vshrl.u32 %v2910, 16
      %v3209 = vor.u32 %v3207, %v3205
      %v3211 = vshll.u32 %v2911, 16
      %v3213 = vrot.slane %v3211, 1
      %v3214 = vsel %vm2385, %v3209, %v3213
      %v3215 = vshrl.u32 %v2911, 16
      %v3217 = vor.u32 %v3215, %v3213
      %v3219 = vshll.u32 %v2912, 16
      %v3221 = vrot.slane %v3219, 1
      %v3222 = vsel %vm2385, %v3217, %v3221
      %v3223 = vshrl.u32 %v2912, 16
      %v3225 = vor.u32 %v3223, %v3221
      %v3227 = vshll.u32 %v2913, 16
      %v3229 = vrot.slane %v3227, 1
      %v3230 = vsel %vm2385, %v3225, %v3229
      %v3231 = vshrl.u32 %v2913, 16
      %v3233 = vor.u32 %v3231, %v3229
      %v3235 = vshll.u32 %v2914, 16
      %v3237 = vrot.slane %v3235, 1
      %v3238 = vsel %vm2385, %v3233, %v3237
      %v3239 = vshrl.u32 %v2914, 16
      %v3241 = vor.u32 %v3239, %v3237
      %v3243 = vshll.u32 %v2915, 16
      %v3245 = vrot.slane %v3243, 1
      %v3246 = vsel %vm2385, %v3241, %v3245
      %v3247 = vshrl.u32 %v2915, 16
      %v3249 = vor.u32 %v3247, %v3245
      %v3251 = vshll.u32 %v2916, 16
      %v3253 = vrot.slane %v3251, 1
      %v3254 = vsel %vm2385, %v3249, %v3253
      %v3255 = vshrl.u32 %v2916, 16
      %v3257 = vor.u32 %v3255, %v3253
      %v3259 = vshll.u32 %v2917, 16
      %v3261 = vrot.slane %v3259, 1
      %v3262 = vsel %vm2385, %v3257, %v3261
      %v3263 = vshrl.u32 %v2917, 16
      %v3265 = vor.u32 %v3263, %v3261
      %v3267 = vshll.u32 %v2918, 16
      %v3269 = vrot.slane %v3267, 1
      %v3270 = vsel %vm2385, %v3265, %v3269
      %v3271 = vshrl.u32 %v2918, 16
      %v3273 = vor.u32 %v3271, %v3269
      %v3275 = vshll.u32 %v2919, 16
      %v3277 = vrot.slane %v3275, 1
      %v3278 = vsel %vm2385, %v3273, %v3277
      %v3279 = vshrl.u32 %v2919, 16
      %v3281 = vor.u32 %v3279, %v3277
      %v3283 = vshll.u32 %v2962, 16
      %v3285 = vrot.slane %v3283, 1
      %v3286 = vsel %vm2385, %v3281, %v3285
      %v3327 = vrot.slane %v2880, 1
      %v3328 = vrot.slane %v2881, 1
      %v3329 = vsel %vm2750, %v3327, %v3328
      %v3330 = vrot.slane %v2882, 1
      %v3331 = vsel %vm2750, %v3328, %v3330
      %v3332 = vrot.slane %v2883, 1
      %v3333 = vsel %vm2750, %v3330, %v3332
      %v3334 = vrot.slane %v2884, 1
      %v3335 = vsel %vm2750, %v3332, %v3334
      %v3336 = vrot.slane %v2885, 1
      %v3337 = vsel %vm2750, %v3334, %v3336
      %v3338 = vrot.slane %v2886, 1
      %v3339 = vsel %vm2750, %v3336, %v3338
      %v3340 = vrot.slane %v2887, 1
      %v3341 = vsel %vm2750, %v3338, %v3340
      %v3342 = vrot.slane %v2888, 1
      %v3343 = vsel %vm2750, %v3340, %v3342
      %v3344 = vrot.slane %v2889, 1
      %v3345 = vsel %vm2750, %v3342, %v3344
      %v3346 = vrot.slane %v2890, 1
      %v3347 = vsel %vm2750, %v3344, %v3346
      %v3348 = vrot.slane %v2891, 1
      %v3349 = vsel %vm2750, %v3346, %v3348
      %v3350 = vrot.slane %v2892, 1
      %v3351 = vsel %vm2750, %v3348, %v3350
      %v3352 = vrot.slane %v2893, 1
      %v3353 = vsel %vm2750, %v3350, %v3352
      %v3354 = vrot.slane %v2894, 1
      %v3355 = vsel %vm2750, %v3352, %v3354
      %v3356 = vrot.slane %v2895, 1
      %v3357 = vsel %vm2750, %v3354, %v3356
      %v3358 = vrot.slane %v2896, 1
      %v3359 = vsel %vm2750, %v3356, %v3358
      %v3360 = vrot.slane %v2897, 1
      %v3361 = vsel %vm2750, %v3358, %v3360
      %v3362 = vrot.slane %v2898, 1
      %v3363 = vsel %vm2750, %v3360, %v3362
      %v3364 = vrot.slane %v2899, 1
      %v3365 = vsel %vm2750, %v3362, %v3364
      %v3366 = vrot.slane %v2900, 1
      %v3367 = vsel %vm2750, %v3364, %v3366
      %v3368 = vrot.slane %v2901, 1
      %v3369 = vsel %vm2750, %v3366, %v3368
      %v3370 = vrot.slane %v2902, 1
      %v3371 = vsel %vm2750, %v3368, %v3370
      %v3372 = vrot.slane %v2903, 1
      %v3373 = vsel %vm2750, %v3370, %v3372
      %v3374 = vrot.slane %v2904, 1
      %v3375 = vsel %vm2750, %v3372, %v3374
      %v3376 = vrot.slane %v2905, 1
      %v3377 = vsel %vm2750, %v3374, %v3376
      %v3378 = vrot.slane %v2906, 1
      %v3379 = vsel %vm2750, %v3376, %v3378
      %v3380 = vrot.slane %v2907, 1
      %v3381 = vsel %vm2750, %v3378, %v3380
      %v3382 = vrot.slane %v2908, 1
      %v3383 = vsel %vm2750, %v3380, %v3382
      %v3384 = vrot.slane %v2909, 1
      %v3385 = vsel %vm2750, %v3382, %v3384
      %v3386 = vrot.slane %v2910, 1
      %v3387 = vsel %vm2750, %v3384, %v3386
      %v3388 = vrot.slane %v2911, 1
      %v3389 = vsel %vm2750, %v3386, %v3388
      %v3390 = vrot.slane %v2912, 1
      %v3391 = vsel %vm2750, %v3388, %v3390
      %v3392 = vrot.slane %v2913, 1
      %v3393 = vsel %vm2750, %v3390, %v3392
      %v3394 = vrot.slane %v2914, 1
      %v3395 = vsel %vm2750, %v3392, %v3394
      %v3396 = vrot.slane %v2915, 1
      %v3397 = vsel %vm2750, %v3394, %v3396
      %v3398 = vrot.slane %v2916, 1
      %v3399 = vsel %vm2750, %v3396, %v3398
      %v3400 = vrot.slane %v2917, 1
      %v3401 = vsel %vm2750, %v3398, %v3400
      %v3402 = vrot.slane %v2918, 1
      %v3403 = vsel %vm2750, %v3400, %v3402
      %v3404 = vrot.slane %v2919, 1
      %v3405 = vsel %vm2750, %v3402, %v3404
      %v3406 = vrot.slane %v2962, 1
      %v3407 = vsel %vm2750, %v3404, %v3406
      %v3452 = vunpack.c.l.b16 %v2137
      %v3453 = vunpack.c.l.b16 %v2138
      %v3454 = vunpack.c.l.b16 %v2139
      %v3455 = vunpack.c.l.b16 %v2140
      %v3456 = vpack.c.b16 %v2876, %v2383
      %v3457 = vpack.c.b16 %v2878, %v2877
      %v3458 = vpack.c.b16 %v2961, %v2879
      %v3459 = vpack.c.b16 %v3453, %v3452
      %v3460 = vpack.c.b16 %v3455, %v3454
      %v3467 = vunpack.c.l.b16 %v2141
      %v3468 = vpack.c.b16 %v3467, %v3467
      %v3470 = vshll.u32 %v3456, 16
      %v3472 = vrot.slane %v3470, 1
      %v3473 = vsel %vm2385, %v2704, %v3472
      %v3474 = vshrl.u32 %v3456, 16
      %v3476 = vor.u32 %v3474, %v3472
      %v3478 = vshll.u32 %v3457, 16
      %v3480 = vrot.slane %v3478, 1
      %v3481 = vsel %vm2385, %v3476, %v3480
      %v3482 = vshrl.u32 %v3457, 16
      %v3484 = vor.u32 %v3482, %v3480
      %v3486 = vshll.u32 %v3458, 16
      %v3488 = vrot.slane %v3486, 1
      %v3489 = vsel %vm2385, %v3484, %v3488
      %v3490 = vshrl.u32 %v3458, 16
      %v3492 = vor.u32 %v3490, %v3488
      %v3494 = vshll.u32 %v3459, 16
      %v3496 = vrot.slane %v3494, 1
      %v3497 = vsel %vm2385, %v3492, %v3496
      %v3498 = vshrl.u32 %v3459, 16
      %v3500 = vor.u32 %v3498, %v3496
      %v3502 = vshll.u32 %v3460, 16
      %v3504 = vrot.slane %v3502, 1
      %v3505 = vsel %vm2385, %v3500, %v3504
      %v3506 = vshrl.u32 %v3460, 16
      %v3508 = vor.u32 %v3506, %v3504
      %v3510 = vshll.u32 %v3468, 16
      %v3512 = vrot.slane %v3510, 1
      %v3513 = vsel %vm2385, %v3508, %v3512
      %v3520 = vrot.slane %v3456, 1
      %v3521 = vsel %vm2750, %v2828, %v3520
      %v3522 = vrot.slane %v3457, 1
      %v3523 = vsel %vm2750, %v3520, %v3522
      %v3524 = vrot.slane %v3458, 1
      %v3525 = vsel %vm2750, %v3522, %v3524
      %v3526 = vrot.slane %v3459, 1
      %v3527 = vsel %vm2750, %v3524, %v3526
      %v3528 = vrot.slane %v3460, 1
      %v3529 = vsel %vm2750, %v3526, %v3528
      %v3530 = vrot.slane %v3468, 1
      %v3531 = vsel %vm2750, %v3528, %v3530
      %v3538 = vld [vmem:[%s5] sm:$0xf]
      %v3539 = vld [vmem:[%s5 + $0x4] sm:$0xf]
      %v3540 = vld [vmem:[%s5 + $0x8] sm:$0xf]
      %v3541 = vld [vmem:[%s5 + $0xc] sm:$0xf]
      %v3542 = vld [vmem:[%s5 + $0x10] sm:$0xf]
      %v3543 = vld [vmem:[%s5 + $0x14] sm:$0xf]
      %v3544 = vld [vmem:[%s5 + $0x18] sm:$0xf]
      %v3545 = vld [vmem:[%s5 + $0x1c] sm:$0xf]
      %v3546 = vld [vmem:[%s5 + $0x20] sm:$0xf]
      %v3547 = vld [vmem:[%s5 + $0x24] sm:$0xf]
      %v3548 = vld [vmem:[%s5 + $0x28] sm:$0xf]
      %v3549 = vld [vmem:[%s5 + $0x2c] sm:$0xf]
      %v3550 = vld [vmem:[%s5 + $0x30] sm:$0xf]
      %v3551 = vld [vmem:[%s5 + $0x34] sm:$0xf]
      %v3552 = vld [vmem:[%s5 + $0x38] sm:$0xf]
      %v3553 = vld [vmem:[%s5 + $0x3c] sm:$0xf]
      %v3554 = vld [vmem:[%s5 + $0x40] sm:$0xf]
      %v3555 = vld [vmem:[%s5 + $0x44] sm:$0xf]
      %v3556 = vld [vmem:[%s5 + $0x48] sm:$0xf]
      %v3557 = vld [vmem:[%s5 + $0x4c] sm:$0xf]
      %v3558 = vld [vmem:[%s5 + $0x50] sm:$0xf]
      %v3559 = vld [vmem:[%s5 + $0x54] sm:$0xf]
      %v3560 = vld [vmem:[%s5 + $0x58] sm:$0xf]
      %v3561 = vld [vmem:[%s5 + $0x5c] sm:$0xf]
      %v3562 = vld [vmem:[%s5 + $0x60] sm:$0xf]
      %v3563 = vld [vmem:[%s5 + $0x64] sm:$0xf]
      %v3564 = vld [vmem:[%s5 + $0x68] sm:$0xf]
      %v3565 = vld [vmem:[%s5 + $0x6c] sm:$0xf]
      %v3566 = vld [vmem:[%s5 + $0x70] sm:$0xf]
      %v3567 = vld [vmem:[%s5 + $0x74] sm:$0xf]
      %v3568 = vld [vmem:[%s5 + $0x78] sm:$0xf]
      %v3569 = vld [vmem:[%s5 + $0x7c] sm:$0xf]
      %v3570 = vld [vmem:[%s5 + $0x80] sm:$0xf]
      %v3571 = vld [vmem:[%s5 + $0x84] sm:$0xf]
      %v3572 = vld [vmem:[%s5 + $0x88] sm:$0xf]
      %v3573 = vld [vmem:[%s5 + $0x8c] sm:$0xf]
      %v3574 = vld [vmem:[%s5 + $0x90] sm:$0xf]
      %v3575 = vld [vmem:[%s5 + $0x94] sm:$0xf]
      %v3576 = vld [vmem:[%s5 + $0x98] sm:$0xf]
      %v3577 = vld [vmem:[%s5 + $0x9c] sm:$0xf]
      %v3578 = vld [vmem:[%s5 + $0xa0] sm:$0xf]
      %v3579 = vld [vmem:[%s5 + $0xa4] sm:$0xf]
      %v3580 = vld [vmem:[%s5 + $0xa8] sm:$0xf]
      %v3581 = vld [vmem:[%s5 + $0xac] sm:$0xf]
      %v3582 = vld [vmem:[%s5 + $0xb0] sm:$0xf]
      %v3583 = vld [vmem:[%s5 + $0xb4] sm:$0xf]
      %v3584 = vld [vmem:[%s5 + $0xb8] sm:$0xf]
      %v3585 = vld [vmem:[%s5 + $0xbc] sm:$0xf]
      %v3586 = vld [vmem:[%s5 + $0xc0] sm:$0xf]
      %v3587 = vld [vmem:[%s5 + $0xc4] sm:$0xf]
      %v3588 = vld [vmem:[%s5 + $0xc8] sm:$0xf]
      %v3589 = vld [vmem:[%s5 + $0xcc] sm:$0xf]
      %v3590 = vld [vmem:[%s5 + $0xd0] sm:$0xf]
      %v3591 = vld [vmem:[%s5 + $0xd4] sm:$0xf]
      %v3592 = vld [vmem:[%s5 + $0xd8] sm:$0xf]
      %v3593 = vld [vmem:[%s5 + $0xdc] sm:$0xf]
      %v3594 = vld [vmem:[%s5 + $0xe0] sm:$0xf]
      %v3595 = vld [vmem:[%s5 + $0xe4] sm:$0xf]
      %v3596 = vld [vmem:[%s5 + $0xe8] sm:$0xf]
      %v3597 = vld [vmem:[%s5 + $0xec] sm:$0xf]
      %v3598 = vld [vmem:[%s5 + $0xf0] sm:$0xf]
      %v3599 = vld [vmem:[%s5 + $0xf4] sm:$0xf]
      %v3600 = vld [vmem:[%s5 + $0xf8] sm:$0xf]
      %v3601 = vld [vmem:[%s5 + $0xfc] sm:$0xf]
      %v3602 = vld [vmem:[%s5 + $0x100] sm:$0xf]
      %v3603 = vld [vmem:[%s5 + $0x104] sm:$0xf]
      %v3604 = vld [vmem:[%s5 + $0x108] sm:$0xf]
      %v3605 = vld [vmem:[%s5 + $0x10c] sm:$0xf]
      %v3606 = vld [vmem:[%s5 + $0x110] sm:$0xf]
      %v3607 = vld [vmem:[%s5 + $0x114] sm:$0xf]
      %v3608 = vld [vmem:[%s5 + $0x118] sm:$0xf]
      %v3609 = vld [vmem:[%s5 + $0x11c] sm:$0xf]
      %v3610 = vld [vmem:[%s5 + $0x120] sm:$0xf]
      %v3611 = vld [vmem:[%s5 + $0x124] sm:$0xf]
      %v3612 = vld [vmem:[%s5 + $0x128] sm:$0xf]
      %v3613 = vld [vmem:[%s5 + $0x12c] sm:$0xf]
      %v3614 = vld [vmem:[%s5 + $0x130] sm:$0xf]
      %v3615 = vld [vmem:[%s5 + $0x134] sm:$0xf]
      %v3616 = vld [vmem:[%s5 + $0x138] sm:$0xf]
      %v3617 = vld [vmem:[%s5 + $0x13c] sm:$0xf]
      %v3618 = vld [vmem:[%s5 + $0x140] sm:$0xf]
      %v3619 = vld [vmem:[%s5 + $0x144] sm:$0xf]
      %v3620 = vld [vmem:[%s5 + $0x148] sm:$0xf]
      %v3621 = vld [vmem:[%s5 + $0x14c] sm:$0xf]
      %v3622 = vld [vmem:[%s5 + $0x150] sm:$0xf]
      %v3623 = vld [vmem:[%s5 + $0x154] sm:$0xf]
      %v3624 = vld [vmem:[%s5 + $0x158] sm:$0xf]
      %v3625 = vld [vmem:[%s5 + $0x15c] sm:$0xf]
      %v3626 = vld [vmem:[%s5 + $0x160] sm:$0xf]
      %v3627 = vld [vmem:[%s5 + $0x164] sm:$0xf]
      %v3628 = vld [vmem:[%s5 + $0x168] sm:$0xf]
      %v3629 = vld [vmem:[%s5 + $0x16c] sm:$0xf]
      %v3630 = vld [vmem:[%s5 + $0x170] sm:$0xf]
      %v3631 = vld [vmem:[%s5 + $0x174] sm:$0xf]
      %v3632 = vld [vmem:[%s5 + $0x178] sm:$0xf]
      %v3633 = vld [vmem:[%s5 + $0x17c] sm:$0xf]
      %v3634 = vld [vmem:[%s5 + $0x180] sm:$0xf]
      %v3635 = vld [vmem:[%s5 + $0x184] sm:$0xf]
      %v3636 = vld [vmem:[%s5 + $0x188] sm:$0xf]
      %v3637 = vld [vmem:[%s5 + $0x18c] sm:$0xf]
      %v3638 = vld [vmem:[%s5 + $0x190] sm:$0xf]
      %v3639 = vld [vmem:[%s5 + $0x194] sm:$0xf]
      %v3640 = vld [vmem:[%s5 + $0x198] sm:$0xf]
      %v3641 = vld [vmem:[%s5 + $0x19c] sm:$0xf]
      %v3642 = vld [vmem:[%s5 + $0x1a0] sm:$0xf]
      %v3643 = vld [vmem:[%s5 + $0x1a4] sm:$0xf]
      %v3644 = vld [vmem:[%s5 + $0x1a8] sm:$0xf]
      %v3645 = vld [vmem:[%s5 + $0x1ac] sm:$0xf]
      %v3646 = vld [vmem:[%s5 + $0x1b0] sm:$0xf]
      %v3647 = vld [vmem:[%s5 + $0x1b4] sm:$0xf]
      %v3648 = vld [vmem:[%s5 + $0x1b8] sm:$0xf]
      %v3649 = vld [vmem:[%s5 + $0x1bc] sm:$0xf]
      %v3650 = vld [vmem:[%s5 + $0x1c0] sm:$0xf]
      %v3651 = vld [vmem:[%s5 + $0x1c4] sm:$0xf]
      %v3652 = vld [vmem:[%s5 + $0x1c8] sm:$0xf]
      %v3653 = vld [vmem:[%s5 + $0x1cc] sm:$0xf]
      %v3654 = vld [vmem:[%s5 + $0x1d0] sm:$0xf]
      %v3655 = vld [vmem:[%s5 + $0x1d4] sm:$0xf]
      %v3656 = vld [vmem:[%s5 + $0x1d8] sm:$0xf]
      %v3657 = vld [vmem:[%s5 + $0x1dc] sm:$0xf]
      %v3658 = vld [vmem:[%s5 + $0x1e0] sm:$0xf]
      %v3659 = vld [vmem:[%s5 + $0x1e4] sm:$0xf]
      %v3660 = vld [vmem:[%s5 + $0x1e8] sm:$0xf]
      %v3661 = vld [vmem:[%s5 + $0x1ec] sm:$0xf]
      %v3662 = vld [vmem:[%s5 + $0x1f0] sm:$0xf]
      %v3663 = vld [vmem:[%s5 + $0x1f4] sm:$0xf]
      %v3664 = vld [vmem:[%s5 + $0x1f8] sm:$0xf]
      %v3665 = vld [vmem:[%s5 + $0x1fc] sm:$0xf]
      %v3666 = vld [vmem:[%s5 + $0x200] sm:$0xf]
      %v3667 = vld [vmem:[%s5 + $0x204] sm:$0xf]
      %v3668 = vld [vmem:[%s5 + $0x208] sm:$0xf]
      %v3669 = vld [vmem:[%s5 + $0x20c] sm:$0xf]
      %v3670 = vld [vmem:[%s5 + $0x210] sm:$0xf]
      %v3671 = vld [vmem:[%s5 + $0x214] sm:$0xf]
      %v3672 = vld [vmem:[%s5 + $0x218] sm:$0xf]
      %v3673 = vld [vmem:[%s5 + $0x21c] sm:$0xf]
      %v3674 = vld [vmem:[%s5 + $0x220] sm:$0xf]
      %v3675 = vld [vmem:[%s5 + $0x224] sm:$0xf]
      %v3676 = vld [vmem:[%s5 + $0x228] sm:$0xf]
      %v3677 = vld [vmem:[%s5 + $0x22c] sm:$0xf]
      %v3678 = vld [vmem:[%s5 + $0x230] sm:$0xf]
      %v3679 = vld [vmem:[%s5 + $0x234] sm:$0xf]
      %v3680 = vld [vmem:[%s5 + $0x238] sm:$0xf]
      %v3681 = vld [vmem:[%s5 + $0x23c] sm:$0xf]
      %v3826 = vunpack.c.l.b16 %v3538
      %v3827 = vunpack.c.l.b16 %v3539
      %v3828 = vunpack.c.l.b16 %v3540
      %v3829 = vunpack.c.l.b16 %v3541
      %v3830 = vunpack.c.l.b16 %v3542
      %v3831 = vunpack.c.l.b16 %v3543
      %v3832 = vunpack.c.l.b16 %v3544
      %v3833 = vunpack.c.l.b16 %v3545
      %v3834 = vunpack.c.l.b16 %v3546
      %v3835 = vunpack.c.l.b16 %v3547
      %v3836 = vunpack.c.l.b16 %v3548
      %v3837 = vunpack.c.l.b16 %v3549
      %v3838 = vunpack.c.l.b16 %v3550
      %v3839 = vunpack.c.l.b16 %v3551
      %v3840 = vunpack.c.l.b16 %v3552
      %v3841 = vunpack.c.l.b16 %v3553
      %v3842 = vunpack.c.l.b16 %v3554
      %v3843 = vunpack.c.l.b16 %v3555
      %v3844 = vunpack.c.l.b16 %v3556
      %v3845 = vunpack.c.l.b16 %v3557
      %v3846 = vunpack.c.l.b16 %v3558
      %v3847 = vunpack.c.l.b16 %v3559
      %v3848 = vunpack.c.l.b16 %v3560
      %v3849 = vunpack.c.l.b16 %v3561
      %v3850 = vunpack.c.l.b16 %v3562
      %v3851 = vunpack.c.l.b16 %v3563
      %v3852 = vunpack.c.l.b16 %v3564
      %v3853 = vunpack.c.l.b16 %v3565
      %v3854 = vunpack.c.l.b16 %v3566
      %v3855 = vunpack.c.l.b16 %v3567
      %v3856 = vunpack.c.l.b16 %v3568
      %v3857 = vunpack.c.l.b16 %v3569
      %v3858 = vunpack.c.l.b16 %v3570
      %v3859 = vunpack.c.l.b16 %v3571
      %v3860 = vunpack.c.l.b16 %v3572
      %v3861 = vunpack.c.l.b16 %v3573
      %v3862 = vunpack.c.l.b16 %v3574
      %v3863 = vunpack.c.l.b16 %v3575
      %v3864 = vunpack.c.l.b16 %v3576
      %v3865 = vunpack.c.l.b16 %v3577
      %v3866 = vunpack.c.l.b16 %v3578
      %v3867 = vunpack.c.l.b16 %v3579
      %v3868 = vunpack.c.l.b16 %v3580
      %v3869 = vunpack.c.l.b16 %v3581
      %v3870 = vunpack.c.l.b16 %v3582
      %v3871 = vunpack.c.l.b16 %v3583
      %v3872 = vunpack.c.l.b16 %v3584
      %v3873 = vunpack.c.l.b16 %v3585
      %v3874 = vunpack.c.l.b16 %v3586
      %v3875 = vunpack.c.l.b16 %v3587
      %v3876 = vunpack.c.l.b16 %v3588
      %v3877 = vunpack.c.l.b16 %v3589
      %v3878 = vunpack.c.l.b16 %v3590
      %v3879 = vunpack.c.l.b16 %v3591
      %v3880 = vunpack.c.l.b16 %v3592
      %v3881 = vunpack.c.l.b16 %v3593
      %v3882 = vunpack.c.l.b16 %v3594
      %v3883 = vunpack.c.l.b16 %v3595
      %v3884 = vunpack.c.l.b16 %v3596
      %v3885 = vunpack.c.l.b16 %v3597
      %v3886 = vunpack.c.l.b16 %v3598
      %v3887 = vunpack.c.l.b16 %v3599
      %v3888 = vunpack.c.l.b16 %v3600
      %v3889 = vunpack.c.l.b16 %v3601
      %v3890 = vunpack.c.l.b16 %v3602
      %v3891 = vunpack.c.l.b16 %v3603
      %v3892 = vunpack.c.l.b16 %v3604
      %v3893 = vunpack.c.l.b16 %v3605
      %v3894 = vunpack.c.l.b16 %v3606
      %v3895 = vunpack.c.l.b16 %v3607
      %v3896 = vunpack.c.l.b16 %v3608
      %v3897 = vunpack.c.l.b16 %v3609
      %v3898 = vunpack.c.l.b16 %v3610
      %v3899 = vunpack.c.l.b16 %v3611
      %v3900 = vunpack.c.l.b16 %v3612
      %v3901 = vunpack.c.l.b16 %v3613
      %v3902 = vunpack.c.l.b16 %v3614
      %v3903 = vunpack.c.l.b16 %v3615
      %v3904 = vunpack.c.l.b16 %v3616
      %v3905 = vunpack.c.l.b16 %v3617
      %v3906 = vunpack.c.l.b16 %v3618
      %v3907 = vunpack.c.l.b16 %v3619
      %v3908 = vunpack.c.l.b16 %v3620
      %v3909 = vunpack.c.l.b16 %v3621
      %v3910 = vunpack.c.l.b16 %v3622
      %v3911 = vunpack.c.l.b16 %v3623
      %v3912 = vunpack.c.l.b16 %v3624
      %v3913 = vunpack.c.l.b16 %v3625
      %v3914 = vunpack.c.l.b16 %v3626
      %v3915 = vunpack.c.l.b16 %v3627
      %v3916 = vunpack.c.l.b16 %v3628
      %v3917 = vunpack.c.l.b16 %v3629
      %v3918 = vunpack.c.l.b16 %v3630
      %v3919 = vunpack.c.l.b16 %v3631
      %v3920 = vunpack.c.l.b16 %v3632
      %v3921 = vunpack.c.l.b16 %v3633
      %v3922 = vunpack.c.l.b16 %v3634
      %v3923 = vunpack.c.l.b16 %v3635
      %v3924 = vunpack.c.l.b16 %v3636
      %v3925 = vunpack.c.l.b16 %v3637
      %v3926 = vunpack.c.l.b16 %v3638
      %v3927 = vunpack.c.l.b16 %v3639
      %v3928 = vunpack.c.l.b16 %v3640
      %v3929 = vunpack.c.l.b16 %v3641
      %v3930 = vunpack.c.l.b16 %v3642
      %v3931 = vunpack.c.l.b16 %v3643
      %v3932 = vunpack.c.l.b16 %v3644
      %v3933 = vunpack.c.l.b16 %v3645
      %v3934 = vunpack.c.l.b16 %v3646
      %v3935 = vunpack.c.l.b16 %v3647
      %v3936 = vunpack.c.l.b16 %v3648
      %v3937 = vunpack.c.l.b16 %v3649
      %v3938 = vunpack.c.l.b16 %v3650
      %v3939 = vunpack.c.l.b16 %v3651
      %v3940 = vunpack.c.l.b16 %v3652
      %v3941 = vunpack.c.l.b16 %v3653
      %v3942 = vunpack.c.l.b16 %v3654
      %v3943 = vunpack.c.l.b16 %v3655
      %v3944 = vunpack.c.l.b16 %v3656
      %v3945 = vunpack.c.l.b16 %v3657
      %v3946 = vunpack.c.l.b16 %v3658
      %v3947 = vunpack.c.l.b16 %v3659
      %v3948 = vunpack.c.l.b16 %v3660
      %v3949 = vunpack.c.l.b16 %v3661
      %v3950 = vunpack.c.l.b16 %v3662
      %v3951 = vunpack.c.l.b16 %v3663
      %v3952 = vunpack.c.l.b16 %v3664
      %v3953 = vunpack.c.l.b16 %v3665
      %v3954 = vunpack.c.l.b16 %v3666
      %v3955 = vunpack.c.l.b16 %v3667
      %v3956 = vunpack.c.l.b16 %v3668
      %v3957 = vunpack.c.l.b16 %v3669
      %v3958 = vunpack.c.l.b16 %v3670
      %v3959 = vunpack.c.l.b16 %v3671
      %v3960 = vunpack.c.l.b16 %v3672
      %v3961 = vunpack.c.l.b16 %v3673
      %v3962 = vunpack.c.l.b16 %v3674
      %v3963 = vunpack.c.l.b16 %v3675
      %v3964 = vunpack.c.l.b16 %v3676
      %v3965 = vunpack.c.l.b16 %v3677
      %v3966 = vunpack.c.l.b16 %v3678
      %v3967 = vunpack.c.l.b16 %v3679
      %v3968 = vunpack.c.l.b16 %v3680
      %v3969 = vunpack.c.l.b16 %v3681
      %v3970 = vpack.c.b16 %v3827, %v3826
      %v3971 = vpack.c.b16 %v3829, %v3828
      %v3972 = vpack.c.b16 %v3831, %v3830
      %v3973 = vpack.c.b16 %v3833, %v3832
      %v3974 = vpack.c.b16 %v3835, %v3834
      %v3975 = vpack.c.b16 %v3837, %v3836
      %v3976 = vpack.c.b16 %v3839, %v3838
      %v3977 = vpack.c.b16 %v3841, %v3840
      %v3978 = vpack.c.b16 %v3843, %v3842
      %v3979 = vpack.c.b16 %v3845, %v3844
      %v3980 = vpack.c.b16 %v3847, %v3846
      %v3981 = vpack.c.b16 %v3849, %v3848
      %v3982 = vpack.c.b16 %v3851, %v3850
      %v3983 = vpack.c.b16 %v3853, %v3852
      %v3984 = vpack.c.b16 %v3855, %v3854
      %v3985 = vpack.c.b16 %v3857, %v3856
      %v3986 = vpack.c.b16 %v3859, %v3858
      %v3987 = vpack.c.b16 %v3861, %v3860
      %v3988 = vpack.c.b16 %v3863, %v3862
      %v3989 = vpack.c.b16 %v3865, %v3864
      %v3990 = vpack.c.b16 %v3867, %v3866
      %v3991 = vpack.c.b16 %v3869, %v3868
      %v3992 = vpack.c.b16 %v3871, %v3870
      %v3993 = vpack.c.b16 %v3873, %v3872
      %v3994 = vpack.c.b16 %v3875, %v3874
      %v3995 = vpack.c.b16 %v3877, %v3876
      %v3996 = vpack.c.b16 %v3879, %v3878
      %v3997 = vpack.c.b16 %v3881, %v3880
      %v3998 = vpack.c.b16 %v3883, %v3882
      %v3999 = vpack.c.b16 %v3885, %v3884
      %v4000 = vpack.c.b16 %v3887, %v3886
      %v4001 = vpack.c.b16 %v3889, %v3888
      %v4002 = vpack.c.b16 %v3891, %v3890
      %v4003 = vpack.c.b16 %v3893, %v3892
      %v4004 = vpack.c.b16 %v3895, %v3894
      %v4005 = vpack.c.b16 %v3897, %v3896
      %v4006 = vpack.c.b16 %v3899, %v3898
      %v4007 = vpack.c.b16 %v3901, %v3900
      %v4008 = vpack.c.b16 %v3903, %v3902
      %v4009 = vpack.c.b16 %v3905, %v3904
      %v4010 = vpack.c.b16 %v3907, %v3906
      %v4011 = vpack.c.b16 %v3909, %v3908
      %v4012 = vpack.c.b16 %v3911, %v3910
      %v4013 = vpack.c.b16 %v3913, %v3912
      %v4014 = vpack.c.b16 %v3915, %v3914
      %v4015 = vpack.c.b16 %v3917, %v3916
      %v4016 = vpack.c.b16 %v3919, %v3918
      %v4017 = vpack.c.b16 %v3921, %v3920
      %v4018 = vpack.c.b16 %v3923, %v3922
      %v4019 = vpack.c.b16 %v3925, %v3924
      %v4020 = vpack.c.b16 %v3927, %v3926
      %v4021 = vpack.c.b16 %v3929, %v3928
      %v4022 = vpack.c.b16 %v3931, %v3930
      %v4023 = vpack.c.b16 %v3933, %v3932
      %v4024 = vpack.c.b16 %v3935, %v3934
      %v4025 = vpack.c.b16 %v3937, %v3936
      %v4026 = vpack.c.b16 %v3939, %v3938
      %v4027 = vpack.c.b16 %v3941, %v3940
      %v4028 = vpack.c.b16 %v3943, %v3942
      %v4029 = vpack.c.b16 %v3945, %v3944
      %v4030 = vpack.c.b16 %v3947, %v3946
      %v4031 = vpack.c.b16 %v3949, %v3948
      %v4032 = vpack.c.b16 %v3951, %v3950
      %v4033 = vpack.c.b16 %v3953, %v3952
      %v4034 = vpack.c.b16 %v3955, %v3954
      %v4035 = vpack.c.b16 %v3957, %v3956
      %v4036 = vpack.c.b16 %v3959, %v3958
      %v4037 = vpack.c.b16 %v3961, %v3960
      %v4038 = vpack.c.b16 %v3963, %v3962
      %v4039 = vpack.c.b16 %v3965, %v3964
      %v4040 = vpack.c.b16 %v3967, %v3966
      %v4041 = vpack.c.b16 %v3969, %v3968
      %4114 = vmatpush.bf16.msra.mxu0 %v3977
      %4115 = vmatpush.bf16.msra.mxu0 %v3976
      %4116 = vmatpush.bf16.msra.mxu0 %v3975
      %4117 = vmatpush.bf16.msra.mxu0 %v3974
      %4118 = vmatpush.bf16.msra.mxu0 %v3973
      %4119 = vmatpush.bf16.msra.mxu0 %v3972
      %4120 = vmatpush.bf16.msra.mxu0 %v3971
      %4121 = vmatpush.bf16.msra.mxu0 %v3970
      %4122 = vmatmul.bf16.gmra.mxu0 %v2302
      %v4123 = vpop.f32.mrf.mxu0
      %v4124 = vadd.f32 0.0, %v4123
      %v4125 = vpop.f32.mrf.mxu0
      %v4126 = vadd.f32 0.0, %v4125
      %4127 = vmatmul.bf16.gmra.mxu0 %v2303
      %v4128 = vpop.f32.mrf.mxu0
      %v4129 = vadd.f32 0.0, %v4128
      %v4130 = vpop.f32.mrf.mxu0
      %v4131 = vadd.f32 0.0, %v4130
      %4132 = vmatmul.bf16.gmra.mxu0 %v2304
      %v4133 = vpop.f32.mrf.mxu0
      %v4134 = vadd.f32 0.0, %v4133
      %v4135 = vpop.f32.mrf.mxu0
      %v4136 = vadd.f32 0.0, %v4135
      %4137 = vmatmul.bf16.gmra.mxu0 %v2305
      %v4138 = vpop.f32.mrf.mxu0
      %v4139 = vadd.f32 0.0, %v4138
      %v4140 = vpop.f32.mrf.mxu0
      %v4141 = vadd.f32 0.0, %v4140
      %4142 = vmatmul.bf16.gmra.mxu0 %v2306
      %v4143 = vpop.f32.mrf.mxu0
      %v4144 = vadd.f32 0.0, %v4143
      %v4145 = vpop.f32.mrf.mxu0
      %v4146 = vadd.f32 0.0, %v4145
      %4147 = vmatmul.bf16.gmra.mxu0 %v2307
      %v4148 = vpop.f32.mrf.mxu0
      %v4149 = vadd.f32 0.0, %v4148
      %v4150 = vpop.f32.mrf.mxu0
      %v4151 = vadd.f32 0.0, %v4150
      %4152 = vmatmul.bf16.gmra.mxu0 %v2308
      %v4153 = vpop.f32.mrf.mxu0
      %v4154 = vadd.f32 0.0, %v4153
      %v4155 = vpop.f32.mrf.mxu0
      %v4156 = vadd.f32 0.0, %v4155
      %4157 = vmatmul.bf16.gmra.mxu0 %v2309
      %v4158 = vpop.f32.mrf.mxu0
      %v4159 = vadd.f32 0.0, %v4158
      %v4160 = vpop.f32.mrf.mxu0
      %v4161 = vadd.f32 0.0, %v4160
      %4162 = vmatmul.bf16.gmra.mxu0 %v2310
      %v4163 = vpop.f32.mrf.mxu0
      %v4164 = vadd.f32 0.0, %v4163
      %v4165 = vpop.f32.mrf.mxu0
      %v4166 = vadd.f32 0.0, %v4165
      %4167 = vmatmul.bf16.gmra.mxu0 %v2311
      %v4168 = vpop.f32.mrf.mxu0
      %v4169 = vadd.f32 0.0, %v4168
      %v4170 = vpop.f32.mrf.mxu0
      %v4171 = vadd.f32 0.0, %v4170
      %4172 = vmatmul.bf16.gmra.mxu0 %v2312
      %v4173 = vpop.f32.mrf.mxu0
      %v4174 = vadd.f32 0.0, %v4173
      %v4175 = vpop.f32.mrf.mxu0
      %v4176 = vadd.f32 0.0, %v4175
      %4177 = vmatmul.bf16.gmra.mxu0 %v2313
      %v4178 = vpop.f32.mrf.mxu0
      %v4179 = vadd.f32 0.0, %v4178
      %v4180 = vpop.f32.mrf.mxu0
      %v4181 = vadd.f32 0.0, %v4180
      %4182 = vmatmul.bf16.gmra.mxu0 %v2314
      %v4183 = vpop.f32.mrf.mxu0
      %v4184 = vadd.f32 0.0, %v4183
      %v4185 = vpop.f32.mrf.mxu0
      %v4186 = vadd.f32 0.0, %v4185
      %4187 = vmatmul.bf16.gmra.mxu0 %v2315
      %v4188 = vpop.f32.mrf.mxu0
      %v4189 = vadd.f32 0.0, %v4188
      %v4190 = vpop.f32.mrf.mxu0
      %v4191 = vadd.f32 0.0, %v4190
      %4192 = vmatmul.bf16.gmra.mxu0 %v2316
      %v4193 = vpop.f32.mrf.mxu0
      %v4194 = vadd.f32 0.0, %v4193
      %v4195 = vpop.f32.mrf.mxu0
      %v4196 = vadd.f32 0.0, %v4195
      %4197 = vmatmul.bf16.gmra.mxu0 %v2317
      %v4198 = vpop.f32.mrf.mxu0
      %v4199 = vadd.f32 0.0, %v4198
      %v4200 = vpop.f32.mrf.mxu0
      %v4201 = vadd.f32 0.0, %v4200
      %4202 = vmatmul.bf16.gmra.mxu0 %v2318
      %v4203 = vpop.f32.mrf.mxu0
      %v4204 = vadd.f32 0.0, %v4203
      %v4205 = vpop.f32.mrf.mxu0
      %v4206 = vadd.f32 0.0, %v4205
      %4207 = vmatmul.bf16.gmra.mxu0 %v2319
      %v4208 = vpop.f32.mrf.mxu0
      %v4209 = vadd.f32 0.0, %v4208
      %v4210 = vpop.f32.mrf.mxu0
      %v4211 = vadd.f32 0.0, %v4210
      %4212 = vmatmul.bf16.gmra.mxu0 %v2320
      %v4213 = vpop.f32.mrf.mxu0
      %v4214 = vadd.f32 0.0, %v4213
      %v4215 = vpop.f32.mrf.mxu0
      %v4216 = vadd.f32 0.0, %v4215
      %4217 = vmatmul.bf16.gmra.mxu0 %v2321
      %v4218 = vpop.f32.mrf.mxu0
      %v4219 = vadd.f32 0.0, %v4218
      %v4220 = vpop.f32.mrf.mxu0
      %v4221 = vadd.f32 0.0, %v4220
      %4222 = vmatmul.bf16.gmra.mxu0 %v2322
      %v4223 = vpop.f32.mrf.mxu0
      %v4224 = vadd.f32 0.0, %v4223
      %v4225 = vpop.f32.mrf.mxu0
      %v4226 = vadd.f32 0.0, %v4225
      %4227 = vmatmul.bf16.gmra.mxu0 %v2323
      %v4228 = vpop.f32.mrf.mxu0
      %v4229 = vadd.f32 0.0, %v4228
      %v4230 = vpop.f32.mrf.mxu0
      %v4231 = vadd.f32 0.0, %v4230
      %4232 = vmatmul.bf16.gmra.mxu0 %v2324
      %v4233 = vpop.f32.mrf.mxu0
      %v4234 = vadd.f32 0.0, %v4233
      %v4235 = vpop.f32.mrf.mxu0
      %v4236 = vadd.f32 0.0, %v4235
      %4237 = vmatmul.bf16.gmra.mxu0 %v2325
      %v4238 = vpop.f32.mrf.mxu0
      %v4239 = vadd.f32 0.0, %v4238
      %v4240 = vpop.f32.mrf.mxu0
      %v4241 = vadd.f32 0.0, %v4240
      %4242 = vmatmul.bf16.gmra.mxu0 %v2326
      %v4243 = vpop.f32.mrf.mxu0
      %v4244 = vadd.f32 0.0, %v4243
      %v4245 = vpop.f32.mrf.mxu0
      %v4246 = vadd.f32 0.0, %v4245
      %4247 = vmatmul.bf16.gmra.mxu0 %v2327
      %v4248 = vpop.f32.mrf.mxu0
      %v4249 = vadd.f32 0.0, %v4248
      %v4250 = vpop.f32.mrf.mxu0
      %v4251 = vadd.f32 0.0, %v4250
      %4252 = vmatmul.bf16.gmra.mxu0 %v2328
      %v4253 = vpop.f32.mrf.mxu0
      %v4254 = vadd.f32 0.0, %v4253
      %v4255 = vpop.f32.mrf.mxu0
      %v4256 = vadd.f32 0.0, %v4255
      %4257 = vmatmul.bf16.gmra.mxu0 %v2329
      %v4258 = vpop.f32.mrf.mxu0
      %v4259 = vadd.f32 0.0, %v4258
      %v4260 = vpop.f32.mrf.mxu0
      %v4261 = vadd.f32 0.0, %v4260
      %4262 = vmatmul.bf16.gmra.mxu0 %v2330
      %v4263 = vpop.f32.mrf.mxu0
      %v4264 = vadd.f32 0.0, %v4263
      %v4265 = vpop.f32.mrf.mxu0
      %v4266 = vadd.f32 0.0, %v4265
      %4267 = vmatmul.bf16.gmra.mxu0 %v2331
      %v4268 = vpop.f32.mrf.mxu0
      %v4269 = vadd.f32 0.0, %v4268
      %v4270 = vpop.f32.mrf.mxu0
      %v4271 = vadd.f32 0.0, %v4270
      %4272 = vmatmul.bf16.gmra.mxu0 %v2332
      %v4273 = vpop.f32.mrf.mxu0
      %v4274 = vadd.f32 0.0, %v4273
      %v4275 = vpop.f32.mrf.mxu0
      %v4276 = vadd.f32 0.0, %v4275
      %4277 = vmatmul.bf16.gmra.mxu0 %v2333
      %v4278 = vpop.f32.mrf.mxu0
      %v4279 = vadd.f32 0.0, %v4278
      %v4280 = vpop.f32.mrf.mxu0
      %v4281 = vadd.f32 0.0, %v4280
      %4282 = vmatmul.bf16.gmra.mxu0 %v2334
      %v4283 = vpop.f32.mrf.mxu0
      %v4284 = vadd.f32 0.0, %v4283
      %v4285 = vpop.f32.mrf.mxu0
      %v4286 = vadd.f32 0.0, %v4285
      %4287 = vmatmul.bf16.gmra.mxu0 %v2335
      %v4288 = vpop.f32.mrf.mxu0
      %v4289 = vadd.f32 0.0, %v4288
      %v4290 = vpop.f32.mrf.mxu0
      %v4291 = vadd.f32 0.0, %v4290
      %4292 = vmatmul.bf16.gmra.mxu0 %v2336
      %v4293 = vpop.f32.mrf.mxu0
      %v4294 = vadd.f32 0.0, %v4293
      %v4295 = vpop.f32.mrf.mxu0
      %v4296 = vadd.f32 0.0, %v4295
      %4297 = vmatmul.bf16.gmra.mxu0 %v2337
      %v4298 = vpop.f32.mrf.mxu0
      %v4299 = vadd.f32 0.0, %v4298
      %v4300 = vpop.f32.mrf.mxu0
      %v4301 = vadd.f32 0.0, %v4300
      %4302 = vmatmul.bf16.gmra.mxu0 %v2338
      %v4303 = vpop.f32.mrf.mxu0
      %v4304 = vadd.f32 0.0, %v4303
      %v4305 = vpop.f32.mrf.mxu0
      %v4306 = vadd.f32 0.0, %v4305
      %4307 = vmatmul.bf16.gmra.mxu0 %v2339
      %v4308 = vpop.f32.mrf.mxu0
      %v4309 = vadd.f32 0.0, %v4308
      %v4310 = vpop.f32.mrf.mxu0
      %v4311 = vadd.f32 0.0, %v4310
      %4312 = vmatmul.bf16.gmra.mxu0 %v2340
      %v4313 = vpop.f32.mrf.mxu0
      %v4314 = vadd.f32 0.0, %v4313
      %v4315 = vpop.f32.mrf.mxu0
      %v4316 = vadd.f32 0.0, %v4315
      %4317 = vmatmul.bf16.gmra.mxu0 %v2341
      %v4318 = vpop.f32.mrf.mxu0
      %v4319 = vadd.f32 0.0, %v4318
      %v4320 = vpop.f32.mrf.mxu0
      %v4321 = vadd.f32 0.0, %v4320
      %4322 = vdwg.mxu0
      %4323 = vmatpush.bf16.msra.mxu0 %v3985
      %4324 = vmatpush.bf16.msra.mxu0 %v3984
      %4325 = vmatpush.bf16.msra.mxu0 %v3983
      %4326 = vmatpush.bf16.msra.mxu0 %v3982
      %4327 = vmatpush.bf16.msra.mxu0 %v3981
      %4328 = vmatpush.bf16.msra.mxu0 %v3980
      %4329 = vmatpush.bf16.msra.mxu0 %v3979
      %4330 = vmatpush.bf16.msra.mxu0 %v3978
      %4331 = vmatmul.bf16.gmra.mxu0 %v2397
      %v4332 = vpop.f32.mrf.mxu0
      %v4333 = vadd.f32 %v4124, %v4332
      %v4334 = vpop.f32.mrf.mxu0
      %v4335 = vadd.f32 %v4126, %v4334
      %4336 = vmatmul.bf16.gmra.mxu0 %v2405
      %v4337 = vpop.f32.mrf.mxu0
      %v4338 = vadd.f32 %v4129, %v4337
      %v4339 = vpop.f32.mrf.mxu0
      %v4340 = vadd.f32 %v4131, %v4339
      %4341 = vmatmul.bf16.gmra.mxu0 %v2413
      %v4342 = vpop.f32.mrf.mxu0
      %v4343 = vadd.f32 %v4134, %v4342
      %v4344 = vpop.f32.mrf.mxu0
      %v4345 = vadd.f32 %v4136, %v4344
      %4346 = vmatmul.bf16.gmra.mxu0 %v2421
      %v4347 = vpop.f32.mrf.mxu0
      %v4348 = vadd.f32 %v4139, %v4347
      %v4349 = vpop.f32.mrf.mxu0
      %v4350 = vadd.f32 %v4141, %v4349
      %4351 = vmatmul.bf16.gmra.mxu0 %v2429
      %v4352 = vpop.f32.mrf.mxu0
      %v4353 = vadd.f32 %v4144, %v4352
      %v4354 = vpop.f32.mrf.mxu0
      %v4355 = vadd.f32 %v4146, %v4354
      %4356 = vmatmul.bf16.gmra.mxu0 %v2437
      %v4357 = vpop.f32.mrf.mxu0
      %v4358 = vadd.f32 %v4149, %v4357
      %v4359 = vpop.f32.mrf.mxu0
      %v4360 = vadd.f32 %v4151, %v4359
      %4361 = vmatmul.bf16.gmra.mxu0 %v2445
      %v4362 = vpop.f32.mrf.mxu0
      %v4363 = vadd.f32 %v4154, %v4362
      %v4364 = vpop.f32.mrf.mxu0
      %v4365 = vadd.f32 %v4156, %v4364
      %4366 = vmatmul.bf16.gmra.mxu0 %v2453
      %v4367 = vpop.f32.mrf.mxu0
      %v4368 = vadd.f32 %v4159, %v4367
      %v4369 = vpop.f32.mrf.mxu0
      %v4370 = vadd.f32 %v4161, %v4369
      %4371 = vmatmul.bf16.gmra.mxu0 %v2461
      %v4372 = vpop.f32.mrf.mxu0
      %v4373 = vadd.f32 %v4164, %v4372
      %v4374 = vpop.f32.mrf.mxu0
      %v4375 = vadd.f32 %v4166, %v4374
      %4376 = vmatmul.bf16.gmra.mxu0 %v2469
      %v4377 = vpop.f32.mrf.mxu0
      %v4378 = vadd.f32 %v4169, %v4377
      %v4379 = vpop.f32.mrf.mxu0
      %v4380 = vadd.f32 %v4171, %v4379
      %4381 = vmatmul.bf16.gmra.mxu0 %v2477
      %v4382 = vpop.f32.mrf.mxu0
      %v4383 = vadd.f32 %v4174, %v4382
      %v4384 = vpop.f32.mrf.mxu0
      %v4385 = vadd.f32 %v4176, %v4384
      %4386 = vmatmul.bf16.gmra.mxu0 %v2485
      %v4387 = vpop.f32.mrf.mxu0
      %v4388 = vadd.f32 %v4179, %v4387
      %v4389 = vpop.f32.mrf.mxu0
      %v4390 = vadd.f32 %v4181, %v4389
      %4391 = vmatmul.bf16.gmra.mxu0 %v2493
      %v4392 = vpop.f32.mrf.mxu0
      %v4393 = vadd.f32 %v4184, %v4392
      %v4394 = vpop.f32.mrf.mxu0
      %v4395 = vadd.f32 %v4186, %v4394
      %4396 = vmatmul.bf16.gmra.mxu0 %v2501
      %v4397 = vpop.f32.mrf.mxu0
      %v4398 = vadd.f32 %v4189, %v4397
      %v4399 = vpop.f32.mrf.mxu0
      %v4400 = vadd.f32 %v4191, %v4399
      %4401 = vmatmul.bf16.gmra.mxu0 %v2509
      %v4402 = vpop.f32.mrf.mxu0
      %v4403 = vadd.f32 %v4194, %v4402
      %v4404 = vpop.f32.mrf.mxu0
      %v4405 = vadd.f32 %v4196, %v4404
      %4406 = vmatmul.bf16.gmra.mxu0 %v2517
      %v4407 = vpop.f32.mrf.mxu0
      %v4408 = vadd.f32 %v4199, %v4407
      %v4409 = vpop.f32.mrf.mxu0
      %v4410 = vadd.f32 %v4201, %v4409
      %4411 = vmatmul.bf16.gmra.mxu0 %v2525
      %v4412 = vpop.f32.mrf.mxu0
      %v4413 = vadd.f32 %v4204, %v4412
      %v4414 = vpop.f32.mrf.mxu0
      %v4415 = vadd.f32 %v4206, %v4414
      %4416 = vmatmul.bf16.gmra.mxu0 %v2533
      %v4417 = vpop.f32.mrf.mxu0
      %v4418 = vadd.f32 %v4209, %v4417
      %v4419 = vpop.f32.mrf.mxu0
      %v4420 = vadd.f32 %v4211, %v4419
      %4421 = vmatmul.bf16.gmra.mxu0 %v2541
      %v4422 = vpop.f32.mrf.mxu0
      %v4423 = vadd.f32 %v4214, %v4422
      %v4424 = vpop.f32.mrf.mxu0
      %v4425 = vadd.f32 %v4216, %v4424
      %4426 = vmatmul.bf16.gmra.mxu0 %v2549
      %v4427 = vpop.f32.mrf.mxu0
      %v4428 = vadd.f32 %v4219, %v4427
      %v4429 = vpop.f32.mrf.mxu0
      %v4430 = vadd.f32 %v4221, %v4429
      %4431 = vmatmul.bf16.gmra.mxu0 %v2557
      %v4432 = vpop.f32.mrf.mxu0
      %v4433 = vadd.f32 %v4224, %v4432
      %v4434 = vpop.f32.mrf.mxu0
      %v4435 = vadd.f32 %v4226, %v4434
      %4436 = vmatmul.bf16.gmra.mxu0 %v2565
      %v4437 = vpop.f32.mrf.mxu0
      %v4438 = vadd.f32 %v4229, %v4437
      %v4439 = vpop.f32.mrf.mxu0
      %v4440 = vadd.f32 %v4231, %v4439
      %4441 = vmatmul.bf16.gmra.mxu0 %v2573
      %v4442 = vpop.f32.mrf.mxu0
      %v4443 = vadd.f32 %v4234, %v4442
      %v4444 = vpop.f32.mrf.mxu0
      %v4445 = vadd.f32 %v4236, %v4444
      %4446 = vmatmul.bf16.gmra.mxu0 %v2581
      %v4447 = vpop.f32.mrf.mxu0
      %v4448 = vadd.f32 %v4239, %v4447
      %v4449 = vpop.f32.mrf.mxu0
      %v4450 = vadd.f32 %v4241, %v4449
      %4451 = vmatmul.bf16.gmra.mxu0 %v2589
      %v4452 = vpop.f32.mrf.mxu0
      %v4453 = vadd.f32 %v4244, %v4452
      %v4454 = vpop.f32.mrf.mxu0
      %v4455 = vadd.f32 %v4246, %v4454
      %4456 = vmatmul.bf16.gmra.mxu0 %v2597
      %v4457 = vpop.f32.mrf.mxu0
      %v4458 = vadd.f32 %v4249, %v4457
      %v4459 = vpop.f32.mrf.mxu0
      %v4460 = vadd.f32 %v4251, %v4459
      %4461 = vmatmul.bf16.gmra.mxu0 %v2605
      %v4462 = vpop.f32.mrf.mxu0
      %v4463 = vadd.f32 %v4254, %v4462
      %v4464 = vpop.f32.mrf.mxu0
      %v4465 = vadd.f32 %v4256, %v4464
      %4466 = vmatmul.bf16.gmra.mxu0 %v2613
      %v4467 = vpop.f32.mrf.mxu0
      %v4468 = vadd.f32 %v4259, %v4467
      %v4469 = vpop.f32.mrf.mxu0
      %v4470 = vadd.f32 %v4261, %v4469
      %4471 = vmatmul.bf16.gmra.mxu0 %v2621
      %v4472 = vpop.f32.mrf.mxu0
      %v4473 = vadd.f32 %v4264, %v4472
      %v4474 = vpop.f32.mrf.mxu0
      %v4475 = vadd.f32 %v4266, %v4474
      %4476 = vmatmul.bf16.gmra.mxu0 %v2629
      %v4477 = vpop.f32.mrf.mxu0
      %v4478 = vadd.f32 %v4269, %v4477
      %v4479 = vpop.f32.mrf.mxu0
      %v4480 = vadd.f32 %v4271, %v4479
      %4481 = vmatmul.bf16.gmra.mxu0 %v2637
      %v4482 = vpop.f32.mrf.mxu0
      %v4483 = vadd.f32 %v4274, %v4482
      %v4484 = vpop.f32.mrf.mxu0
      %v4485 = vadd.f32 %v4276, %v4484
      %4486 = vmatmul.bf16.gmra.mxu0 %v2645
      %v4487 = vpop.f32.mrf.mxu0
      %v4488 = vadd.f32 %v4279, %v4487
      %v4489 = vpop.f32.mrf.mxu0
      %v4490 = vadd.f32 %v4281, %v4489
      %4491 = vmatmul.bf16.gmra.mxu0 %v2653
      %v4492 = vpop.f32.mrf.mxu0
      %v4493 = vadd.f32 %v4284, %v4492
      %v4494 = vpop.f32.mrf.mxu0
      %v4495 = vadd.f32 %v4286, %v4494
      %4496 = vmatmul.bf16.gmra.mxu0 %v2661
      %v4497 = vpop.f32.mrf.mxu0
      %v4498 = vadd.f32 %v4289, %v4497
      %v4499 = vpop.f32.mrf.mxu0
      %v4500 = vadd.f32 %v4291, %v4499
      %4501 = vmatmul.bf16.gmra.mxu0 %v2669
      %v4502 = vpop.f32.mrf.mxu0
      %v4503 = vadd.f32 %v4294, %v4502
      %v4504 = vpop.f32.mrf.mxu0
      %v4505 = vadd.f32 %v4296, %v4504
      %4506 = vmatmul.bf16.gmra.mxu0 %v2677
      %v4507 = vpop.f32.mrf.mxu0
      %v4508 = vadd.f32 %v4299, %v4507
      %v4509 = vpop.f32.mrf.mxu0
      %v4510 = vadd.f32 %v4301, %v4509
      %4511 = vmatmul.bf16.gmra.mxu0 %v2685
      %v4512 = vpop.f32.mrf.mxu0
      %v4513 = vadd.f32 %v4304, %v4512
      %v4514 = vpop.f32.mrf.mxu0
      %v4515 = vadd.f32 %v4306, %v4514
      %4516 = vmatmul.bf16.gmra.mxu0 %v2693
      %v4517 = vpop.f32.mrf.mxu0
      %v4518 = vadd.f32 %v4309, %v4517
      %v4519 = vpop.f32.mrf.mxu0
      %v4520 = vadd.f32 %v4311, %v4519
      %4521 = vmatmul.bf16.gmra.mxu0 %v2701
      %v4522 = vpop.f32.mrf.mxu0
      %v4523 = vadd.f32 %v4314, %v4522
      %v4524 = vpop.f32.mrf.mxu0
      %v4525 = vadd.f32 %v4316, %v4524
      %4526 = vmatmul.bf16.gmra.mxu0 %v2709
      %v4527 = vpop.f32.mrf.mxu0
      %v4528 = vadd.f32 %v4319, %v4527
      %v4529 = vpop.f32.mrf.mxu0
      %v4530 = vadd.f32 %v4321, %v4529
      %4531 = vdwg.mxu0
      %4532 = vmatpush.bf16.msra.mxu0 %v3993
      %4533 = vmatpush.bf16.msra.mxu0 %v3992
      %4534 = vmatpush.bf16.msra.mxu0 %v3991
      %4535 = vmatpush.bf16.msra.mxu0 %v3990
      %4536 = vmatpush.bf16.msra.mxu0 %v3989
      %4537 = vmatpush.bf16.msra.mxu0 %v3988
      %4538 = vmatpush.bf16.msra.mxu0 %v3987
      %4539 = vmatpush.bf16.msra.mxu0 %v3986
      %4540 = vmatmul.bf16.gmra.mxu0 %v2753
      %v4541 = vpop.f32.mrf.mxu0
      %v4542 = vadd.f32 %v4333, %v4541
      %v4543 = vpop.f32.mrf.mxu0
      %v4544 = vadd.f32 %v4335, %v4543
      %4545 = vmatmul.bf16.gmra.mxu0 %v2755
      %v4546 = vpop.f32.mrf.mxu0
      %v4547 = vadd.f32 %v4338, %v4546
      %v4548 = vpop.f32.mrf.mxu0
      %v4549 = vadd.f32 %v4340, %v4548
      %4550 = vmatmul.bf16.gmra.mxu0 %v2757
      %v4551 = vpop.f32.mrf.mxu0
      %v4552 = vadd.f32 %v4343, %v4551
      %v4553 = vpop.f32.mrf.mxu0
      %v4554 = vadd.f32 %v4345, %v4553
      %4555 = vmatmul.bf16.gmra.mxu0 %v2759
      %v4556 = vpop.f32.mrf.mxu0
      %v4557 = vadd.f32 %v4348, %v4556
      %v4558 = vpop.f32.mrf.mxu0
      %v4559 = vadd.f32 %v4350, %v4558
      %4560 = vmatmul.bf16.gmra.mxu0 %v2761
      %v4561 = vpop.f32.mrf.mxu0
      %v4562 = vadd.f32 %v4353, %v4561
      %v4563 = vpop.f32.mrf.mxu0
      %v4564 = vadd.f32 %v4355, %v4563
      %4565 = vmatmul.bf16.gmra.mxu0 %v2763
      %v4566 = vpop.f32.mrf.mxu0
      %v4567 = vadd.f32 %v4358, %v4566
      %v4568 = vpop.f32.mrf.mxu0
      %v4569 = vadd.f32 %v4360, %v4568
      %4570 = vmatmul.bf16.gmra.mxu0 %v2765
      %v4571 = vpop.f32.mrf.mxu0
      %v4572 = vadd.f32 %v4363, %v4571
      %v4573 = vpop.f32.mrf.mxu0
      %v4574 = vadd.f32 %v4365, %v4573
      %4575 = vmatmul.bf16.gmra.mxu0 %v2767
      %v4576 = vpop.f32.mrf.mxu0
      %v4577 = vadd.f32 %v4368, %v4576
      %v4578 = vpop.f32.mrf.mxu0
      %v4579 = vadd.f32 %v4370, %v4578
      %4580 = vmatmul.bf16.gmra.mxu0 %v2769
      %v4581 = vpop.f32.mrf.mxu0
      %v4582 = vadd.f32 %v4373, %v4581
      %v4583 = vpop.f32.mrf.mxu0
      %v4584 = vadd.f32 %v4375, %v4583
      %4585 = vmatmul.bf16.gmra.mxu0 %v2771
      %v4586 = vpop.f32.mrf.mxu0
      %v4587 = vadd.f32 %v4378, %v4586
      %v4588 = vpop.f32.mrf.mxu0
      %v4589 = vadd.f32 %v4380, %v4588
      %4590 = vmatmul.bf16.gmra.mxu0 %v2773
      %v4591 = vpop.f32.mrf.mxu0
      %v4592 = vadd.f32 %v4383, %v4591
      %v4593 = vpop.f32.mrf.mxu0
      %v4594 = vadd.f32 %v4385, %v4593
      %4595 = vmatmul.bf16.gmra.mxu0 %v2775
      %v4596 = vpop.f32.mrf.mxu0
      %v4597 = vadd.f32 %v4388, %v4596
      %v4598 = vpop.f32.mrf.mxu0
      %v4599 = vadd.f32 %v4390, %v4598
      %4600 = vmatmul.bf16.gmra.mxu0 %v2777
      %v4601 = vpop.f32.mrf.mxu0
      %v4602 = vadd.f32 %v4393, %v4601
      %v4603 = vpop.f32.mrf.mxu0
      %v4604 = vadd.f32 %v4395, %v4603
      %4605 = vmatmul.bf16.gmra.mxu0 %v2779
      %v4606 = vpop.f32.mrf.mxu0
      %v4607 = vadd.f32 %v4398, %v4606
      %v4608 = vpop.f32.mrf.mxu0
      %v4609 = vadd.f32 %v4400, %v4608
      %4610 = vmatmul.bf16.gmra.mxu0 %v2781
      %v4611 = vpop.f32.mrf.mxu0
      %v4612 = vadd.f32 %v4403, %v4611
      %v4613 = vpop.f32.mrf.mxu0
      %v4614 = vadd.f32 %v4405, %v4613
      %4615 = vmatmul.bf16.gmra.mxu0 %v2783
      %v4616 = vpop.f32.mrf.mxu0
      %v4617 = vadd.f32 %v4408, %v4616
      %v4618 = vpop.f32.mrf.mxu0
      %v4619 = vadd.f32 %v4410, %v4618
      %4620 = vmatmul.bf16.gmra.mxu0 %v2785
      %v4621 = vpop.f32.mrf.mxu0
      %v4622 = vadd.f32 %v4413, %v4621
      %v4623 = vpop.f32.mrf.mxu0
      %v4624 = vadd.f32 %v4415, %v4623
      %4625 = vmatmul.bf16.gmra.mxu0 %v2787
      %v4626 = vpop.f32.mrf.mxu0
      %v4627 = vadd.f32 %v4418, %v4626
      %v4628 = vpop.f32.mrf.mxu0
      %v4629 = vadd.f32 %v4420, %v4628
      %4630 = vmatmul.bf16.gmra.mxu0 %v2789
      %v4631 = vpop.f32.mrf.mxu0
      %v4632 = vadd.f32 %v4423, %v4631
      %v4633 = vpop.f32.mrf.mxu0
      %v4634 = vadd.f32 %v4425, %v4633
      %4635 = vmatmul.bf16.gmra.mxu0 %v2791
      %v4636 = vpop.f32.mrf.mxu0
      %v4637 = vadd.f32 %v4428, %v4636
      %v4638 = vpop.f32.mrf.mxu0
      %v4639 = vadd.f32 %v4430, %v4638
      %4640 = vmatmul.bf16.gmra.mxu0 %v2793
      %v4641 = vpop.f32.mrf.mxu0
      %v4642 = vadd.f32 %v4433, %v4641
      %v4643 = vpop.f32.mrf.mxu0
      %v4644 = vadd.f32 %v4435, %v4643
      %4645 = vmatmul.bf16.gmra.mxu0 %v2795
      %v4646 = vpop.f32.mrf.mxu0
      %v4647 = vadd.f32 %v4438, %v4646
      %v4648 = vpop.f32.mrf.mxu0
      %v4649 = vadd.f32 %v4440, %v4648
      %4650 = vmatmul.bf16.gmra.mxu0 %v2797
      %v4651 = vpop.f32.mrf.mxu0
      %v4652 = vadd.f32 %v4443, %v4651
      %v4653 = vpop.f32.mrf.mxu0
      %v4654 = vadd.f32 %v4445, %v4653
      %4655 = vmatmul.bf16.gmra.mxu0 %v2799
      %v4656 = vpop.f32.mrf.mxu0
      %v4657 = vadd.f32 %v4448, %v4656
      %v4658 = vpop.f32.mrf.mxu0
      %v4659 = vadd.f32 %v4450, %v4658
      %4660 = vmatmul.bf16.gmra.mxu0 %v2801
      %v4661 = vpop.f32.mrf.mxu0
      %v4662 = vadd.f32 %v4453, %v4661
      %v4663 = vpop.f32.mrf.mxu0
      %v4664 = vadd.f32 %v4455, %v4663
      %4665 = vmatmul.bf16.gmra.mxu0 %v2803
      %v4666 = vpop.f32.mrf.mxu0
      %v4667 = vadd.f32 %v4458, %v4666
      %v4668 = vpop.f32.mrf.mxu0
      %v4669 = vadd.f32 %v4460, %v4668
      %4670 = vmatmul.bf16.gmra.mxu0 %v2805
      %v4671 = vpop.f32.mrf.mxu0
      %v4672 = vadd.f32 %v4463, %v4671
      %v4673 = vpop.f32.mrf.mxu0
      %v4674 = vadd.f32 %v4465, %v4673
      %4675 = vmatmul.bf16.gmra.mxu0 %v2807
      %v4676 = vpop.f32.mrf.mxu0
      %v4677 = vadd.f32 %v4468, %v4676
      %v4678 = vpop.f32.mrf.mxu0
      %v4679 = vadd.f32 %v4470, %v4678
      %4680 = vmatmul.bf16.gmra.mxu0 %v2809
      %v4681 = vpop.f32.mrf.mxu0
      %v4682 = vadd.f32 %v4473, %v4681
      %v4683 = vpop.f32.mrf.mxu0
      %v4684 = vadd.f32 %v4475, %v4683
      %4685 = vmatmul.bf16.gmra.mxu0 %v2811
      %v4686 = vpop.f32.mrf.mxu0
      %v4687 = vadd.f32 %v4478, %v4686
      %v4688 = vpop.f32.mrf.mxu0
      %v4689 = vadd.f32 %v4480, %v4688
      %4690 = vmatmul.bf16.gmra.mxu0 %v2813
      %v4691 = vpop.f32.mrf.mxu0
      %v4692 = vadd.f32 %v4483, %v4691
      %v4693 = vpop.f32.mrf.mxu0
      %v4694 = vadd.f32 %v4485, %v4693
      %4695 = vmatmul.bf16.gmra.mxu0 %v2815
      %v4696 = vpop.f32.mrf.mxu0
      %v4697 = vadd.f32 %v4488, %v4696
      %v4698 = vpop.f32.mrf.mxu0
      %v4699 = vadd.f32 %v4490, %v4698
      %4700 = vmatmul.bf16.gmra.mxu0 %v2817
      %v4701 = vpop.f32.mrf.mxu0
      %v4702 = vadd.f32 %v4493, %v4701
      %v4703 = vpop.f32.mrf.mxu0
      %v4704 = vadd.f32 %v4495, %v4703
      %4705 = vmatmul.bf16.gmra.mxu0 %v2819
      %v4706 = vpop.f32.mrf.mxu0
      %v4707 = vadd.f32 %v4498, %v4706
      %v4708 = vpop.f32.mrf.mxu0
      %v4709 = vadd.f32 %v4500, %v4708
      %4710 = vmatmul.bf16.gmra.mxu0 %v2821
      %v4711 = vpop.f32.mrf.mxu0
      %v4712 = vadd.f32 %v4503, %v4711
      %v4713 = vpop.f32.mrf.mxu0
      %v4714 = vadd.f32 %v4505, %v4713
      %4715 = vmatmul.bf16.gmra.mxu0 %v2823
      %v4716 = vpop.f32.mrf.mxu0
      %v4717 = vadd.f32 %v4508, %v4716
      %v4718 = vpop.f32.mrf.mxu0
      %v4719 = vadd.f32 %v4510, %v4718
      %4720 = vmatmul.bf16.gmra.mxu0 %v2825
      %v4721 = vpop.f32.mrf.mxu0
      %v4722 = vadd.f32 %v4513, %v4721
      %v4723 = vpop.f32.mrf.mxu0
      %v4724 = vadd.f32 %v4515, %v4723
      %4725 = vmatmul.bf16.gmra.mxu0 %v2827
      %v4726 = vpop.f32.mrf.mxu0
      %v4727 = vadd.f32 %v4518, %v4726
      %v4728 = vpop.f32.mrf.mxu0
      %v4729 = vadd.f32 %v4520, %v4728
      %4730 = vmatmul.bf16.gmra.mxu0 %v2829
      %v4731 = vpop.f32.mrf.mxu0
      %v4732 = vadd.f32 %v4523, %v4731
      %v4733 = vpop.f32.mrf.mxu0
      %v4734 = vadd.f32 %v4525, %v4733
      %4735 = vmatmul.bf16.gmra.mxu0 %v2831
      %v4736 = vpop.f32.mrf.mxu0
      %v4737 = vadd.f32 %v4528, %v4736
      %v4738 = vpop.f32.mrf.mxu0
      %v4739 = vadd.f32 %v4530, %v4738
      %4740 = vdwg.mxu0
      %4741 = vmatpush.bf16.msra.mxu0 %v4001
      %4742 = vmatpush.bf16.msra.mxu0 %v4000
      %4743 = vmatpush.bf16.msra.mxu0 %v3999
      %4744 = vmatpush.bf16.msra.mxu0 %v3998
      %4745 = vmatpush.bf16.msra.mxu0 %v3997
      %4746 = vmatpush.bf16.msra.mxu0 %v3996
      %4747 = vmatpush.bf16.msra.mxu0 %v3995
      %4748 = vmatpush.bf16.msra.mxu0 %v3994
      %4749 = vmatmul.bf16.gmra.mxu0 %v2880
      %v4750 = vpop.f32.mrf.mxu0
      %v4751 = vadd.f32 %v4542, %v4750
      %v4752 = vpop.f32.mrf.mxu0
      %v4753 = vadd.f32 %v4544, %v4752
      %4754 = vmatmul.bf16.gmra.mxu0 %v2881
      %v4755 = vpop.f32.mrf.mxu0
      %v4756 = vadd.f32 %v4547, %v4755
      %v4757 = vpop.f32.mrf.mxu0
      %v4758 = vadd.f32 %v4549, %v4757
      %4759 = vmatmul.bf16.gmra.mxu0 %v2882
      %v4760 = vpop.f32.mrf.mxu0
      %v4761 = vadd.f32 %v4552, %v4760
      %v4762 = vpop.f32.mrf.mxu0
      %v4763 = vadd.f32 %v4554, %v4762
      %4764 = vmatmul.bf16.gmra.mxu0 %v2883
      %v4765 = vpop.f32.mrf.mxu0
      %v4766 = vadd.f32 %v4557, %v4765
      %v4767 = vpop.f32.mrf.mxu0
      %v4768 = vadd.f32 %v4559, %v4767
      %4769 = vmatmul.bf16.gmra.mxu0 %v2884
      %v4770 = vpop.f32.mrf.mxu0
      %v4771 = vadd.f32 %v4562, %v4770
      %v4772 = vpop.f32.mrf.mxu0
      %v4773 = vadd.f32 %v4564, %v4772
      %4774 = vmatmul.bf16.gmra.mxu0 %v2885
      %v4775 = vpop.f32.mrf.mxu0
      %v4776 = vadd.f32 %v4567, %v4775
      %v4777 = vpop.f32.mrf.mxu0
      %v4778 = vadd.f32 %v4569, %v4777
      %4779 = vmatmul.bf16.gmra.mxu0 %v2886
      %v4780 = vpop.f32.mrf.mxu0
      %v4781 = vadd.f32 %v4572, %v4780
      %v4782 = vpop.f32.mrf.mxu0
      %v4783 = vadd.f32 %v4574, %v4782
      %4784 = vmatmul.bf16.gmra.mxu0 %v2887
      %v4785 = vpop.f32.mrf.mxu0
      %v4786 = vadd.f32 %v4577, %v4785
      %v4787 = vpop.f32.mrf.mxu0
      %v4788 = vadd.f32 %v4579, %v4787
      %4789 = vmatmul.bf16.gmra.mxu0 %v2888
      %v4790 = vpop.f32.mrf.mxu0
      %v4791 = vadd.f32 %v4582, %v4790
      %v4792 = vpop.f32.mrf.mxu0
      %v4793 = vadd.f32 %v4584, %v4792
      %4794 = vmatmul.bf16.gmra.mxu0 %v2889
      %v4795 = vpop.f32.mrf.mxu0
      %v4796 = vadd.f32 %v4587, %v4795
      %v4797 = vpop.f32.mrf.mxu0
      %v4798 = vadd.f32 %v4589, %v4797
      %4799 = vmatmul.bf16.gmra.mxu0 %v2890
      %v4800 = vpop.f32.mrf.mxu0
      %v4801 = vadd.f32 %v4592, %v4800
      %v4802 = vpop.f32.mrf.mxu0
      %v4803 = vadd.f32 %v4594, %v4802
      %4804 = vmatmul.bf16.gmra.mxu0 %v2891
      %v4805 = vpop.f32.mrf.mxu0
      %v4806 = vadd.f32 %v4597, %v4805
      %v4807 = vpop.f32.mrf.mxu0
      %v4808 = vadd.f32 %v4599, %v4807
      %4809 = vmatmul.bf16.gmra.mxu0 %v2892
      %v4810 = vpop.f32.mrf.mxu0
      %v4811 = vadd.f32 %v4602, %v4810
      %v4812 = vpop.f32.mrf.mxu0
      %v4813 = vadd.f32 %v4604, %v4812
      %4814 = vmatmul.bf16.gmra.mxu0 %v2893
      %v4815 = vpop.f32.mrf.mxu0
      %v4816 = vadd.f32 %v4607, %v4815
      %v4817 = vpop.f32.mrf.mxu0
      %v4818 = vadd.f32 %v4609, %v4817
      %4819 = vmatmul.bf16.gmra.mxu0 %v2894
      %v4820 = vpop.f32.mrf.mxu0
      %v4821 = vadd.f32 %v4612, %v4820
      %v4822 = vpop.f32.mrf.mxu0
      %v4823 = vadd.f32 %v4614, %v4822
      %4824 = vmatmul.bf16.gmra.mxu0 %v2895
      %v4825 = vpop.f32.mrf.mxu0
      %v4826 = vadd.f32 %v4617, %v4825
      %v4827 = vpop.f32.mrf.mxu0
      %v4828 = vadd.f32 %v4619, %v4827
      %4829 = vmatmul.bf16.gmra.mxu0 %v2896
      %v4830 = vpop.f32.mrf.mxu0
      %v4831 = vadd.f32 %v4622, %v4830
      %v4832 = vpop.f32.mrf.mxu0
      %v4833 = vadd.f32 %v4624, %v4832
      %4834 = vmatmul.bf16.gmra.mxu0 %v2897
      %v4835 = vpop.f32.mrf.mxu0
      %v4836 = vadd.f32 %v4627, %v4835
      %v4837 = vpop.f32.mrf.mxu0
      %v4838 = vadd.f32 %v4629, %v4837
      %4839 = vmatmul.bf16.gmra.mxu0 %v2898
      %v4840 = vpop.f32.mrf.mxu0
      %v4841 = vadd.f32 %v4632, %v4840
      %v4842 = vpop.f32.mrf.mxu0
      %v4843 = vadd.f32 %v4634, %v4842
      %4844 = vmatmul.bf16.gmra.mxu0 %v2899
      %v4845 = vpop.f32.mrf.mxu0
      %v4846 = vadd.f32 %v4637, %v4845
      %v4847 = vpop.f32.mrf.mxu0
      %v4848 = vadd.f32 %v4639, %v4847
      %4849 = vmatmul.bf16.gmra.mxu0 %v2900
      %v4850 = vpop.f32.mrf.mxu0
      %v4851 = vadd.f32 %v4642, %v4850
      %v4852 = vpop.f32.mrf.mxu0
      %v4853 = vadd.f32 %v4644, %v4852
      %4854 = vmatmul.bf16.gmra.mxu0 %v2901
      %v4855 = vpop.f32.mrf.mxu0
      %v4856 = vadd.f32 %v4647, %v4855
      %v4857 = vpop.f32.mrf.mxu0
      %v4858 = vadd.f32 %v4649, %v4857
      %4859 = vmatmul.bf16.gmra.mxu0 %v2902
      %v4860 = vpop.f32.mrf.mxu0
      %v4861 = vadd.f32 %v4652, %v4860
      %v4862 = vpop.f32.mrf.mxu0
      %v4863 = vadd.f32 %v4654, %v4862
      %4864 = vmatmul.bf16.gmra.mxu0 %v2903
      %v4865 = vpop.f32.mrf.mxu0
      %v4866 = vadd.f32 %v4657, %v4865
      %v4867 = vpop.f32.mrf.mxu0
      %v4868 = vadd.f32 %v4659, %v4867
      %4869 = vmatmul.bf16.gmra.mxu0 %v2904
      %v4870 = vpop.f32.mrf.mxu0
      %v4871 = vadd.f32 %v4662, %v4870
      %v4872 = vpop.f32.mrf.mxu0
      %v4873 = vadd.f32 %v4664, %v4872
      %4874 = vmatmul.bf16.gmra.mxu0 %v2905
      %v4875 = vpop.f32.mrf.mxu0
      %v4876 = vadd.f32 %v4667, %v4875
      %v4877 = vpop.f32.mrf.mxu0
      %v4878 = vadd.f32 %v4669, %v4877
      %4879 = vmatmul.bf16.gmra.mxu0 %v2906
      %v4880 = vpop.f32.mrf.mxu0
      %v4881 = vadd.f32 %v4672, %v4880
      %v4882 = vpop.f32.mrf.mxu0
      %v4883 = vadd.f32 %v4674, %v4882
      %4884 = vmatmul.bf16.gmra.mxu0 %v2907
      %v4885 = vpop.f32.mrf.mxu0
      %v4886 = vadd.f32 %v4677, %v4885
      %v4887 = vpop.f32.mrf.mxu0
      %v4888 = vadd.f32 %v4679, %v4887
      %4889 = vmatmul.bf16.gmra.mxu0 %v2908
      %v4890 = vpop.f32.mrf.mxu0
      %v4891 = vadd.f32 %v4682, %v4890
      %v4892 = vpop.f32.mrf.mxu0
      %v4893 = vadd.f32 %v4684, %v4892
      %4894 = vmatmul.bf16.gmra.mxu0 %v2909
      %v4895 = vpop.f32.mrf.mxu0
      %v4896 = vadd.f32 %v4687, %v4895
      %v4897 = vpop.f32.mrf.mxu0
      %v4898 = vadd.f32 %v4689, %v4897
      %4899 = vmatmul.bf16.gmra.mxu0 %v2910
      %v4900 = vpop.f32.mrf.mxu0
      %v4901 = vadd.f32 %v4692, %v4900
      %v4902 = vpop.f32.mrf.mxu0
      %v4903 = vadd.f32 %v4694, %v4902
      %4904 = vmatmul.bf16.gmra.mxu0 %v2911
      %v4905 = vpop.f32.mrf.mxu0
      %v4906 = vadd.f32 %v4697, %v4905
      %v4907 = vpop.f32.mrf.mxu0
      %v4908 = vadd.f32 %v4699, %v4907
      %4909 = vmatmul.bf16.gmra.mxu0 %v2912
      %v4910 = vpop.f32.mrf.mxu0
      %v4911 = vadd.f32 %v4702, %v4910
      %v4912 = vpop.f32.mrf.mxu0
      %v4913 = vadd.f32 %v4704, %v4912
      %4914 = vmatmul.bf16.gmra.mxu0 %v2913
      %v4915 = vpop.f32.mrf.mxu0
      %v4916 = vadd.f32 %v4707, %v4915
      %v4917 = vpop.f32.mrf.mxu0
      %v4918 = vadd.f32 %v4709, %v4917
      %4919 = vmatmul.bf16.gmra.mxu0 %v2914
      %v4920 = vpop.f32.mrf.mxu0
      %v4921 = vadd.f32 %v4712, %v4920
      %v4922 = vpop.f32.mrf.mxu0
      %v4923 = vadd.f32 %v4714, %v4922
      %4924 = vmatmul.bf16.gmra.mxu0 %v2915
      %v4925 = vpop.f32.mrf.mxu0
      %v4926 = vadd.f32 %v4717, %v4925
      %v4927 = vpop.f32.mrf.mxu0
      %v4928 = vadd.f32 %v4719, %v4927
      %4929 = vmatmul.bf16.gmra.mxu0 %v2916
      %v4930 = vpop.f32.mrf.mxu0
      %v4931 = vadd.f32 %v4722, %v4930
      %v4932 = vpop.f32.mrf.mxu0
      %v4933 = vadd.f32 %v4724, %v4932
      %4934 = vmatmul.bf16.gmra.mxu0 %v2917
      %v4935 = vpop.f32.mrf.mxu0
      %v4936 = vadd.f32 %v4727, %v4935
      %v4937 = vpop.f32.mrf.mxu0
      %v4938 = vadd.f32 %v4729, %v4937
      %4939 = vmatmul.bf16.gmra.mxu0 %v2918
      %v4940 = vpop.f32.mrf.mxu0
      %v4941 = vadd.f32 %v4732, %v4940
      %v4942 = vpop.f32.mrf.mxu0
      %v4943 = vadd.f32 %v4734, %v4942
      %4944 = vmatmul.bf16.gmra.mxu0 %v2919
      %v4945 = vpop.f32.mrf.mxu0
      %v4946 = vadd.f32 %v4737, %v4945
      %v4947 = vpop.f32.mrf.mxu0
      %v4948 = vadd.f32 %v4739, %v4947
      %4949 = vdwg.mxu0
      %4950 = vmatpush.bf16.msra.mxu0 %v4009
      %4951 = vmatpush.bf16.msra.mxu0 %v4008
      %4952 = vmatpush.bf16.msra.mxu0 %v4007
      %4953 = vmatpush.bf16.msra.mxu0 %v4006
      %4954 = vmatpush.bf16.msra.mxu0 %v4005
      %4955 = vmatpush.bf16.msra.mxu0 %v4004
      %4956 = vmatpush.bf16.msra.mxu0 %v4003
      %4957 = vmatpush.bf16.msra.mxu0 %v4002
      %4958 = vmatmul.bf16.gmra.mxu0 %v2974
      %v4959 = vpop.f32.mrf.mxu0
      %v4960 = vadd.f32 %v4751, %v4959
      %v4961 = vpop.f32.mrf.mxu0
      %v4962 = vadd.f32 %v4753, %v4961
      %4963 = vmatmul.bf16.gmra.mxu0 %v2982
      %v4964 = vpop.f32.mrf.mxu0
      %v4965 = vadd.f32 %v4756, %v4964
      %v4966 = vpop.f32.mrf.mxu0
      %v4967 = vadd.f32 %v4758, %v4966
      %4968 = vmatmul.bf16.gmra.mxu0 %v2990
      %v4969 = vpop.f32.mrf.mxu0
      %v4970 = vadd.f32 %v4761, %v4969
      %v4971 = vpop.f32.mrf.mxu0
      %v4972 = vadd.f32 %v4763, %v4971
      %4973 = vmatmul.bf16.gmra.mxu0 %v2998
      %v4974 = vpop.f32.mrf.mxu0
      %v4975 = vadd.f32 %v4766, %v4974
      %v4976 = vpop.f32.mrf.mxu0
      %v4977 = vadd.f32 %v4768, %v4976
      %4978 = vmatmul.bf16.gmra.mxu0 %v3006
      %v4979 = vpop.f32.mrf.mxu0
      %v4980 = vadd.f32 %v4771, %v4979
      %v4981 = vpop.f32.mrf.mxu0
      %v4982 = vadd.f32 %v4773, %v4981
      %4983 = vmatmul.bf16.gmra.mxu0 %v3014
      %v4984 = vpop.f32.mrf.mxu0
      %v4985 = vadd.f32 %v4776, %v4984
      %v4986 = vpop.f32.mrf.mxu0
      %v4987 = vadd.f32 %v4778, %v4986
      %4988 = vmatmul.bf16.gmra.mxu0 %v3022
      %v4989 = vpop.f32.mrf.mxu0
      %v4990 = vadd.f32 %v4781, %v4989
      %v4991 = vpop.f32.mrf.mxu0
      %v4992 = vadd.f32 %v4783, %v4991
      %4993 = vmatmul.bf16.gmra.mxu0 %v3030
      %v4994 = vpop.f32.mrf.mxu0
      %v4995 = vadd.f32 %v4786, %v4994
      %v4996 = vpop.f32.mrf.mxu0
      %v4997 = vadd.f32 %v4788, %v4996
      %4998 = vmatmul.bf16.gmra.mxu0 %v3038
      %v4999 = vpop.f32.mrf.mxu0
      %v5000 = vadd.f32 %v4791, %v4999
      %v5001 = vpop.f32.mrf.mxu0
      %v5002 = vadd.f32 %v4793, %v5001
      %5003 = vmatmul.bf16.gmra.mxu0 %v3046
      %v5004 = vpop.f32.mrf.mxu0
      %v5005 = vadd.f32 %v4796, %v5004
      %v5006 = vpop.f32.mrf.mxu0
      %v5007 = vadd.f32 %v4798, %v5006
      %5008 = vmatmul.bf16.gmra.mxu0 %v3054
      %v5009 = vpop.f32.mrf.mxu0
      %v5010 = vadd.f32 %v4801, %v5009
      %v5011 = vpop.f32.mrf.mxu0
      %v5012 = vadd.f32 %v4803, %v5011
      %5013 = vmatmul.bf16.gmra.mxu0 %v3062
      %v5014 = vpop.f32.mrf.mxu0
      %v5015 = vadd.f32 %v4806, %v5014
      %v5016 = vpop.f32.mrf.mxu0
      %v5017 = vadd.f32 %v4808, %v5016
      %5018 = vmatmul.bf16.gmra.mxu0 %v3070
      %v5019 = vpop.f32.mrf.mxu0
      %v5020 = vadd.f32 %v4811, %v5019
      %v5021 = vpop.f32.mrf.mxu0
      %v5022 = vadd.f32 %v4813, %v5021
      %5023 = vmatmul.bf16.gmra.mxu0 %v3078
      %v5024 = vpop.f32.mrf.mxu0
      %v5025 = vadd.f32 %v4816, %v5024
      %v5026 = vpop.f32.mrf.mxu0
      %v5027 = vadd.f32 %v4818, %v5026
      %5028 = vmatmul.bf16.gmra.mxu0 %v3086
      %v5029 = vpop.f32.mrf.mxu0
      %v5030 = vadd.f32 %v4821, %v5029
      %v5031 = vpop.f32.mrf.mxu0
      %v5032 = vadd.f32 %v4823, %v5031
      %5033 = vmatmul.bf16.gmra.mxu0 %v3094
      %v5034 = vpop.f32.mrf.mxu0
      %v5035 = vadd.f32 %v4826, %v5034
      %v5036 = vpop.f32.mrf.mxu0
      %v5037 = vadd.f32 %v4828, %v5036
      %5038 = vmatmul.bf16.gmra.mxu0 %v3102
      %v5039 = vpop.f32.mrf.mxu0
      %v5040 = vadd.f32 %v4831, %v5039
      %v5041 = vpop.f32.mrf.mxu0
      %v5042 = vadd.f32 %v4833, %v5041
      %5043 = vmatmul.bf16.gmra.mxu0 %v3110
      %v5044 = vpop.f32.mrf.mxu0
      %v5045 = vadd.f32 %v4836, %v5044
      %v5046 = vpop.f32.mrf.mxu0
      %v5047 = vadd.f32 %v4838, %v5046
      %5048 = vmatmul.bf16.gmra.mxu0 %v3118
      %v5049 = vpop.f32.mrf.mxu0
      %v5050 = vadd.f32 %v4841, %v5049
      %v5051 = vpop.f32.mrf.mxu0
      %v5052 = vadd.f32 %v4843, %v5051
      %5053 = vmatmul.bf16.gmra.mxu0 %v3126
      %v5054 = vpop.f32.mrf.mxu0
      %v5055 = vadd.f32 %v4846, %v5054
      %v5056 = vpop.f32.mrf.mxu0
      %v5057 = vadd.f32 %v4848, %v5056
      %5058 = vmatmul.bf16.gmra.mxu0 %v3134
      %v5059 = vpop.f32.mrf.mxu0
      %v5060 = vadd.f32 %v4851, %v5059
      %v5061 = vpop.f32.mrf.mxu0
      %v5062 = vadd.f32 %v4853, %v5061
      %5063 = vmatmul.bf16.gmra.mxu0 %v3142
      %v5064 = vpop.f32.mrf.mxu0
      %v5065 = vadd.f32 %v4856, %v5064
      %v5066 = vpop.f32.mrf.mxu0
      %v5067 = vadd.f32 %v4858, %v5066
      %5068 = vmatmul.bf16.gmra.mxu0 %v3150
      %v5069 = vpop.f32.mrf.mxu0
      %v5070 = vadd.f32 %v4861, %v5069
      %v5071 = vpop.f32.mrf.mxu0
      %v5072 = vadd.f32 %v4863, %v5071
      %5073 = vmatmul.bf16.gmra.mxu0 %v3158
      %v5074 = vpop.f32.mrf.mxu0
      %v5075 = vadd.f32 %v4866, %v5074
      %v5076 = vpop.f32.mrf.mxu0
      %v5077 = vadd.f32 %v4868, %v5076
      %5078 = vmatmul.bf16.gmra.mxu0 %v3166
      %v5079 = vpop.f32.mrf.mxu0
      %v5080 = vadd.f32 %v4871, %v5079
      %v5081 = vpop.f32.mrf.mxu0
      %v5082 = vadd.f32 %v4873, %v5081
      %5083 = vmatmul.bf16.gmra.mxu0 %v3174
      %v5084 = vpop.f32.mrf.mxu0
      %v5085 = vadd.f32 %v4876, %v5084
      %v5086 = vpop.f32.mrf.mxu0
      %v5087 = vadd.f32 %v4878, %v5086
      %5088 = vmatmul.bf16.gmra.mxu0 %v3182
      %v5089 = vpop.f32.mrf.mxu0
      %v5090 = vadd.f32 %v4881, %v5089
      %v5091 = vpop.f32.mrf.mxu0
      %v5092 = vadd.f32 %v4883, %v5091
      %5093 = vmatmul.bf16.gmra.mxu0 %v3190
      %v5094 = vpop.f32.mrf.mxu0
      %v5095 = vadd.f32 %v4886, %v5094
      %v5096 = vpop.f32.mrf.mxu0
      %v5097 = vadd.f32 %v4888, %v5096
      %5098 = vmatmul.bf16.gmra.mxu0 %v3198
      %v5099 = vpop.f32.mrf.mxu0
      %v5100 = vadd.f32 %v4891, %v5099
      %v5101 = vpop.f32.mrf.mxu0
      %v5102 = vadd.f32 %v4893, %v5101
      %5103 = vmatmul.bf16.gmra.mxu0 %v3206
      %v5104 = vpop.f32.mrf.mxu0
      %v5105 = vadd.f32 %v4896, %v5104
      %v5106 = vpop.f32.mrf.mxu0
      %v5107 = vadd.f32 %v4898, %v5106
      %5108 = vmatmul.bf16.gmra.mxu0 %v3214
      %v5109 = vpop.f32.mrf.mxu0
      %v5110 = vadd.f32 %v4901, %v5109
      %v5111 = vpop.f32.mrf.mxu0
      %v5112 = vadd.f32 %v4903, %v5111
      %5113 = vmatmul.bf16.gmra.mxu0 %v3222
      %v5114 = vpop.f32.mrf.mxu0
      %v5115 = vadd.f32 %v4906, %v5114
      %v5116 = vpop.f32.mrf.mxu0
      %v5117 = vadd.f32 %v4908, %v5116
      %5118 = vmatmul.bf16.gmra.mxu0 %v3230
      %v5119 = vpop.f32.mrf.mxu0
      %v5120 = vadd.f32 %v4911, %v5119
      %v5121 = vpop.f32.mrf.mxu0
      %v5122 = vadd.f32 %v4913, %v5121
      %5123 = vmatmul.bf16.gmra.mxu0 %v3238
      %v5124 = vpop.f32.mrf.mxu0
      %v5125 = vadd.f32 %v4916, %v5124
      %v5126 = vpop.f32.mrf.mxu0
      %v5127 = vadd.f32 %v4918, %v5126
      %5128 = vmatmul.bf16.gmra.mxu0 %v3246
      %v5129 = vpop.f32.mrf.mxu0
      %v5130 = vadd.f32 %v4921, %v5129
      %v5131 = vpop.f32.mrf.mxu0
      %v5132 = vadd.f32 %v4923, %v5131
      %5133 = vmatmul.bf16.gmra.mxu0 %v3254
      %v5134 = vpop.f32.mrf.mxu0
      %v5135 = vadd.f32 %v4926, %v5134
      %v5136 = vpop.f32.mrf.mxu0
      %v5137 = vadd.f32 %v4928, %v5136
      %5138 = vmatmul.bf16.gmra.mxu0 %v3262
      %v5139 = vpop.f32.mrf.mxu0
      %v5140 = vadd.f32 %v4931, %v5139
      %v5141 = vpop.f32.mrf.mxu0
      %v5142 = vadd.f32 %v4933, %v5141
      %5143 = vmatmul.bf16.gmra.mxu0 %v3270
      %v5144 = vpop.f32.mrf.mxu0
      %v5145 = vadd.f32 %v4936, %v5144
      %v5146 = vpop.f32.mrf.mxu0
      %v5147 = vadd.f32 %v4938, %v5146
      %5148 = vmatmul.bf16.gmra.mxu0 %v3278
      %v5149 = vpop.f32.mrf.mxu0
      %v5150 = vadd.f32 %v4941, %v5149
      %v5151 = vpop.f32.mrf.mxu0
      %v5152 = vadd.f32 %v4943, %v5151
      %5153 = vmatmul.bf16.gmra.mxu0 %v3286
      %v5154 = vpop.f32.mrf.mxu0
      %v5155 = vadd.f32 %v4946, %v5154
      %v5156 = vpop.f32.mrf.mxu0
      %v5157 = vadd.f32 %v4948, %v5156
      %5158 = vdwg.mxu0
      %5159 = vmatpush.bf16.msra.mxu0 %v4017
      %5160 = vmatpush.bf16.msra.mxu0 %v4016
      %5161 = vmatpush.bf16.msra.mxu0 %v4015
      %5162 = vmatpush.bf16.msra.mxu0 %v4014
      %5163 = vmatpush.bf16.msra.mxu0 %v4013
      %5164 = vmatpush.bf16.msra.mxu0 %v4012
      %5165 = vmatpush.bf16.msra.mxu0 %v4011
      %5166 = vmatpush.bf16.msra.mxu0 %v4010
      %5167 = vmatmul.bf16.gmra.mxu0 %v3329
      %v5168 = vpop.f32.mrf.mxu0
      %v5169 = vadd.f32 %v4960, %v5168
      %v5170 = vpop.f32.mrf.mxu0
      %v5171 = vadd.f32 %v4962, %v5170
      %5172 = vmatmul.bf16.gmra.mxu0 %v3331
      %v5173 = vpop.f32.mrf.mxu0
      %v5174 = vadd.f32 %v4965, %v5173
      %v5175 = vpop.f32.mrf.mxu0
      %v5176 = vadd.f32 %v4967, %v5175
      %5177 = vmatmul.bf16.gmra.mxu0 %v3333
      %v5178 = vpop.f32.mrf.mxu0
      %v5179 = vadd.f32 %v4970, %v5178
      %v5180 = vpop.f32.mrf.mxu0
      %v5181 = vadd.f32 %v4972, %v5180
      %5182 = vmatmul.bf16.gmra.mxu0 %v3335
      %v5183 = vpop.f32.mrf.mxu0
      %v5184 = vadd.f32 %v4975, %v5183
      %v5185 = vpop.f32.mrf.mxu0
      %v5186 = vadd.f32 %v4977, %v5185
      %5187 = vmatmul.bf16.gmra.mxu0 %v3337
      %v5188 = vpop.f32.mrf.mxu0
      %v5189 = vadd.f32 %v4980, %v5188
      %v5190 = vpop.f32.mrf.mxu0
      %v5191 = vadd.f32 %v4982, %v5190
      %5192 = vmatmul.bf16.gmra.mxu0 %v3339
      %v5193 = vpop.f32.mrf.mxu0
      %v5194 = vadd.f32 %v4985, %v5193
      %v5195 = vpop.f32.mrf.mxu0
      %v5196 = vadd.f32 %v4987, %v5195
      %5197 = vmatmul.bf16.gmra.mxu0 %v3341
      %v5198 = vpop.f32.mrf.mxu0
      %v5199 = vadd.f32 %v4990, %v5198
      %v5200 = vpop.f32.mrf.mxu0
      %v5201 = vadd.f32 %v4992, %v5200
      %5202 = vmatmul.bf16.gmra.mxu0 %v3343
      %v5203 = vpop.f32.mrf.mxu0
      %v5204 = vadd.f32 %v4995, %v5203
      %v5205 = vpop.f32.mrf.mxu0
      %v5206 = vadd.f32 %v4997, %v5205
      %5207 = vmatmul.bf16.gmra.mxu0 %v3345
      %v5208 = vpop.f32.mrf.mxu0
      %v5209 = vadd.f32 %v5000, %v5208
      %v5210 = vpop.f32.mrf.mxu0
      %v5211 = vadd.f32 %v5002, %v5210
      %5212 = vmatmul.bf16.gmra.mxu0 %v3347
      %v5213 = vpop.f32.mrf.mxu0
      %v5214 = vadd.f32 %v5005, %v5213
      %v5215 = vpop.f32.mrf.mxu0
      %v5216 = vadd.f32 %v5007, %v5215
      %5217 = vmatmul.bf16.gmra.mxu0 %v3349
      %v5218 = vpop.f32.mrf.mxu0
      %v5219 = vadd.f32 %v5010, %v5218
      %v5220 = vpop.f32.mrf.mxu0
      %v5221 = vadd.f32 %v5012, %v5220
      %5222 = vmatmul.bf16.gmra.mxu0 %v3351
      %v5223 = vpop.f32.mrf.mxu0
      %v5224 = vadd.f32 %v5015, %v5223
      %v5225 = vpop.f32.mrf.mxu0
      %v5226 = vadd.f32 %v5017, %v5225
      %5227 = vmatmul.bf16.gmra.mxu0 %v3353
      %v5228 = vpop.f32.mrf.mxu0
      %v5229 = vadd.f32 %v5020, %v5228
      %v5230 = vpop.f32.mrf.mxu0
      %v5231 = vadd.f32 %v5022, %v5230
      %5232 = vmatmul.bf16.gmra.mxu0 %v3355
      %v5233 = vpop.f32.mrf.mxu0
      %v5234 = vadd.f32 %v5025, %v5233
      %v5235 = vpop.f32.mrf.mxu0
      %v5236 = vadd.f32 %v5027, %v5235
      %5237 = vmatmul.bf16.gmra.mxu0 %v3357
      %v5238 = vpop.f32.mrf.mxu0
      %v5239 = vadd.f32 %v5030, %v5238
      %v5240 = vpop.f32.mrf.mxu0
      %v5241 = vadd.f32 %v5032, %v5240
      %5242 = vmatmul.bf16.gmra.mxu0 %v3359
      %v5243 = vpop.f32.mrf.mxu0
      %v5244 = vadd.f32 %v5035, %v5243
      %v5245 = vpop.f32.mrf.mxu0
      %v5246 = vadd.f32 %v5037, %v5245
      %5247 = vmatmul.bf16.gmra.mxu0 %v3361
      %v5248 = vpop.f32.mrf.mxu0
      %v5249 = vadd.f32 %v5040, %v5248
      %v5250 = vpop.f32.mrf.mxu0
      %v5251 = vadd.f32 %v5042, %v5250
      %5252 = vmatmul.bf16.gmra.mxu0 %v3363
      %v5253 = vpop.f32.mrf.mxu0
      %v5254 = vadd.f32 %v5045, %v5253
      %v5255 = vpop.f32.mrf.mxu0
      %v5256 = vadd.f32 %v5047, %v5255
      %5257 = vmatmul.bf16.gmra.mxu0 %v3365
      %v5258 = vpop.f32.mrf.mxu0
      %v5259 = vadd.f32 %v5050, %v5258
      %v5260 = vpop.f32.mrf.mxu0
      %v5261 = vadd.f32 %v5052, %v5260
      %5262 = vmatmul.bf16.gmra.mxu0 %v3367
      %v5263 = vpop.f32.mrf.mxu0
      %v5264 = vadd.f32 %v5055, %v5263
      %v5265 = vpop.f32.mrf.mxu0
      %v5266 = vadd.f32 %v5057, %v5265
      %5267 = vmatmul.bf16.gmra.mxu0 %v3369
      %v5268 = vpop.f32.mrf.mxu0
      %v5269 = vadd.f32 %v5060, %v5268
      %v5270 = vpop.f32.mrf.mxu0
      %v5271 = vadd.f32 %v5062, %v5270
      %5272 = vmatmul.bf16.gmra.mxu0 %v3371
      %v5273 = vpop.f32.mrf.mxu0
      %v5274 = vadd.f32 %v5065, %v5273
      %v5275 = vpop.f32.mrf.mxu0
      %v5276 = vadd.f32 %v5067, %v5275
      %5277 = vmatmul.bf16.gmra.mxu0 %v3373
      %v5278 = vpop.f32.mrf.mxu0
      %v5279 = vadd.f32 %v5070, %v5278
      %v5280 = vpop.f32.mrf.mxu0
      %v5281 = vadd.f32 %v5072, %v5280
      %5282 = vmatmul.bf16.gmra.mxu0 %v3375
      %v5283 = vpop.f32.mrf.mxu0
      %v5284 = vadd.f32 %v5075, %v5283
      %v5285 = vpop.f32.mrf.mxu0
      %v5286 = vadd.f32 %v5077, %v5285
      %5287 = vmatmul.bf16.gmra.mxu0 %v3377
      %v5288 = vpop.f32.mrf.mxu0
      %v5289 = vadd.f32 %v5080, %v5288
      %v5290 = vpop.f32.mrf.mxu0
      %v5291 = vadd.f32 %v5082, %v5290
      %5292 = vmatmul.bf16.gmra.mxu0 %v3379
      %v5293 = vpop.f32.mrf.mxu0
      %v5294 = vadd.f32 %v5085, %v5293
      %v5295 = vpop.f32.mrf.mxu0
      %v5296 = vadd.f32 %v5087, %v5295
      %5297 = vmatmul.bf16.gmra.mxu0 %v3381
      %v5298 = vpop.f32.mrf.mxu0
      %v5299 = vadd.f32 %v5090, %v5298
      %v5300 = vpop.f32.mrf.mxu0
      %v5301 = vadd.f32 %v5092, %v5300
      %5302 = vmatmul.bf16.gmra.mxu0 %v3383
      %v5303 = vpop.f32.mrf.mxu0
      %v5304 = vadd.f32 %v5095, %v5303
      %v5305 = vpop.f32.mrf.mxu0
      %v5306 = vadd.f32 %v5097, %v5305
      %5307 = vmatmul.bf16.gmra.mxu0 %v3385
      %v5308 = vpop.f32.mrf.mxu0
      %v5309 = vadd.f32 %v5100, %v5308
      %v5310 = vpop.f32.mrf.mxu0
      %v5311 = vadd.f32 %v5102, %v5310
      %5312 = vmatmul.bf16.gmra.mxu0 %v3387
      %v5313 = vpop.f32.mrf.mxu0
      %v5314 = vadd.f32 %v5105, %v5313
      %v5315 = vpop.f32.mrf.mxu0
      %v5316 = vadd.f32 %v5107, %v5315
      %5317 = vmatmul.bf16.gmra.mxu0 %v3389
      %v5318 = vpop.f32.mrf.mxu0
      %v5319 = vadd.f32 %v5110, %v5318
      %v5320 = vpop.f32.mrf.mxu0
      %v5321 = vadd.f32 %v5112, %v5320
      %5322 = vmatmul.bf16.gmra.mxu0 %v3391
      %v5323 = vpop.f32.mrf.mxu0
      %v5324 = vadd.f32 %v5115, %v5323
      %v5325 = vpop.f32.mrf.mxu0
      %v5326 = vadd.f32 %v5117, %v5325
      %5327 = vmatmul.bf16.gmra.mxu0 %v3393
      %v5328 = vpop.f32.mrf.mxu0
      %v5329 = vadd.f32 %v5120, %v5328
      %v5330 = vpop.f32.mrf.mxu0
      %v5331 = vadd.f32 %v5122, %v5330
      %5332 = vmatmul.bf16.gmra.mxu0 %v3395
      %v5333 = vpop.f32.mrf.mxu0
      %v5334 = vadd.f32 %v5125, %v5333
      %v5335 = vpop.f32.mrf.mxu0
      %v5336 = vadd.f32 %v5127, %v5335
      %5337 = vmatmul.bf16.gmra.mxu0 %v3397
      %v5338 = vpop.f32.mrf.mxu0
      %v5339 = vadd.f32 %v5130, %v5338
      %v5340 = vpop.f32.mrf.mxu0
      %v5341 = vadd.f32 %v5132, %v5340
      %5342 = vmatmul.bf16.gmra.mxu0 %v3399
      %v5343 = vpop.f32.mrf.mxu0
      %v5344 = vadd.f32 %v5135, %v5343
      %v5345 = vpop.f32.mrf.mxu0
      %v5346 = vadd.f32 %v5137, %v5345
      %5347 = vmatmul.bf16.gmra.mxu0 %v3401
      %v5348 = vpop.f32.mrf.mxu0
      %v5349 = vadd.f32 %v5140, %v5348
      %v5350 = vpop.f32.mrf.mxu0
      %v5351 = vadd.f32 %v5142, %v5350
      %5352 = vmatmul.bf16.gmra.mxu0 %v3403
      %v5353 = vpop.f32.mrf.mxu0
      %v5354 = vadd.f32 %v5145, %v5353
      %v5355 = vpop.f32.mrf.mxu0
      %v5356 = vadd.f32 %v5147, %v5355
      %5357 = vmatmul.bf16.gmra.mxu0 %v3405
      %v5358 = vpop.f32.mrf.mxu0
      %v5359 = vadd.f32 %v5150, %v5358
      %v5360 = vpop.f32.mrf.mxu0
      %v5361 = vadd.f32 %v5152, %v5360
      %5362 = vmatmul.bf16.gmra.mxu0 %v3407
      %v5363 = vpop.f32.mrf.mxu0
      %v5364 = vadd.f32 %v5155, %v5363
      %v5365 = vpop.f32.mrf.mxu0
      %v5366 = vadd.f32 %v5157, %v5365
      %5367 = vdwg.mxu0
      %5368 = vmatpush.bf16.msra.mxu0 %v4025
      %5369 = vmatpush.bf16.msra.mxu0 %v4024
      %5370 = vmatpush.bf16.msra.mxu0 %v4023
      %5371 = vmatpush.bf16.msra.mxu0 %v4022
      %5372 = vmatpush.bf16.msra.mxu0 %v4021
      %5373 = vmatpush.bf16.msra.mxu0 %v4020
      %5374 = vmatpush.bf16.msra.mxu0 %v4019
      %5375 = vmatpush.bf16.msra.mxu0 %v4018
      %5376 = vmatmul.bf16.gmra.mxu0 %v2307
      %v5377 = vpop.f32.mrf.mxu0
      %v5378 = vadd.f32 %v5169, %v5377
      %v5379 = vpop.f32.mrf.mxu0
      %v5380 = vadd.f32 %v5171, %v5379
      %5381 = vmatmul.bf16.gmra.mxu0 %v2308
      %v5382 = vpop.f32.mrf.mxu0
      %v5383 = vadd.f32 %v5174, %v5382
      %v5384 = vpop.f32.mrf.mxu0
      %v5385 = vadd.f32 %v5176, %v5384
      %5386 = vmatmul.bf16.gmra.mxu0 %v2309
      %v5387 = vpop.f32.mrf.mxu0
      %v5388 = vadd.f32 %v5179, %v5387
      %v5389 = vpop.f32.mrf.mxu0
      %v5390 = vadd.f32 %v5181, %v5389
      %5391 = vmatmul.bf16.gmra.mxu0 %v2310
      %v5392 = vpop.f32.mrf.mxu0
      %v5393 = vadd.f32 %v5184, %v5392
      %v5394 = vpop.f32.mrf.mxu0
      %v5395 = vadd.f32 %v5186, %v5394
      %5396 = vmatmul.bf16.gmra.mxu0 %v2311
      %v5397 = vpop.f32.mrf.mxu0
      %v5398 = vadd.f32 %v5189, %v5397
      %v5399 = vpop.f32.mrf.mxu0
      %v5400 = vadd.f32 %v5191, %v5399
      %5401 = vmatmul.bf16.gmra.mxu0 %v2312
      %v5402 = vpop.f32.mrf.mxu0
      %v5403 = vadd.f32 %v5194, %v5402
      %v5404 = vpop.f32.mrf.mxu0
      %v5405 = vadd.f32 %v5196, %v5404
      %5406 = vmatmul.bf16.gmra.mxu0 %v2313
      %v5407 = vpop.f32.mrf.mxu0
      %v5408 = vadd.f32 %v5199, %v5407
      %v5409 = vpop.f32.mrf.mxu0
      %v5410 = vadd.f32 %v5201, %v5409
      %5411 = vmatmul.bf16.gmra.mxu0 %v2314
      %v5412 = vpop.f32.mrf.mxu0
      %v5413 = vadd.f32 %v5204, %v5412
      %v5414 = vpop.f32.mrf.mxu0
      %v5415 = vadd.f32 %v5206, %v5414
      %5416 = vmatmul.bf16.gmra.mxu0 %v2315
      %v5417 = vpop.f32.mrf.mxu0
      %v5418 = vadd.f32 %v5209, %v5417
      %v5419 = vpop.f32.mrf.mxu0
      %v5420 = vadd.f32 %v5211, %v5419
      %5421 = vmatmul.bf16.gmra.mxu0 %v2316
      %v5422 = vpop.f32.mrf.mxu0
      %v5423 = vadd.f32 %v5214, %v5422
      %v5424 = vpop.f32.mrf.mxu0
      %v5425 = vadd.f32 %v5216, %v5424
      %5426 = vmatmul.bf16.gmra.mxu0 %v2317
      %v5427 = vpop.f32.mrf.mxu0
      %v5428 = vadd.f32 %v5219, %v5427
      %v5429 = vpop.f32.mrf.mxu0
      %v5430 = vadd.f32 %v5221, %v5429
      %5431 = vmatmul.bf16.gmra.mxu0 %v2318
      %v5432 = vpop.f32.mrf.mxu0
      %v5433 = vadd.f32 %v5224, %v5432
      %v5434 = vpop.f32.mrf.mxu0
      %v5435 = vadd.f32 %v5226, %v5434
      %5436 = vmatmul.bf16.gmra.mxu0 %v2319
      %v5437 = vpop.f32.mrf.mxu0
      %v5438 = vadd.f32 %v5229, %v5437
      %v5439 = vpop.f32.mrf.mxu0
      %v5440 = vadd.f32 %v5231, %v5439
      %5441 = vmatmul.bf16.gmra.mxu0 %v2320
      %v5442 = vpop.f32.mrf.mxu0
      %v5443 = vadd.f32 %v5234, %v5442
      %v5444 = vpop.f32.mrf.mxu0
      %v5445 = vadd.f32 %v5236, %v5444
      %5446 = vmatmul.bf16.gmra.mxu0 %v2321
      %v5447 = vpop.f32.mrf.mxu0
      %v5448 = vadd.f32 %v5239, %v5447
      %v5449 = vpop.f32.mrf.mxu0
      %v5450 = vadd.f32 %v5241, %v5449
      %5451 = vmatmul.bf16.gmra.mxu0 %v2322
      %v5452 = vpop.f32.mrf.mxu0
      %v5453 = vadd.f32 %v5244, %v5452
      %v5454 = vpop.f32.mrf.mxu0
      %v5455 = vadd.f32 %v5246, %v5454
      %5456 = vmatmul.bf16.gmra.mxu0 %v2323
      %v5457 = vpop.f32.mrf.mxu0
      %v5458 = vadd.f32 %v5249, %v5457
      %v5459 = vpop.f32.mrf.mxu0
      %v5460 = vadd.f32 %v5251, %v5459
      %5461 = vmatmul.bf16.gmra.mxu0 %v2324
      %v5462 = vpop.f32.mrf.mxu0
      %v5463 = vadd.f32 %v5254, %v5462
      %v5464 = vpop.f32.mrf.mxu0
      %v5465 = vadd.f32 %v5256, %v5464
      %5466 = vmatmul.bf16.gmra.mxu0 %v2325
      %v5467 = vpop.f32.mrf.mxu0
      %v5468 = vadd.f32 %v5259, %v5467
      %v5469 = vpop.f32.mrf.mxu0
      %v5470 = vadd.f32 %v5261, %v5469
      %5471 = vmatmul.bf16.gmra.mxu0 %v2326
      %v5472 = vpop.f32.mrf.mxu0
      %v5473 = vadd.f32 %v5264, %v5472
      %v5474 = vpop.f32.mrf.mxu0
      %v5475 = vadd.f32 %v5266, %v5474
      %5476 = vmatmul.bf16.gmra.mxu0 %v2327
      %v5477 = vpop.f32.mrf.mxu0
      %v5478 = vadd.f32 %v5269, %v5477
      %v5479 = vpop.f32.mrf.mxu0
      %v5480 = vadd.f32 %v5271, %v5479
      %5481 = vmatmul.bf16.gmra.mxu0 %v2328
      %v5482 = vpop.f32.mrf.mxu0
      %v5483 = vadd.f32 %v5274, %v5482
      %v5484 = vpop.f32.mrf.mxu0
      %v5485 = vadd.f32 %v5276, %v5484
      %5486 = vmatmul.bf16.gmra.mxu0 %v2329
      %v5487 = vpop.f32.mrf.mxu0
      %v5488 = vadd.f32 %v5279, %v5487
      %v5489 = vpop.f32.mrf.mxu0
      %v5490 = vadd.f32 %v5281, %v5489
      %5491 = vmatmul.bf16.gmra.mxu0 %v2330
      %v5492 = vpop.f32.mrf.mxu0
      %v5493 = vadd.f32 %v5284, %v5492
      %v5494 = vpop.f32.mrf.mxu0
      %v5495 = vadd.f32 %v5286, %v5494
      %5496 = vmatmul.bf16.gmra.mxu0 %v2331
      %v5497 = vpop.f32.mrf.mxu0
      %v5498 = vadd.f32 %v5289, %v5497
      %v5499 = vpop.f32.mrf.mxu0
      %v5500 = vadd.f32 %v5291, %v5499
      %5501 = vmatmul.bf16.gmra.mxu0 %v2332
      %v5502 = vpop.f32.mrf.mxu0
      %v5503 = vadd.f32 %v5294, %v5502
      %v5504 = vpop.f32.mrf.mxu0
      %v5505 = vadd.f32 %v5296, %v5504
      %5506 = vmatmul.bf16.gmra.mxu0 %v2333
      %v5507 = vpop.f32.mrf.mxu0
      %v5508 = vadd.f32 %v5299, %v5507
      %v5509 = vpop.f32.mrf.mxu0
      %v5510 = vadd.f32 %v5301, %v5509
      %5511 = vmatmul.bf16.gmra.mxu0 %v2334
      %v5512 = vpop.f32.mrf.mxu0
      %v5513 = vadd.f32 %v5304, %v5512
      %v5514 = vpop.f32.mrf.mxu0
      %v5515 = vadd.f32 %v5306, %v5514
      %5516 = vmatmul.bf16.gmra.mxu0 %v2335
      %v5517 = vpop.f32.mrf.mxu0
      %v5518 = vadd.f32 %v5309, %v5517
      %v5519 = vpop.f32.mrf.mxu0
      %v5520 = vadd.f32 %v5311, %v5519
      %5521 = vmatmul.bf16.gmra.mxu0 %v2336
      %v5522 = vpop.f32.mrf.mxu0
      %v5523 = vadd.f32 %v5314, %v5522
      %v5524 = vpop.f32.mrf.mxu0
      %v5525 = vadd.f32 %v5316, %v5524
      %5526 = vmatmul.bf16.gmra.mxu0 %v2337
      %v5527 = vpop.f32.mrf.mxu0
      %v5528 = vadd.f32 %v5319, %v5527
      %v5529 = vpop.f32.mrf.mxu0
      %v5530 = vadd.f32 %v5321, %v5529
      %5531 = vmatmul.bf16.gmra.mxu0 %v2338
      %v5532 = vpop.f32.mrf.mxu0
      %v5533 = vadd.f32 %v5324, %v5532
      %v5534 = vpop.f32.mrf.mxu0
      %v5535 = vadd.f32 %v5326, %v5534
      %5536 = vmatmul.bf16.gmra.mxu0 %v2339
      %v5537 = vpop.f32.mrf.mxu0
      %v5538 = vadd.f32 %v5329, %v5537
      %v5539 = vpop.f32.mrf.mxu0
      %v5540 = vadd.f32 %v5331, %v5539
      %5541 = vmatmul.bf16.gmra.mxu0 %v2340
      %v5542 = vpop.f32.mrf.mxu0
      %v5543 = vadd.f32 %v5334, %v5542
      %v5544 = vpop.f32.mrf.mxu0
      %v5545 = vadd.f32 %v5336, %v5544
      %5546 = vmatmul.bf16.gmra.mxu0 %v2341
      %v5547 = vpop.f32.mrf.mxu0
      %v5548 = vadd.f32 %v5339, %v5547
      %v5549 = vpop.f32.mrf.mxu0
      %v5550 = vadd.f32 %v5341, %v5549
      %5551 = vmatmul.bf16.gmra.mxu0 %v3456
      %v5552 = vpop.f32.mrf.mxu0
      %v5553 = vadd.f32 %v5344, %v5552
      %v5554 = vpop.f32.mrf.mxu0
      %v5555 = vadd.f32 %v5346, %v5554
      %5556 = vmatmul.bf16.gmra.mxu0 %v3457
      %v5557 = vpop.f32.mrf.mxu0
      %v5558 = vadd.f32 %v5349, %v5557
      %v5559 = vpop.f32.mrf.mxu0
      %v5560 = vadd.f32 %v5351, %v5559
      %5561 = vmatmul.bf16.gmra.mxu0 %v3458
      %v5562 = vpop.f32.mrf.mxu0
      %v5563 = vadd.f32 %v5354, %v5562
      %v5564 = vpop.f32.mrf.mxu0
      %v5565 = vadd.f32 %v5356, %v5564
      %5566 = vmatmul.bf16.gmra.mxu0 %v3459
      %v5567 = vpop.f32.mrf.mxu0
      %v5568 = vadd.f32 %v5359, %v5567
      %v5569 = vpop.f32.mrf.mxu0
      %v5570 = vadd.f32 %v5361, %v5569
      %5571 = vmatmul.bf16.gmra.mxu0 %v3460
      %v5572 = vpop.f32.mrf.mxu0
      %v5573 = vadd.f32 %v5364, %v5572
      %v5574 = vpop.f32.mrf.mxu0
      %v5575 = vadd.f32 %v5366, %v5574
      %5576 = vdwg.mxu0
      %5577 = vmatpush.bf16.msra.mxu0 %v4033
      %5578 = vmatpush.bf16.msra.mxu0 %v4032
      %5579 = vmatpush.bf16.msra.mxu0 %v4031
      %5580 = vmatpush.bf16.msra.mxu0 %v4030
      %5581 = vmatpush.bf16.msra.mxu0 %v4029
      %5582 = vmatpush.bf16.msra.mxu0 %v4028
      %5583 = vmatpush.bf16.msra.mxu0 %v4027
      %5584 = vmatpush.bf16.msra.mxu0 %v4026
      %5585 = vmatmul.bf16.gmra.mxu0 %v2437
      %v5586 = vpop.f32.mrf.mxu0
      %v5587 = vadd.f32 %v5378, %v5586
      %v5588 = vpop.f32.mrf.mxu0
      %v5589 = vadd.f32 %v5380, %v5588
      %5590 = vmatmul.bf16.gmra.mxu0 %v2445
      %v5591 = vpop.f32.mrf.mxu0
      %v5592 = vadd.f32 %v5383, %v5591
      %v5593 = vpop.f32.mrf.mxu0
      %v5594 = vadd.f32 %v5385, %v5593
      %5595 = vmatmul.bf16.gmra.mxu0 %v2453
      %v5596 = vpop.f32.mrf.mxu0
      %v5597 = vadd.f32 %v5388, %v5596
      %v5598 = vpop.f32.mrf.mxu0
      %v5599 = vadd.f32 %v5390, %v5598
      %5600 = vmatmul.bf16.gmra.mxu0 %v2461
      %v5601 = vpop.f32.mrf.mxu0
      %v5602 = vadd.f32 %v5393, %v5601
      %v5603 = vpop.f32.mrf.mxu0
      %v5604 = vadd.f32 %v5395, %v5603
      %5605 = vmatmul.bf16.gmra.mxu0 %v2469
      %v5606 = vpop.f32.mrf.mxu0
      %v5607 = vadd.f32 %v5398, %v5606
      %v5608 = vpop.f32.mrf.mxu0
      %v5609 = vadd.f32 %v5400, %v5608
      %5610 = vmatmul.bf16.gmra.mxu0 %v2477
      %v5611 = vpop.f32.mrf.mxu0
      %v5612 = vadd.f32 %v5403, %v5611
      %v5613 = vpop.f32.mrf.mxu0
      %v5614 = vadd.f32 %v5405, %v5613
      %5615 = vmatmul.bf16.gmra.mxu0 %v2485
      %v5616 = vpop.f32.mrf.mxu0
      %v5617 = vadd.f32 %v5408, %v5616
      %v5618 = vpop.f32.mrf.mxu0
      %v5619 = vadd.f32 %v5410, %v5618
      %5620 = vmatmul.bf16.gmra.mxu0 %v2493
      %v5621 = vpop.f32.mrf.mxu0
      %v5622 = vadd.f32 %v5413, %v5621
      %v5623 = vpop.f32.mrf.mxu0
      %v5624 = vadd.f32 %v5415, %v5623
      %5625 = vmatmul.bf16.gmra.mxu0 %v2501
      %v5626 = vpop.f32.mrf.mxu0
      %v5627 = vadd.f32 %v5418, %v5626
      %v5628 = vpop.f32.mrf.mxu0
      %v5629 = vadd.f32 %v5420, %v5628
      %5630 = vmatmul.bf16.gmra.mxu0 %v2509
      %v5631 = vpop.f32.mrf.mxu0
      %v5632 = vadd.f32 %v5423, %v5631
      %v5633 = vpop.f32.mrf.mxu0
      %v5634 = vadd.f32 %v5425, %v5633
      %5635 = vmatmul.bf16.gmra.mxu0 %v2517
      %v5636 = vpop.f32.mrf.mxu0
      %v5637 = vadd.f32 %v5428, %v5636
      %v5638 = vpop.f32.mrf.mxu0
      %v5639 = vadd.f32 %v5430, %v5638
      %5640 = vmatmul.bf16.gmra.mxu0 %v2525
      %v5641 = vpop.f32.mrf.mxu0
      %v5642 = vadd.f32 %v5433, %v5641
      %v5643 = vpop.f32.mrf.mxu0
      %v5644 = vadd.f32 %v5435, %v5643
      %5645 = vmatmul.bf16.gmra.mxu0 %v2533
      %v5646 = vpop.f32.mrf.mxu0
      %v5647 = vadd.f32 %v5438, %v5646
      %v5648 = vpop.f32.mrf.mxu0
      %v5649 = vadd.f32 %v5440, %v5648
      %5650 = vmatmul.bf16.gmra.mxu0 %v2541
      %v5651 = vpop.f32.mrf.mxu0
      %v5652 = vadd.f32 %v5443, %v5651
      %v5653 = vpop.f32.mrf.mxu0
      %v5654 = vadd.f32 %v5445, %v5653
      %5655 = vmatmul.bf16.gmra.mxu0 %v2549
      %v5656 = vpop.f32.mrf.mxu0
      %v5657 = vadd.f32 %v5448, %v5656
      %v5658 = vpop.f32.mrf.mxu0
      %v5659 = vadd.f32 %v5450, %v5658
      %5660 = vmatmul.bf16.gmra.mxu0 %v2557
      %v5661 = vpop.f32.mrf.mxu0
      %v5662 = vadd.f32 %v5453, %v5661
      %v5663 = vpop.f32.mrf.mxu0
      %v5664 = vadd.f32 %v5455, %v5663
      %5665 = vmatmul.bf16.gmra.mxu0 %v2565
      %v5666 = vpop.f32.mrf.mxu0
      %v5667 = vadd.f32 %v5458, %v5666
      %v5668 = vpop.f32.mrf.mxu0
      %v5669 = vadd.f32 %v5460, %v5668
      %5670 = vmatmul.bf16.gmra.mxu0 %v2573
      %v5671 = vpop.f32.mrf.mxu0
      %v5672 = vadd.f32 %v5463, %v5671
      %v5673 = vpop.f32.mrf.mxu0
      %v5674 = vadd.f32 %v5465, %v5673
      %5675 = vmatmul.bf16.gmra.mxu0 %v2581
      %v5676 = vpop.f32.mrf.mxu0
      %v5677 = vadd.f32 %v5468, %v5676
      %v5678 = vpop.f32.mrf.mxu0
      %v5679 = vadd.f32 %v5470, %v5678
      %5680 = vmatmul.bf16.gmra.mxu0 %v2589
      %v5681 = vpop.f32.mrf.mxu0
      %v5682 = vadd.f32 %v5473, %v5681
      %v5683 = vpop.f32.mrf.mxu0
      %v5684 = vadd.f32 %v5475, %v5683
      %5685 = vmatmul.bf16.gmra.mxu0 %v2597
      %v5686 = vpop.f32.mrf.mxu0
      %v5687 = vadd.f32 %v5478, %v5686
      %v5688 = vpop.f32.mrf.mxu0
      %v5689 = vadd.f32 %v5480, %v5688
      %5690 = vmatmul.bf16.gmra.mxu0 %v2605
      %v5691 = vpop.f32.mrf.mxu0
      %v5692 = vadd.f32 %v5483, %v5691
      %v5693 = vpop.f32.mrf.mxu0
      %v5694 = vadd.f32 %v5485, %v5693
      %5695 = vmatmul.bf16.gmra.mxu0 %v2613
      %v5696 = vpop.f32.mrf.mxu0
      %v5697 = vadd.f32 %v5488, %v5696
      %v5698 = vpop.f32.mrf.mxu0
      %v5699 = vadd.f32 %v5490, %v5698
      %5700 = vmatmul.bf16.gmra.mxu0 %v2621
      %v5701 = vpop.f32.mrf.mxu0
      %v5702 = vadd.f32 %v5493, %v5701
      %v5703 = vpop.f32.mrf.mxu0
      %v5704 = vadd.f32 %v5495, %v5703
      %5705 = vmatmul.bf16.gmra.mxu0 %v2629
      %v5706 = vpop.f32.mrf.mxu0
      %v5707 = vadd.f32 %v5498, %v5706
      %v5708 = vpop.f32.mrf.mxu0
      %v5709 = vadd.f32 %v5500, %v5708
      %5710 = vmatmul.bf16.gmra.mxu0 %v2637
      %v5711 = vpop.f32.mrf.mxu0
      %v5712 = vadd.f32 %v5503, %v5711
      %v5713 = vpop.f32.mrf.mxu0
      %v5714 = vadd.f32 %v5505, %v5713
      %5715 = vmatmul.bf16.gmra.mxu0 %v2645
      %v5716 = vpop.f32.mrf.mxu0
      %v5717 = vadd.f32 %v5508, %v5716
      %v5718 = vpop.f32.mrf.mxu0
      %v5719 = vadd.f32 %v5510, %v5718
      %5720 = vmatmul.bf16.gmra.mxu0 %v2653
      %v5721 = vpop.f32.mrf.mxu0
      %v5722 = vadd.f32 %v5513, %v5721
      %v5723 = vpop.f32.mrf.mxu0
      %v5724 = vadd.f32 %v5515, %v5723
      %5725 = vmatmul.bf16.gmra.mxu0 %v2661
      %v5726 = vpop.f32.mrf.mxu0
      %v5727 = vadd.f32 %v5518, %v5726
      %v5728 = vpop.f32.mrf.mxu0
      %v5729 = vadd.f32 %v5520, %v5728
      %5730 = vmatmul.bf16.gmra.mxu0 %v2669
      %v5731 = vpop.f32.mrf.mxu0
      %v5732 = vadd.f32 %v5523, %v5731
      %v5733 = vpop.f32.mrf.mxu0
      %v5734 = vadd.f32 %v5525, %v5733
      %5735 = vmatmul.bf16.gmra.mxu0 %v2677
      %v5736 = vpop.f32.mrf.mxu0
      %v5737 = vadd.f32 %v5528, %v5736
      %v5738 = vpop.f32.mrf.mxu0
      %v5739 = vadd.f32 %v5530, %v5738
      %5740 = vmatmul.bf16.gmra.mxu0 %v2685
      %v5741 = vpop.f32.mrf.mxu0
      %v5742 = vadd.f32 %v5533, %v5741
      %v5743 = vpop.f32.mrf.mxu0
      %v5744 = vadd.f32 %v5535, %v5743
      %5745 = vmatmul.bf16.gmra.mxu0 %v2693
      %v5746 = vpop.f32.mrf.mxu0
      %v5747 = vadd.f32 %v5538, %v5746
      %v5748 = vpop.f32.mrf.mxu0
      %v5749 = vadd.f32 %v5540, %v5748
      %5750 = vmatmul.bf16.gmra.mxu0 %v2701
      %v5751 = vpop.f32.mrf.mxu0
      %v5752 = vadd.f32 %v5543, %v5751
      %v5753 = vpop.f32.mrf.mxu0
      %v5754 = vadd.f32 %v5545, %v5753
      %5755 = vmatmul.bf16.gmra.mxu0 %v3473
      %v5756 = vpop.f32.mrf.mxu0
      %v5757 = vadd.f32 %v5548, %v5756
      %v5758 = vpop.f32.mrf.mxu0
      %v5759 = vadd.f32 %v5550, %v5758
      %5760 = vmatmul.bf16.gmra.mxu0 %v3481
      %v5761 = vpop.f32.mrf.mxu0
      %v5762 = vadd.f32 %v5553, %v5761
      %v5763 = vpop.f32.mrf.mxu0
      %v5764 = vadd.f32 %v5555, %v5763
      %5765 = vmatmul.bf16.gmra.mxu0 %v3489
      %v5766 = vpop.f32.mrf.mxu0
      %v5767 = vadd.f32 %v5558, %v5766
      %v5768 = vpop.f32.mrf.mxu0
      %v5769 = vadd.f32 %v5560, %v5768
      %5770 = vmatmul.bf16.gmra.mxu0 %v3497
      %v5771 = vpop.f32.mrf.mxu0
      %v5772 = vadd.f32 %v5563, %v5771
      %v5773 = vpop.f32.mrf.mxu0
      %v5774 = vadd.f32 %v5565, %v5773
      %5775 = vmatmul.bf16.gmra.mxu0 %v3505
      %v5776 = vpop.f32.mrf.mxu0
      %v5777 = vadd.f32 %v5568, %v5776
      %v5778 = vpop.f32.mrf.mxu0
      %v5779 = vadd.f32 %v5570, %v5778
      %5780 = vmatmul.bf16.gmra.mxu0 %v3513
      %v5781 = vpop.f32.mrf.mxu0
      %v5782 = vadd.f32 %v5573, %v5781
      %v5783 = vpop.f32.mrf.mxu0
      %v5784 = vadd.f32 %v5575, %v5783
      %5785 = vdwg.mxu0
      %5786 = vmatpush.bf16.msra.mxu0 %v4041
      %5787 = vmatpush.bf16.msra.mxu0 %v4040
      %5788 = vmatpush.bf16.msra.mxu0 %v4039
      %5789 = vmatpush.bf16.msra.mxu0 %v4038
      %5790 = vmatpush.bf16.msra.mxu0 %v4037
      %5791 = vmatpush.bf16.msra.mxu0 %v4036
      %5792 = vmatpush.bf16.msra.mxu0 %v4035
      %5793 = vmatpush.bf16.msra.mxu0 %v4034
      %5794 = vmatmul.bf16.gmra.mxu0 %v2763
      %v5795 = vpop.f32.mrf.mxu0
      %v5796 = vadd.f32 %v5587, %v5795
      %v5797 = vpop.f32.mrf.mxu0
      %v5798 = vadd.f32 %v5589, %v5797
      %5799 = vmatmul.bf16.gmra.mxu0 %v2765
      %v5800 = vpop.f32.mrf.mxu0
      %v5801 = vadd.f32 %v5592, %v5800
      %v5802 = vpop.f32.mrf.mxu0
      %v5803 = vadd.f32 %v5594, %v5802
      %5804 = vmatmul.bf16.gmra.mxu0 %v2767
      %v5805 = vpop.f32.mrf.mxu0
      %v5806 = vadd.f32 %v5597, %v5805
      %v5807 = vpop.f32.mrf.mxu0
      %v5808 = vadd.f32 %v5599, %v5807
      %5809 = vmatmul.bf16.gmra.mxu0 %v2769
      %v5810 = vpop.f32.mrf.mxu0
      %v5811 = vadd.f32 %v5602, %v5810
      %v5812 = vpop.f32.mrf.mxu0
      %v5813 = vadd.f32 %v5604, %v5812
      %5814 = vmatmul.bf16.gmra.mxu0 %v2771
      %v5815 = vpop.f32.mrf.mxu0
      %v5816 = vadd.f32 %v5607, %v5815
      %v5817 = vpop.f32.mrf.mxu0
      %v5818 = vadd.f32 %v5609, %v5817
      %5819 = vmatmul.bf16.gmra.mxu0 %v2773
      %v5820 = vpop.f32.mrf.mxu0
      %v5821 = vadd.f32 %v5612, %v5820
      %v5822 = vpop.f32.mrf.mxu0
      %v5823 = vadd.f32 %v5614, %v5822
      %5824 = vmatmul.bf16.gmra.mxu0 %v2775
      %v5825 = vpop.f32.mrf.mxu0
      %v5826 = vadd.f32 %v5617, %v5825
      %v5827 = vpop.f32.mrf.mxu0
      %v5828 = vadd.f32 %v5619, %v5827
      %5829 = vmatmul.bf16.gmra.mxu0 %v2777
      %v5830 = vpop.f32.mrf.mxu0
      %v5831 = vadd.f32 %v5622, %v5830
      %v5832 = vpop.f32.mrf.mxu0
      %v5833 = vadd.f32 %v5624, %v5832
      %5834 = vmatmul.bf16.gmra.mxu0 %v2779
      %v5835 = vpop.f32.mrf.mxu0
      %v5836 = vadd.f32 %v5627, %v5835
      %v5837 = vpop.f32.mrf.mxu0
      %v5838 = vadd.f32 %v5629, %v5837
      %5839 = vmatmul.bf16.gmra.mxu0 %v2781
      %v5840 = vpop.f32.mrf.mxu0
      %v5841 = vadd.f32 %v5632, %v5840
      %v5842 = vpop.f32.mrf.mxu0
      %v5843 = vadd.f32 %v5634, %v5842
      %5844 = vmatmul.bf16.gmra.mxu0 %v2783
      %v5845 = vpop.f32.mrf.mxu0
      %v5846 = vadd.f32 %v5637, %v5845
      %v5847 = vpop.f32.mrf.mxu0
      %v5848 = vadd.f32 %v5639, %v5847
      %5849 = vmatmul.bf16.gmra.mxu0 %v2785
      %v5850 = vpop.f32.mrf.mxu0
      %v5851 = vadd.f32 %v5642, %v5850
      %v5852 = vpop.f32.mrf.mxu0
      %v5853 = vadd.f32 %v5644, %v5852
      %5854 = vmatmul.bf16.gmra.mxu0 %v2787
      %v5855 = vpop.f32.mrf.mxu0
      %v5856 = vadd.f32 %v5647, %v5855
      %v5857 = vpop.f32.mrf.mxu0
      %v5858 = vadd.f32 %v5649, %v5857
      %5859 = vmatmul.bf16.gmra.mxu0 %v2789
      %v5860 = vpop.f32.mrf.mxu0
      %v5861 = vadd.f32 %v5652, %v5860
      %v5862 = vpop.f32.mrf.mxu0
      %v5863 = vadd.f32 %v5654, %v5862
      %5864 = vmatmul.bf16.gmra.mxu0 %v2791
      %v5865 = vpop.f32.mrf.mxu0
      %v5866 = vadd.f32 %v5657, %v5865
      %v5867 = vpop.f32.mrf.mxu0
      %v5868 = vadd.f32 %v5659, %v5867
      %5869 = vmatmul.bf16.gmra.mxu0 %v2793
      %v5870 = vpop.f32.mrf.mxu0
      %v5871 = vadd.f32 %v5662, %v5870
      %v5872 = vpop.f32.mrf.mxu0
      %v5873 = vadd.f32 %v5664, %v5872
      %5874 = vmatmul.bf16.gmra.mxu0 %v2795
      %v5875 = vpop.f32.mrf.mxu0
      %v5876 = vadd.f32 %v5667, %v5875
      %v5877 = vpop.f32.mrf.mxu0
      %v5878 = vadd.f32 %v5669, %v5877
      %5879 = vmatmul.bf16.gmra.mxu0 %v2797
      %v5880 = vpop.f32.mrf.mxu0
      %v5881 = vadd.f32 %v5672, %v5880
      %v5882 = vpop.f32.mrf.mxu0
      %v5883 = vadd.f32 %v5674, %v5882
      %5884 = vmatmul.bf16.gmra.mxu0 %v2799
      %v5885 = vpop.f32.mrf.mxu0
      %v5886 = vadd.f32 %v5677, %v5885
      %v5887 = vpop.f32.mrf.mxu0
      %v5888 = vadd.f32 %v5679, %v5887
      %5889 = vmatmul.bf16.gmra.mxu0 %v2801
      %v5890 = vpop.f32.mrf.mxu0
      %v5891 = vadd.f32 %v5682, %v5890
      %v5892 = vpop.f32.mrf.mxu0
      %v5893 = vadd.f32 %v5684, %v5892
      %5894 = vmatmul.bf16.gmra.mxu0 %v2803
      %v5895 = vpop.f32.mrf.mxu0
      %v5896 = vadd.f32 %v5687, %v5895
      %v5897 = vpop.f32.mrf.mxu0
      %v5898 = vadd.f32 %v5689, %v5897
      %5899 = vmatmul.bf16.gmra.mxu0 %v2805
      %v5900 = vpop.f32.mrf.mxu0
      %v5901 = vadd.f32 %v5692, %v5900
      %v5902 = vpop.f32.mrf.mxu0
      %v5903 = vadd.f32 %v5694, %v5902
      %5904 = vmatmul.bf16.gmra.mxu0 %v2807
      %v5905 = vpop.f32.mrf.mxu0
      %v5906 = vadd.f32 %v5697, %v5905
      %v5907 = vpop.f32.mrf.mxu0
      %v5908 = vadd.f32 %v5699, %v5907
      %5909 = vmatmul.bf16.gmra.mxu0 %v2809
      %v5910 = vpop.f32.mrf.mxu0
      %v5911 = vadd.f32 %v5702, %v5910
      %v5912 = vpop.f32.mrf.mxu0
      %v5913 = vadd.f32 %v5704, %v5912
      %5914 = vmatmul.bf16.gmra.mxu0 %v2811
      %v5915 = vpop.f32.mrf.mxu0
      %v5916 = vadd.f32 %v5707, %v5915
      %v5917 = vpop.f32.mrf.mxu0
      %v5918 = vadd.f32 %v5709, %v5917
      %5919 = vmatmul.bf16.gmra.mxu0 %v2813
      %v5920 = vpop.f32.mrf.mxu0
      %v5921 = vadd.f32 %v5712, %v5920
      %v5922 = vpop.f32.mrf.mxu0
      %v5923 = vadd.f32 %v5714, %v5922
      %5924 = vmatmul.bf16.gmra.mxu0 %v2815
      %v5925 = vpop.f32.mrf.mxu0
      %v5926 = vadd.f32 %v5717, %v5925
      %v5927 = vpop.f32.mrf.mxu0
      %v5928 = vadd.f32 %v5719, %v5927
      %5929 = vmatmul.bf16.gmra.mxu0 %v2817
      %v5930 = vpop.f32.mrf.mxu0
      %v5931 = vadd.f32 %v5722, %v5930
      %v5932 = vpop.f32.mrf.mxu0
      %v5933 = vadd.f32 %v5724, %v5932
      %5934 = vmatmul.bf16.gmra.mxu0 %v2819
      %v5935 = vpop.f32.mrf.mxu0
      %v5936 = vadd.f32 %v5727, %v5935
      %v5937 = vpop.f32.mrf.mxu0
      %v5938 = vadd.f32 %v5729, %v5937
      %5939 = vmatmul.bf16.gmra.mxu0 %v2821
      %v5940 = vpop.f32.mrf.mxu0
      %v5941 = vadd.f32 %v5732, %v5940
      %v5942 = vpop.f32.mrf.mxu0
      %v5943 = vadd.f32 %v5734, %v5942
      %5944 = vmatmul.bf16.gmra.mxu0 %v2823
      %v5945 = vpop.f32.mrf.mxu0
      %v5946 = vadd.f32 %v5737, %v5945
      %v5947 = vpop.f32.mrf.mxu0
      %v5948 = vadd.f32 %v5739, %v5947
      %5949 = vmatmul.bf16.gmra.mxu0 %v2825
      %v5950 = vpop.f32.mrf.mxu0
      %v5951 = vadd.f32 %v5742, %v5950
      %v5952 = vpop.f32.mrf.mxu0
      %v5953 = vadd.f32 %v5744, %v5952
      %5954 = vmatmul.bf16.gmra.mxu0 %v2827
      %v5955 = vpop.f32.mrf.mxu0
      %v5956 = vadd.f32 %v5747, %v5955
      %v5957 = vpop.f32.mrf.mxu0
      %v5958 = vadd.f32 %v5749, %v5957
      %5959 = vmatmul.bf16.gmra.mxu0 %v2829
      %v5960 = vpop.f32.mrf.mxu0
      %v5961 = vadd.f32 %v5752, %v5960
      %v5962 = vpop.f32.mrf.mxu0
      %v5963 = vadd.f32 %v5754, %v5962
      %5964 = vmatmul.bf16.gmra.mxu0 %v3521
      %v5965 = vpop.f32.mrf.mxu0
      %v5966 = vadd.f32 %v5757, %v5965
      %v5967 = vpop.f32.mrf.mxu0
      %v5968 = vadd.f32 %v5759, %v5967
      %5969 = vmatmul.bf16.gmra.mxu0 %v3523
      %v5970 = vpop.f32.mrf.mxu0
      %v5971 = vadd.f32 %v5762, %v5970
      %v5972 = vpop.f32.mrf.mxu0
      %v5973 = vadd.f32 %v5764, %v5972
      %5974 = vmatmul.bf16.gmra.mxu0 %v3525
      %v5975 = vpop.f32.mrf.mxu0
      %v5976 = vadd.f32 %v5767, %v5975
      %v5977 = vpop.f32.mrf.mxu0
      %v5978 = vadd.f32 %v5769, %v5977
      %5979 = vmatmul.bf16.gmra.mxu0 %v3527
      %v5980 = vpop.f32.mrf.mxu0
      %v5981 = vadd.f32 %v5772, %v5980
      %v5982 = vpop.f32.mrf.mxu0
      %v5983 = vadd.f32 %v5774, %v5982
      %5984 = vmatmul.bf16.gmra.mxu0 %v3529
      %v5985 = vpop.f32.mrf.mxu0
      %v5986 = vadd.f32 %v5777, %v5985
      %v5987 = vpop.f32.mrf.mxu0
      %v5988 = vadd.f32 %v5779, %v5987
      %5989 = vmatmul.bf16.gmra.mxu0 %v3531
      %v5990 = vpop.f32.mrf.mxu0
      %v5991 = vadd.f32 %v5782, %v5990
      %v5992 = vpop.f32.mrf.mxu0
      %v5993 = vadd.f32 %v5784, %v5992
      %5994 = vdwg.mxu0
      %v5995 = vld [vmem:[%s6] sm:$0x1]
      %v5997 = vperm.slane %v5995, 0
      %v5999 = vmul.f32 %v5796, %v5997
      %v6000 = vmul.f32 %v5798, %v5997
      %v6001 = vmul.f32 %v5801, %v5997
      %v6002 = vmul.f32 %v5803, %v5997
      %v6003 = vmul.f32 %v5806, %v5997
      %v6004 = vmul.f32 %v5808, %v5997
      %v6005 = vmul.f32 %v5811, %v5997
      %v6006 = vmul.f32 %v5813, %v5997
      %v6007 = vmul.f32 %v5816, %v5997
      %v6008 = vmul.f32 %v5818, %v5997
      %v6009 = vmul.f32 %v5821, %v5997
      %v6010 = vmul.f32 %v5823, %v5997
      %v6011 = vmul.f32 %v5826, %v5997
      %v6012 = vmul.f32 %v5828, %v5997
      %v6013 = vmul.f32 %v5831, %v5997
      %v6014 = vmul.f32 %v5833, %v5997
      %v6015 = vmul.f32 %v5836, %v5997
      %v6016 = vmul.f32 %v5838, %v5997
      %v6017 = vmul.f32 %v5841, %v5997
      %v6018 = vmul.f32 %v5843, %v5997
      %v6019 = vmul.f32 %v5846, %v5997
      %v6020 = vmul.f32 %v5848, %v5997
      %v6021 = vmul.f32 %v5851, %v5997
      %v6022 = vmul.f32 %v5853, %v5997
      %v6023 = vmul.f32 %v5856, %v5997
      %v6024 = vmul.f32 %v5858, %v5997
      %v6025 = vmul.f32 %v5861, %v5997
      %v6026 = vmul.f32 %v5863, %v5997
      %v6027 = vmul.f32 %v5866, %v5997
      %v6028 = vmul.f32 %v5868, %v5997
      %v6029 = vmul.f32 %v5871, %v5997
      %v6030 = vmul.f32 %v5873, %v5997
      %v6031 = vmul.f32 %v5876, %v5997
      %v6032 = vmul.f32 %v5878, %v5997
      %v6033 = vmul.f32 %v5881, %v5997
      %v6034 = vmul.f32 %v5883, %v5997
      %v6035 = vmul.f32 %v5886, %v5997
      %v6036 = vmul.f32 %v5888, %v5997
      %v6037 = vmul.f32 %v5891, %v5997
      %v6038 = vmul.f32 %v5893, %v5997
      %v6039 = vmul.f32 %v5896, %v5997
      %v6040 = vmul.f32 %v5898, %v5997
      %v6041 = vmul.f32 %v5901, %v5997
      %v6042 = vmul.f32 %v5903, %v5997
      %v6043 = vmul.f32 %v5906, %v5997
      %v6044 = vmul.f32 %v5908, %v5997
      %v6045 = vmul.f32 %v5911, %v5997
      %v6046 = vmul.f32 %v5913, %v5997
      %v6047 = vmul.f32 %v5916, %v5997
      %v6048 = vmul.f32 %v5918, %v5997
      %v6049 = vmul.f32 %v5921, %v5997
      %v6050 = vmul.f32 %v5923, %v5997
      %v6051 = vmul.f32 %v5926, %v5997
      %v6052 = vmul.f32 %v5928, %v5997
      %v6053 = vmul.f32 %v5931, %v5997
      %v6054 = vmul.f32 %v5933, %v5997
      %v6055 = vmul.f32 %v5936, %v5997
      %v6056 = vmul.f32 %v5938, %v5997
      %v6057 = vmul.f32 %v5941, %v5997
      %v6058 = vmul.f32 %v5943, %v5997
      %v6059 = vmul.f32 %v5946, %v5997
      %v6060 = vmul.f32 %v5948, %v5997
      %v6061 = vmul.f32 %v5951, %v5997
      %v6062 = vmul.f32 %v5953, %v5997
      %v6063 = vmul.f32 %v5956, %v5997
      %v6064 = vmul.f32 %v5958, %v5997
      %v6065 = vmul.f32 %v5961, %v5997
      %v6066 = vmul.f32 %v5963, %v5997
      %v6067 = vmul.f32 %v5966, %v5997
      %v6068 = vmul.f32 %v5968, %v5997
      %v6069 = vmul.f32 %v5971, %v5997
      %v6070 = vmul.f32 %v5973, %v5997
      %v6071 = vmul.f32 %v5976, %v5997
      %v6072 = vmul.f32 %v5978, %v5997
      %v6073 = vmul.f32 %v5981, %v5997
      %v6074 = vmul.f32 %v5983, %v5997
      %v6075 = vmul.f32 %v5986, %v5997
      %v6076 = vmul.f32 %v5988, %v5997
      %v6077 = vmul.f32 %v5991, %v5997
      %v6078 = vmul.f32 %v5993, %v5997
      %v6079 = vld [vmem:[%s7] sm:$0x1]
      %v6081 = vperm.slane %v6079, 0
      %v6083 = vadd.f32 %v5999, %v6081
      %v6084 = vadd.f32 %v6000, %v6081
      %v6085 = vadd.f32 %v6001, %v6081
      %v6086 = vadd.f32 %v6002, %v6081
      %v6087 = vadd.f32 %v6003, %v6081
      %v6088 = vadd.f32 %v6004, %v6081
      %v6089 = vadd.f32 %v6005, %v6081
      %v6090 = vadd.f32 %v6006, %v6081
      %v6091 = vadd.f32 %v6007, %v6081
      %v6092 = vadd.f32 %v6008, %v6081
      %v6093 = vadd.f32 %v6009, %v6081
      %v6094 = vadd.f32 %v6010, %v6081
      %v6095 = vadd.f32 %v6011, %v6081
      %v6096 = vadd.f32 %v6012, %v6081
      %v6097 = vadd.f32 %v6013, %v6081
      %v6098 = vadd.f32 %v6014, %v6081
      %v6099 = vadd.f32 %v6015, %v6081
      %v6100 = vadd.f32 %v6016, %v6081
      %v6101 = vadd.f32 %v6017, %v6081
      %v6102 = vadd.f32 %v6018, %v6081
      %v6103 = vadd.f32 %v6019, %v6081
      %v6104 = vadd.f32 %v6020, %v6081
      %v6105 = vadd.f32 %v6021, %v6081
      %v6106 = vadd.f32 %v6022, %v6081
      %v6107 = vadd.f32 %v6023, %v6081
      %v6108 = vadd.f32 %v6024, %v6081
      %v6109 = vadd.f32 %v6025, %v6081
      %v6110 = vadd.f32 %v6026, %v6081
      %v6111 = vadd.f32 %v6027, %v6081
      %v6112 = vadd.f32 %v6028, %v6081
      %v6113 = vadd.f32 %v6029, %v6081
      %v6114 = vadd.f32 %v6030, %v6081
      %v6115 = vadd.f32 %v6031, %v6081
      %v6116 = vadd.f32 %v6032, %v6081
      %v6117 = vadd.f32 %v6033, %v6081
      %v6118 = vadd.f32 %v6034, %v6081
      %v6119 = vadd.f32 %v6035, %v6081
      %v6120 = vadd.f32 %v6036, %v6081
      %v6121 = vadd.f32 %v6037, %v6081
      %v6122 = vadd.f32 %v6038, %v6081
      %v6123 = vadd.f32 %v6039, %v6081
      %v6124 = vadd.f32 %v6040, %v6081
      %v6125 = vadd.f32 %v6041, %v6081
      %v6126 = vadd.f32 %v6042, %v6081
      %v6127 = vadd.f32 %v6043, %v6081
      %v6128 = vadd.f32 %v6044, %v6081
      %v6129 = vadd.f32 %v6045, %v6081
      %v6130 = vadd.f32 %v6046, %v6081
      %v6131 = vadd.f32 %v6047, %v6081
      %v6132 = vadd.f32 %v6048, %v6081
      %v6133 = vadd.f32 %v6049, %v6081
      %v6134 = vadd.f32 %v6050, %v6081
      %v6135 = vadd.f32 %v6051, %v6081
      %v6136 = vadd.f32 %v6052, %v6081
      %v6137 = vadd.f32 %v6053, %v6081
      %v6138 = vadd.f32 %v6054, %v6081
      %v6139 = vadd.f32 %v6055, %v6081
      %v6140 = vadd.f32 %v6056, %v6081
      %v6141 = vadd.f32 %v6057, %v6081
      %v6142 = vadd.f32 %v6058, %v6081
      %v6143 = vadd.f32 %v6059, %v6081
      %v6144 = vadd.f32 %v6060, %v6081
      %v6145 = vadd.f32 %v6061, %v6081
      %v6146 = vadd.f32 %v6062, %v6081
      %v6147 = vadd.f32 %v6063, %v6081
      %v6148 = vadd.f32 %v6064, %v6081
      %v6149 = vadd.f32 %v6065, %v6081
      %v6150 = vadd.f32 %v6066, %v6081
      %v6151 = vadd.f32 %v6067, %v6081
      %v6152 = vadd.f32 %v6068, %v6081
      %v6153 = vadd.f32 %v6069, %v6081
      %v6154 = vadd.f32 %v6070, %v6081
      %v6155 = vadd.f32 %v6071, %v6081
      %v6156 = vadd.f32 %v6072, %v6081
      %v6157 = vadd.f32 %v6073, %v6081
      %v6158 = vadd.f32 %v6074, %v6081
      %v6159 = vadd.f32 %v6075, %v6081
      %v6160 = vadd.f32 %v6076, %v6081
      %v6161 = vadd.f32 %v6077, %v6081
      %v6162 = vadd.f32 %v6078, %v6081
      %v6163 = vmax.f32 %v6083, 0.0
      %v6164 = vmax.f32 %v6084, 0.0
      %v6165 = vmax.f32 %v6085, 0.0
      %v6166 = vmax.f32 %v6086, 0.0
      %v6167 = vmax.f32 %v6087, 0.0
      %v6168 = vmax.f32 %v6088, 0.0
      %v6169 = vmax.f32 %v6089, 0.0
      %v6170 = vmax.f32 %v6090, 0.0
      %v6171 = vmax.f32 %v6091, 0.0
      %v6172 = vmax.f32 %v6092, 0.0
      %v6173 = vmax.f32 %v6093, 0.0
      %v6174 = vmax.f32 %v6094, 0.0
      %v6175 = vmax.f32 %v6095, 0.0
      %v6176 = vmax.f32 %v6096, 0.0
      %v6177 = vmax.f32 %v6097, 0.0
      %v6178 = vmax.f32 %v6098, 0.0
      %v6179 = vmax.f32 %v6099, 0.0
      %v6180 = vmax.f32 %v6100, 0.0
      %v6181 = vmax.f32 %v6101, 0.0
      %v6182 = vmax.f32 %v6102, 0.0
      %v6183 = vmax.f32 %v6103, 0.0
      %v6184 = vmax.f32 %v6104, 0.0
      %v6185 = vmax.f32 %v6105, 0.0
      %v6186 = vmax.f32 %v6106, 0.0
      %v6187 = vmax.f32 %v6107, 0.0
      %v6188 = vmax.f32 %v6108, 0.0
      %v6189 = vmax.f32 %v6109, 0.0
      %v6190 = vmax.f32 %v6110, 0.0
      %v6191 = vmax.f32 %v6111, 0.0
      %v6192 = vmax.f32 %v6112, 0.0
      %v6193 = vmax.f32 %v6113, 0.0
      %v6194 = vmax.f32 %v6114, 0.0
      %v6195 = vmax.f32 %v6115, 0.0
      %v6196 = vmax.f32 %v6116, 0.0
      %v6197 = vmax.f32 %v6117, 0.0
      %v6198 = vmax.f32 %v6118, 0.0
      %v6199 = vmax.f32 %v6119, 0.0
      %v6200 = vmax.f32 %v6120, 0.0
      %v6201 = vmax.f32 %v6121, 0.0
      %v6202 = vmax.f32 %v6122, 0.0
      %v6203 = vmax.f32 %v6123, 0.0
      %v6204 = vmax.f32 %v6124, 0.0
      %v6205 = vmax.f32 %v6125, 0.0
      %v6206 = vmax.f32 %v6126, 0.0
      %v6207 = vmax.f32 %v6127, 0.0
      %v6208 = vmax.f32 %v6128, 0.0
      %v6209 = vmax.f32 %v6129, 0.0
      %v6210 = vmax.f32 %v6130, 0.0
      %v6211 = vmax.f32 %v6131, 0.0
      %v6212 = vmax.f32 %v6132, 0.0
      %v6213 = vmax.f32 %v6133, 0.0
      %v6214 = vmax.f32 %v6134, 0.0
      %v6215 = vmax.f32 %v6135, 0.0
      %v6216 = vmax.f32 %v6136, 0.0
      %v6217 = vmax.f32 %v6137, 0.0
      %v6218 = vmax.f32 %v6138, 0.0
      %v6219 = vmax.f32 %v6139, 0.0
      %v6220 = vmax.f32 %v6140, 0.0
      %v6221 = vmax.f32 %v6141, 0.0
      %v6222 = vmax.f32 %v6142, 0.0
      %v6223 = vmax.f32 %v6143, 0.0
      %v6224 = vmax.f32 %v6144, 0.0
      %v6225 = vmax.f32 %v6145, 0.0
      %v6226 = vmax.f32 %v6146, 0.0
      %v6227 = vmax.f32 %v6147, 0.0
      %v6228 = vmax.f32 %v6148, 0.0
      %v6229 = vmax.f32 %v6149, 0.0
      %v6230 = vmax.f32 %v6150, 0.0
      %v6231 = vmax.f32 %v6151, 0.0
      %v6232 = vmax.f32 %v6152, 0.0
      %v6233 = vmax.f32 %v6153, 0.0
      %v6234 = vmax.f32 %v6154, 0.0
      %v6235 = vmax.f32 %v6155, 0.0
      %v6236 = vmax.f32 %v6156, 0.0
      %v6237 = vmax.f32 %v6157, 0.0
      %v6238 = vmax.f32 %v6158, 0.0
      %v6239 = vmax.f32 %v6159, 0.0
      %v6240 = vmax.f32 %v6160, 0.0
      %v6241 = vmax.f32 %v6161, 0.0
      %v6242 = vmax.f32 %v6162, 0.0
      %v6243 = vpack.c.bf16 %v6164, %v6163
      %v6244 = vpack.c.bf16 %v6166, %v6165
      %v6245 = vpack.c.bf16 %v6168, %v6167
      %v6246 = vpack.c.bf16 %v6170, %v6169
      %v6247 = vpack.c.bf16 %v6172, %v6171
      %v6248 = vpack.c.bf16 %v6174, %v6173
      %v6249 = vpack.c.bf16 %v6176, %v6175
      %v6250 = vpack.c.bf16 %v6178, %v6177
      %v6251 = vpack.c.bf16 %v6180, %v6179
      %v6252 = vpack.c.bf16 %v6182, %v6181
      %v6253 = vpack.c.bf16 %v6184, %v6183
      %v6254 = vpack.c.bf16 %v6186, %v6185
      %v6255 = vpack.c.bf16 %v6188, %v6187
      %v6256 = vpack.c.bf16 %v6190, %v6189
      %v6257 = vpack.c.bf16 %v6192, %v6191
      %v6258 = vpack.c.bf16 %v6194, %v6193
      %v6259 = vpack.c.bf16 %v6196, %v6195
      %v6260 = vpack.c.bf16 %v6198, %v6197
      %v6261 = vpack.c.bf16 %v6200, %v6199
      %v6262 = vpack.c.bf16 %v6202, %v6201
      %v6263 = vpack.c.bf16 %v6204, %v6203
      %v6264 = vpack.c.bf16 %v6206, %v6205
      %v6265 = vpack.c.bf16 %v6208, %v6207
      %v6266 = vpack.c.bf16 %v6210, %v6209
      %v6267 = vpack.c.bf16 %v6212, %v6211
      %v6268 = vpack.c.bf16 %v6214, %v6213
      %v6269 = vpack.c.bf16 %v6216, %v6215
      %v6270 = vpack.c.bf16 %v6218, %v6217
      %v6271 = vpack.c.bf16 %v6220, %v6219
      %v6272 = vpack.c.bf16 %v6222, %v6221
      %v6273 = vpack.c.bf16 %v6224, %v6223
      %v6274 = vpack.c.bf16 %v6226, %v6225
      %v6275 = vpack.c.bf16 %v6228, %v6227
      %v6276 = vpack.c.bf16 %v6230, %v6229
      %v6277 = vpack.c.bf16 %v6232, %v6231
      %v6278 = vpack.c.bf16 %v6234, %v6233
      %v6279 = vpack.c.bf16 %v6236, %v6235
      %v6280 = vpack.c.bf16 %v6238, %v6237
      %v6281 = vpack.c.bf16 %v6240, %v6239
      %v6282 = vpack.c.bf16 %v6242, %v6241
      %v6283 = vld [vmem:[%s8] sm:$0xf]
      %v6284 = vld [vmem:[%s8 + $0x4] sm:$0xf]
      %v6285 = vld [vmem:[%s8 + $0x8] sm:$0xf]
      %v6286 = vld [vmem:[%s8 + $0xc] sm:$0xf]
      %v6287 = vld [vmem:[%s8 + $0x10] sm:$0xf]
      %v6288 = vld [vmem:[%s8 + $0x14] sm:$0xf]
      %v6289 = vld [vmem:[%s8 + $0x18] sm:$0xf]
      %v6290 = vld [vmem:[%s8 + $0x1c] sm:$0xf]
      %v6291 = vld [vmem:[%s8 + $0x20] sm:$0xf]
      %v6292 = vld [vmem:[%s8 + $0x24] sm:$0xf]
      %v6293 = vld [vmem:[%s8 + $0x28] sm:$0xf]
      %v6294 = vld [vmem:[%s8 + $0x2c] sm:$0xf]
      %v6295 = vld [vmem:[%s8 + $0x30] sm:$0xf]
      %v6296 = vld [vmem:[%s8 + $0x34] sm:$0xf]
      %v6297 = vld [vmem:[%s8 + $0x38] sm:$0xf]
      %v6298 = vld [vmem:[%s8 + $0x3c] sm:$0xf]
      %v6315 = vunpack.c.l.b16 %v6283
      %v6316 = vunpack.c.l.b16 %v6284
      %v6317 = vunpack.c.l.b16 %v6285
      %v6318 = vunpack.c.l.b16 %v6286
      %v6319 = vunpack.c.l.b16 %v6287
      %v6320 = vunpack.c.l.b16 %v6288
      %v6321 = vunpack.c.l.b16 %v6289
      %v6322 = vunpack.c.l.b16 %v6290
      %v6323 = vunpack.c.l.b16 %v6291
      %v6324 = vunpack.c.l.b16 %v6292
      %v6325 = vunpack.c.l.b16 %v6293
      %v6326 = vunpack.c.l.b16 %v6294
      %v6327 = vunpack.c.l.b16 %v6295
      %v6328 = vunpack.c.l.b16 %v6296
      %v6329 = vunpack.c.l.b16 %v6297
      %v6330 = vunpack.c.l.b16 %v6298
      %v6331 = vpack.c.b16 %v6316, %v6315
      %v6332 = vpack.c.b16 %v6318, %v6317
      %v6333 = vpack.c.b16 %v6320, %v6319
      %v6334 = vpack.c.b16 %v6322, %v6321
      %v6335 = vpack.c.b16 %v6324, %v6323
      %v6336 = vpack.c.b16 %v6326, %v6325
      %v6337 = vpack.c.b16 %v6328, %v6327
      %v6338 = vpack.c.b16 %v6330, %v6329
      %6347 = vmatpush.bf16.msra.mxu0 %v6338
      %6348 = vmatpush.bf16.msra.mxu0 %v6337
      %6349 = vmatpush.bf16.msra.mxu0 %v6336
      %6350 = vmatpush.bf16.msra.mxu0 %v6335
      %6351 = vmatpush.bf16.msra.mxu0 %v6334
      %6352 = vmatpush.bf16.msra.mxu0 %v6333
      %6353 = vmatpush.bf16.msra.mxu0 %v6332
      %6354 = vmatpush.bf16.msra.mxu0 %v6331
      %6355 = vmatmul.bf16.gmra.mxu0 %v6243
      %v6356 = vpop.f32.mrf.mxu0
      %v6357 = vadd.f32 0.0, %v6356
      %v6358 = vpop.f32.mrf.mxu0
      %v6359 = vadd.f32 0.0, %v6358
      %6360 = vmatmul.bf16.gmra.mxu0 %v6244
      %v6361 = vpop.f32.mrf.mxu0
      %v6362 = vadd.f32 0.0, %v6361
      %v6363 = vpop.f32.mrf.mxu0
      %v6364 = vadd.f32 0.0, %v6363
      %6365 = vmatmul.bf16.gmra.mxu0 %v6245
      %v6366 = vpop.f32.mrf.mxu0
      %v6367 = vadd.f32 0.0, %v6366
      %v6368 = vpop.f32.mrf.mxu0
      %v6369 = vadd.f32 0.0, %v6368
      %6370 = vmatmul.bf16.gmra.mxu0 %v6246
      %v6371 = vpop.f32.mrf.mxu0
      %v6372 = vadd.f32 0.0, %v6371
      %v6373 = vpop.f32.mrf.mxu0
      %v6374 = vadd.f32 0.0, %v6373
      %6375 = vmatmul.bf16.gmra.mxu0 %v6247
      %v6376 = vpop.f32.mrf.mxu0
      %v6377 = vadd.f32 0.0, %v6376
      %v6378 = vpop.f32.mrf.mxu0
      %v6379 = vadd.f32 0.0, %v6378
      %6380 = vmatmul.bf16.gmra.mxu0 %v6248
      %v6381 = vpop.f32.mrf.mxu0
      %v6382 = vadd.f32 0.0, %v6381
      %v6383 = vpop.f32.mrf.mxu0
      %v6384 = vadd.f32 0.0, %v6383
      %6385 = vmatmul.bf16.gmra.mxu0 %v6249
      %v6386 = vpop.f32.mrf.mxu0
      %v6387 = vadd.f32 0.0, %v6386
      %v6388 = vpop.f32.mrf.mxu0
      %v6389 = vadd.f32 0.0, %v6388
      %6390 = vmatmul.bf16.gmra.mxu0 %v6250
      %v6391 = vpop.f32.mrf.mxu0
      %v6392 = vadd.f32 0.0, %v6391
      %v6393 = vpop.f32.mrf.mxu0
      %v6394 = vadd.f32 0.0, %v6393
      %6395 = vmatmul.bf16.gmra.mxu0 %v6251
      %v6396 = vpop.f32.mrf.mxu0
      %v6397 = vadd.f32 0.0, %v6396
      %v6398 = vpop.f32.mrf.mxu0
      %v6399 = vadd.f32 0.0, %v6398
      %6400 = vmatmul.bf16.gmra.mxu0 %v6252
      %v6401 = vpop.f32.mrf.mxu0
      %v6402 = vadd.f32 0.0, %v6401
      %v6403 = vpop.f32.mrf.mxu0
      %v6404 = vadd.f32 0.0, %v6403
      %6405 = vmatmul.bf16.gmra.mxu0 %v6253
      %v6406 = vpop.f32.mrf.mxu0
      %v6407 = vadd.f32 0.0, %v6406
      %v6408 = vpop.f32.mrf.mxu0
      %v6409 = vadd.f32 0.0, %v6408
      %6410 = vmatmul.bf16.gmra.mxu0 %v6254
      %v6411 = vpop.f32.mrf.mxu0
      %v6412 = vadd.f32 0.0, %v6411
      %v6413 = vpop.f32.mrf.mxu0
      %v6414 = vadd.f32 0.0, %v6413
      %6415 = vmatmul.bf16.gmra.mxu0 %v6255
      %v6416 = vpop.f32.mrf.mxu0
      %v6417 = vadd.f32 0.0, %v6416
      %v6418 = vpop.f32.mrf.mxu0
      %v6419 = vadd.f32 0.0, %v6418
      %6420 = vmatmul.bf16.gmra.mxu0 %v6256
      %v6421 = vpop.f32.mrf.mxu0
      %v6422 = vadd.f32 0.0, %v6421
      %v6423 = vpop.f32.mrf.mxu0
      %v6424 = vadd.f32 0.0, %v6423
      %6425 = vmatmul.bf16.gmra.mxu0 %v6257
      %v6426 = vpop.f32.mrf.mxu0
      %v6427 = vadd.f32 0.0, %v6426
      %v6428 = vpop.f32.mrf.mxu0
      %v6429 = vadd.f32 0.0, %v6428
      %6430 = vmatmul.bf16.gmra.mxu0 %v6258
      %v6431 = vpop.f32.mrf.mxu0
      %v6432 = vadd.f32 0.0, %v6431
      %v6433 = vpop.f32.mrf.mxu0
      %v6434 = vadd.f32 0.0, %v6433
      %6435 = vmatmul.bf16.gmra.mxu0 %v6259
      %v6436 = vpop.f32.mrf.mxu0
      %v6437 = vadd.f32 0.0, %v6436
      %v6438 = vpop.f32.mrf.mxu0
      %v6439 = vadd.f32 0.0, %v6438
      %6440 = vmatmul.bf16.gmra.mxu0 %v6260
      %v6441 = vpop.f32.mrf.mxu0
      %v6442 = vadd.f32 0.0, %v6441
      %v6443 = vpop.f32.mrf.mxu0
      %v6444 = vadd.f32 0.0, %v6443
      %6445 = vmatmul.bf16.gmra.mxu0 %v6261
      %v6446 = vpop.f32.mrf.mxu0
      %v6447 = vadd.f32 0.0, %v6446
      %v6448 = vpop.f32.mrf.mxu0
      %v6449 = vadd.f32 0.0, %v6448
      %6450 = vmatmul.bf16.gmra.mxu0 %v6262
      %v6451 = vpop.f32.mrf.mxu0
      %v6452 = vadd.f32 0.0, %v6451
      %v6453 = vpop.f32.mrf.mxu0
      %v6454 = vadd.f32 0.0, %v6453
      %6455 = vmatmul.bf16.gmra.mxu0 %v6263
      %v6456 = vpop.f32.mrf.mxu0
      %v6457 = vadd.f32 0.0, %v6456
      %v6458 = vpop.f32.mrf.mxu0
      %v6459 = vadd.f32 0.0, %v6458
      %6460 = vmatmul.bf16.gmra.mxu0 %v6264
      %v6461 = vpop.f32.mrf.mxu0
      %v6462 = vadd.f32 0.0, %v6461
      %v6463 = vpop.f32.mrf.mxu0
      %v6464 = vadd.f32 0.0, %v6463
      %6465 = vmatmul.bf16.gmra.mxu0 %v6265
      %v6466 = vpop.f32.mrf.mxu0
      %v6467 = vadd.f32 0.0, %v6466
      %v6468 = vpop.f32.mrf.mxu0
      %v6469 = vadd.f32 0.0, %v6468
      %6470 = vmatmul.bf16.gmra.mxu0 %v6266
      %v6471 = vpop.f32.mrf.mxu0
      %v6472 = vadd.f32 0.0, %v6471
      %v6473 = vpop.f32.mrf.mxu0
      %v6474 = vadd.f32 0.0, %v6473
      %6475 = vmatmul.bf16.gmra.mxu0 %v6267
      %v6476 = vpop.f32.mrf.mxu0
      %v6477 = vadd.f32 0.0, %v6476
      %v6478 = vpop.f32.mrf.mxu0
      %v6479 = vadd.f32 0.0, %v6478
      %6480 = vmatmul.bf16.gmra.mxu0 %v6268
      %v6481 = vpop.f32.mrf.mxu0
      %v6482 = vadd.f32 0.0, %v6481
      %v6483 = vpop.f32.mrf.mxu0
      %v6484 = vadd.f32 0.0, %v6483
      %6485 = vmatmul.bf16.gmra.mxu0 %v6269
      %v6486 = vpop.f32.mrf.mxu0
      %v6487 = vadd.f32 0.0, %v6486
      %v6488 = vpop.f32.mrf.mxu0
      %v6489 = vadd.f32 0.0, %v6488
      %6490 = vmatmul.bf16.gmra.mxu0 %v6270
      %v6491 = vpop.f32.mrf.mxu0
      %v6492 = vadd.f32 0.0, %v6491
      %v6493 = vpop.f32.mrf.mxu0
      %v6494 = vadd.f32 0.0, %v6493
      %6495 = vmatmul.bf16.gmra.mxu0 %v6271
      %v6496 = vpop.f32.mrf.mxu0
      %v6497 = vadd.f32 0.0, %v6496
      %v6498 = vpop.f32.mrf.mxu0
      %v6499 = vadd.f32 0.0, %v6498
      %6500 = vmatmul.bf16.gmra.mxu0 %v6272
      %v6501 = vpop.f32.mrf.mxu0
      %v6502 = vadd.f32 0.0, %v6501
      %v6503 = vpop.f32.mrf.mxu0
      %v6504 = vadd.f32 0.0, %v6503
      %6505 = vmatmul.bf16.gmra.mxu0 %v6273
      %v6506 = vpop.f32.mrf.mxu0
      %v6507 = vadd.f32 0.0, %v6506
      %v6508 = vpop.f32.mrf.mxu0
      %v6509 = vadd.f32 0.0, %v6508
      %6510 = vmatmul.bf16.gmra.mxu0 %v6274
      %v6511 = vpop.f32.mrf.mxu0
      %v6512 = vadd.f32 0.0, %v6511
      %v6513 = vpop.f32.mrf.mxu0
      %v6514 = vadd.f32 0.0, %v6513
      %6515 = vmatmul.bf16.gmra.mxu0 %v6275
      %v6516 = vpop.f32.mrf.mxu0
      %v6517 = vadd.f32 0.0, %v6516
      %v6518 = vpop.f32.mrf.mxu0
      %v6519 = vadd.f32 0.0, %v6518
      %6520 = vmatmul.bf16.gmra.mxu0 %v6276
      %v6521 = vpop.f32.mrf.mxu0
      %v6522 = vadd.f32 0.0, %v6521
      %v6523 = vpop.f32.mrf.mxu0
      %v6524 = vadd.f32 0.0, %v6523
      %6525 = vmatmul.bf16.gmra.mxu0 %v6277
      %v6526 = vpop.f32.mrf.mxu0
      %v6527 = vadd.f32 0.0, %v6526
      %v6528 = vpop.f32.mrf.mxu0
      %v6529 = vadd.f32 0.0, %v6528
      %6530 = vmatmul.bf16.gmra.mxu0 %v6278
      %v6531 = vpop.f32.mrf.mxu0
      %v6532 = vadd.f32 0.0, %v6531
      %v6533 = vpop.f32.mrf.mxu0
      %v6534 = vadd.f32 0.0, %v6533
      %6535 = vmatmul.bf16.gmra.mxu0 %v6279
      %v6536 = vpop.f32.mrf.mxu0
      %v6537 = vadd.f32 0.0, %v6536
      %v6538 = vpop.f32.mrf.mxu0
      %v6539 = vadd.f32 0.0, %v6538
      %6540 = vmatmul.bf16.gmra.mxu0 %v6280
      %v6541 = vpop.f32.mrf.mxu0
      %v6542 = vadd.f32 0.0, %v6541
      %v6543 = vpop.f32.mrf.mxu0
      %v6544 = vadd.f32 0.0, %v6543
      %6545 = vmatmul.bf16.gmra.mxu0 %v6281
      %v6546 = vpop.f32.mrf.mxu0
      %v6547 = vadd.f32 0.0, %v6546
      %v6548 = vpop.f32.mrf.mxu0
      %v6549 = vadd.f32 0.0, %v6548
      %6550 = vmatmul.bf16.gmra.mxu0 %v6282
      %v6551 = vpop.f32.mrf.mxu0
      %v6552 = vadd.f32 0.0, %v6551
      %v6553 = vpop.f32.mrf.mxu0
      %v6554 = vadd.f32 0.0, %v6553
      %6555 = vdwg.mxu0
      %v6556 = vld [vmem:[%s9] sm:$0x1]
      %v6558 = vperm.slane %v6556, 0
      %v6560 = vmul.f32 %v6357, %v6558
      %v6561 = vmul.f32 %v6359, %v6558
      %v6562 = vmul.f32 %v6362, %v6558
      %v6563 = vmul.f32 %v6364, %v6558
      %v6564 = vmul.f32 %v6367, %v6558
      %v6565 = vmul.f32 %v6369, %v6558
      %v6566 = vmul.f32 %v6372, %v6558
      %v6567 = vmul.f32 %v6374, %v6558
      %v6568 = vmul.f32 %v6377, %v6558
      %v6569 = vmul.f32 %v6379, %v6558
      %v6570 = vmul.f32 %v6382, %v6558
      %v6571 = vmul.f32 %v6384, %v6558
      %v6572 = vmul.f32 %v6387, %v6558
      %v6573 = vmul.f32 %v6389, %v6558
      %v6574 = vmul.f32 %v6392, %v6558
      %v6575 = vmul.f32 %v6394, %v6558
      %v6576 = vmul.f32 %v6397, %v6558
      %v6577 = vmul.f32 %v6399, %v6558
      %v6578 = vmul.f32 %v6402, %v6558
      %v6579 = vmul.f32 %v6404, %v6558
      %v6580 = vmul.f32 %v6407, %v6558
      %v6581 = vmul.f32 %v6409, %v6558
      %v6582 = vmul.f32 %v6412, %v6558
      %v6583 = vmul.f32 %v6414, %v6558
      %v6584 = vmul.f32 %v6417, %v6558
      %v6585 = vmul.f32 %v6419, %v6558
      %v6586 = vmul.f32 %v6422, %v6558
      %v6587 = vmul.f32 %v6424, %v6558
      %v6588 = vmul.f32 %v6427, %v6558
      %v6589 = vmul.f32 %v6429, %v6558
      %v6590 = vmul.f32 %v6432, %v6558
      %v6591 = vmul.f32 %v6434, %v6558
      %v6592 = vmul.f32 %v6437, %v6558
      %v6593 = vmul.f32 %v6439, %v6558
      %v6594 = vmul.f32 %v6442, %v6558
      %v6595 = vmul.f32 %v6444, %v6558
      %v6596 = vmul.f32 %v6447, %v6558
      %v6597 = vmul.f32 %v6449, %v6558
      %v6598 = vmul.f32 %v6452, %v6558
      %v6599 = vmul.f32 %v6454, %v6558
      %v6600 = vmul.f32 %v6457, %v6558
      %v6601 = vmul.f32 %v6459, %v6558
      %v6602 = vmul.f32 %v6462, %v6558
      %v6603 = vmul.f32 %v6464, %v6558
      %v6604 = vmul.f32 %v6467, %v6558
      %v6605 = vmul.f32 %v6469, %v6558
      %v6606 = vmul.f32 %v6472, %v6558
      %v6607 = vmul.f32 %v6474, %v6558
      %v6608 = vmul.f32 %v6477, %v6558
      %v6609 = vmul.f32 %v6479, %v6558
      %v6610 = vmul.f32 %v6482, %v6558
      %v6611 = vmul.f32 %v6484, %v6558
      %v6612 = vmul.f32 %v6487, %v6558
      %v6613 = vmul.f32 %v6489, %v6558
      %v6614 = vmul.f32 %v6492, %v6558
      %v6615 = vmul.f32 %v6494, %v6558
      %v6616 = vmul.f32 %v6497, %v6558
      %v6617 = vmul.f32 %v6499, %v6558
      %v6618 = vmul.f32 %v6502, %v6558
      %v6619 = vmul.f32 %v6504, %v6558
      %v6620 = vmul.f32 %v6507, %v6558
      %v6621 = vmul.f32 %v6509, %v6558
      %v6622 = vmul.f32 %v6512, %v6558
      %v6623 = vmul.f32 %v6514, %v6558
      %v6624 = vmul.f32 %v6517, %v6558
      %v6625 = vmul.f32 %v6519, %v6558
      %v6626 = vmul.f32 %v6522, %v6558
      %v6627 = vmul.f32 %v6524, %v6558
      %v6628 = vmul.f32 %v6527, %v6558
      %v6629 = vmul.f32 %v6529, %v6558
      %v6630 = vmul.f32 %v6532, %v6558
      %v6631 = vmul.f32 %v6534, %v6558
      %v6632 = vmul.f32 %v6537, %v6558
      %v6633 = vmul.f32 %v6539, %v6558
      %v6634 = vmul.f32 %v6542, %v6558
      %v6635 = vmul.f32 %v6544, %v6558
      %v6636 = vmul.f32 %v6547, %v6558
      %v6637 = vmul.f32 %v6549, %v6558
      %v6638 = vmul.f32 %v6552, %v6558
      %v6639 = vmul.f32 %v6554, %v6558
      %v6640 = vld [vmem:[%s10] sm:$0x1]
      %v6642 = vperm.slane %v6640, 0
      %v6644 = vadd.f32 %v6560, %v6642
      %v6645 = vadd.f32 %v6561, %v6642
      %v6646 = vadd.f32 %v6562, %v6642
      %v6647 = vadd.f32 %v6563, %v6642
      %v6648 = vadd.f32 %v6564, %v6642
      %v6649 = vadd.f32 %v6565, %v6642
      %v6650 = vadd.f32 %v6566, %v6642
      %v6651 = vadd.f32 %v6567, %v6642
      %v6652 = vadd.f32 %v6568, %v6642
      %v6653 = vadd.f32 %v6569, %v6642
      %v6654 = vadd.f32 %v6570, %v6642
      %v6655 = vadd.f32 %v6571, %v6642
      %v6656 = vadd.f32 %v6572, %v6642
      %v6657 = vadd.f32 %v6573, %v6642
      %v6658 = vadd.f32 %v6574, %v6642
      %v6659 = vadd.f32 %v6575, %v6642
      %v6660 = vadd.f32 %v6576, %v6642
      %v6661 = vadd.f32 %v6577, %v6642
      %v6662 = vadd.f32 %v6578, %v6642
      %v6663 = vadd.f32 %v6579, %v6642
      %v6664 = vadd.f32 %v6580, %v6642
      %v6665 = vadd.f32 %v6581, %v6642
      %v6666 = vadd.f32 %v6582, %v6642
      %v6667 = vadd.f32 %v6583, %v6642
      %v6668 = vadd.f32 %v6584, %v6642
      %v6669 = vadd.f32 %v6585, %v6642
      %v6670 = vadd.f32 %v6586, %v6642
      %v6671 = vadd.f32 %v6587, %v6642
      %v6672 = vadd.f32 %v6588, %v6642
      %v6673 = vadd.f32 %v6589, %v6642
      %v6674 = vadd.f32 %v6590, %v6642
      %v6675 = vadd.f32 %v6591, %v6642
      %v6676 = vadd.f32 %v6592, %v6642
      %v6677 = vadd.f32 %v6593, %v6642
      %v6678 = vadd.f32 %v6594, %v6642
      %v6679 = vadd.f32 %v6595, %v6642
      %v6680 = vadd.f32 %v6596, %v6642
      %v6681 = vadd.f32 %v6597, %v6642
      %v6682 = vadd.f32 %v6598, %v6642
      %v6683 = vadd.f32 %v6599, %v6642
      %v6684 = vadd.f32 %v6600, %v6642
      %v6685 = vadd.f32 %v6601, %v6642
      %v6686 = vadd.f32 %v6602, %v6642
      %v6687 = vadd.f32 %v6603, %v6642
      %v6688 = vadd.f32 %v6604, %v6642
      %v6689 = vadd.f32 %v6605, %v6642
      %v6690 = vadd.f32 %v6606, %v6642
      %v6691 = vadd.f32 %v6607, %v6642
      %v6692 = vadd.f32 %v6608, %v6642
      %v6693 = vadd.f32 %v6609, %v6642
      %v6694 = vadd.f32 %v6610, %v6642
      %v6695 = vadd.f32 %v6611, %v6642
      %v6696 = vadd.f32 %v6612, %v6642
      %v6697 = vadd.f32 %v6613, %v6642
      %v6698 = vadd.f32 %v6614, %v6642
      %v6699 = vadd.f32 %v6615, %v6642
      %v6700 = vadd.f32 %v6616, %v6642
      %v6701 = vadd.f32 %v6617, %v6642
      %v6702 = vadd.f32 %v6618, %v6642
      %v6703 = vadd.f32 %v6619, %v6642
      %v6704 = vadd.f32 %v6620, %v6642
      %v6705 = vadd.f32 %v6621, %v6642
      %v6706 = vadd.f32 %v6622, %v6642
      %v6707 = vadd.f32 %v6623, %v6642
      %v6708 = vadd.f32 %v6624, %v6642
      %v6709 = vadd.f32 %v6625, %v6642
      %v6710 = vadd.f32 %v6626, %v6642
      %v6711 = vadd.f32 %v6627, %v6642
      %v6712 = vadd.f32 %v6628, %v6642
      %v6713 = vadd.f32 %v6629, %v6642
      %v6714 = vadd.f32 %v6630, %v6642
      %v6715 = vadd.f32 %v6631, %v6642
      %v6716 = vadd.f32 %v6632, %v6642
      %v6717 = vadd.f32 %v6633, %v6642
      %v6718 = vadd.f32 %v6634, %v6642
      %v6719 = vadd.f32 %v6635, %v6642
      %v6720 = vadd.f32 %v6636, %v6642
      %v6721 = vadd.f32 %v6637, %v6642
      %v6722 = vadd.f32 %v6638, %v6642
      %v6723 = vadd.f32 %v6639, %v6642
      %v6724 = vunpack.c.l.bf16 %v449
      %v6725 = vunpack.c.l.bf16 %v450
      %v6726 = vunpack.c.l.bf16 %v451
      %v6727 = vunpack.c.l.bf16 %v452
      %v6728 = vunpack.c.l.bf16 %v453
      %v6729 = vunpack.c.l.bf16 %v454
      %v6730 = vunpack.c.l.bf16 %v455
      %v6731 = vunpack.c.l.bf16 %v456
      %v6732 = vunpack.c.l.bf16 %v457
      %v6733 = vunpack.c.l.bf16 %v458
      %v6734 = vunpack.c.l.bf16 %v459
      %v6735 = vunpack.c.l.bf16 %v460
      %v6736 = vunpack.c.l.bf16 %v461
      %v6737 = vunpack.c.l.bf16 %v462
      %v6738 = vunpack.c.l.bf16 %v463
      %v6739 = vunpack.c.l.bf16 %v464
      %v6740 = vunpack.c.l.bf16 %v465
      %v6741 = vunpack.c.l.bf16 %v466
      %v6742 = vunpack.c.l.bf16 %v467
      %v6743 = vunpack.c.l.bf16 %v468
      %v6744 = vunpack.c.l.bf16 %v469
      %v6745 = vunpack.c.l.bf16 %v470
      %v6746 = vunpack.c.l.bf16 %v471
      %v6747 = vunpack.c.l.bf16 %v472
      %v6748 = vunpack.c.l.bf16 %v473
      %v6749 = vunpack.c.l.bf16 %v474
      %v6750 = vunpack.c.l.bf16 %v475
      %v6751 = vunpack.c.l.bf16 %v476
      %v6752 = vunpack.c.l.bf16 %v477
      %v6753 = vunpack.c.l.bf16 %v478
      %v6754 = vunpack.c.l.bf16 %v479
      %v6755 = vunpack.c.l.bf16 %v480
      %v6756 = vunpack.c.l.bf16 %v481
      %v6757 = vunpack.c.l.bf16 %v482
      %v6758 = vunpack.c.l.bf16 %v483
      %v6759 = vunpack.c.l.bf16 %v484
      %v6760 = vunpack.c.l.bf16 %v485
      %v6761 = vunpack.c.l.bf16 %v486
      %v6762 = vunpack.c.l.bf16 %v487
      %v6763 = vunpack.c.l.bf16 %v488
      %v6764 = vunpack.c.l.bf16 %v489
      %v6765 = vunpack.c.l.bf16 %v490
      %v6766 = vunpack.c.l.bf16 %v491
      %v6767 = vunpack.c.l.bf16 %v492
      %v6768 = vunpack.c.l.bf16 %v493
      %v6769 = vunpack.c.l.bf16 %v494
      %v6770 = vunpack.c.l.bf16 %v495
      %v6771 = vunpack.c.l.bf16 %v496
      %v6772 = vunpack.c.l.bf16 %v497
      %v6773 = vunpack.c.l.bf16 %v498
      %v6774 = vunpack.c.l.bf16 %v499
      %v6775 = vunpack.c.l.bf16 %v500
      %v6776 = vunpack.c.l.bf16 %v501
      %v6777 = vunpack.c.l.bf16 %v502
      %v6778 = vunpack.c.l.bf16 %v503
      %v6779 = vunpack.c.l.bf16 %v504
      %v6780 = vunpack.c.l.bf16 %v505
      %v6781 = vunpack.c.l.bf16 %v506
      %v6782 = vunpack.c.l.bf16 %v507
      %v6783 = vunpack.c.l.bf16 %v508
      %v6784 = vunpack.c.l.bf16 %v509
      %v6785 = vunpack.c.l.bf16 %v510
      %v6786 = vunpack.c.l.bf16 %v511
      %v6787 = vunpack.c.l.bf16 %v512
      %v6788 = vunpack.c.l.bf16 %v513
      %v6789 = vunpack.c.l.bf16 %v514
      %v6790 = vunpack.c.l.bf16 %v515
      %v6791 = vunpack.c.l.bf16 %v516
      %v6792 = vunpack.c.l.bf16 %v517
      %v6793 = vunpack.c.l.bf16 %v518
      %v6794 = vunpack.c.l.bf16 %v519
      %v6795 = vunpack.c.l.bf16 %v520
      %v6796 = vunpack.c.l.bf16 %v521
      %v6797 = vunpack.c.l.bf16 %v522
      %v6798 = vunpack.c.l.bf16 %v523
      %v6799 = vunpack.c.l.bf16 %v524
      %v6800 = vunpack.c.l.bf16 %v525
      %v6801 = vunpack.c.l.bf16 %v526
      %v6802 = vunpack.c.l.bf16 %v527
      %v6803 = vunpack.c.l.bf16 %v528
      %v6804 = vunpack.c.l.bf16 %v529
      %vm6886 = vcmask 1046528
      %v6887 = vrot.slane %v6724, 1
      %v6888 = vrot.slane %v6725, 1
      %v6889 = vsel %vm6886, %v6887, %v6888
      %v6890 = vrot.slane %v6726, 1
      %v6891 = vsel %vm6886, %v6888, %v6890
      %v6892 = vrot.slane %v6727, 1
      %v6893 = vsel %vm6886, %v6890, %v6892
      %v6894 = vrot.slane %v6728, 1
      %v6895 = vsel %vm6886, %v6892, %v6894
      %v6896 = vrot.slane %v6729, 1
      %v6897 = vsel %vm6886, %v6894, %v6896
      %v6898 = vrot.slane %v6730, 1
      %v6899 = vsel %vm6886, %v6896, %v6898
      %v6900 = vrot.slane %v6731, 1
      %v6901 = vsel %vm6886, %v6898, %v6900
      %v6902 = vrot.slane %v6732, 1
      %v6903 = vsel %vm6886, %v6900, %v6902
      %v6904 = vrot.slane %v6733, 1
      %v6905 = vsel %vm6886, %v6902, %v6904
      %v6906 = vrot.slane %v6734, 1
      %v6907 = vsel %vm6886, %v6904, %v6906
      %v6908 = vrot.slane %v6735, 1
      %v6909 = vsel %vm6886, %v6906, %v6908
      %v6910 = vrot.slane %v6736, 1
      %v6911 = vsel %vm6886, %v6908, %v6910
      %v6912 = vrot.slane %v6737, 1
      %v6913 = vsel %vm6886, %v6910, %v6912
      %v6914 = vrot.slane %v6738, 1
      %v6915 = vsel %vm6886, %v6912, %v6914
      %v6916 = vrot.slane %v6739, 1
      %v6917 = vsel %vm6886, %v6914, %v6916
      %v6918 = vrot.slane %v6740, 1
      %v6919 = vsel %vm6886, %v6916, %v6918
      %v6920 = vrot.slane %v6741, 1
      %v6921 = vsel %vm6886, %v6918, %v6920
      %v6922 = vrot.slane %v6742, 1
      %v6923 = vsel %vm6886, %v6920, %v6922
      %v6924 = vrot.slane %v6743, 1
      %v6925 = vsel %vm6886, %v6922, %v6924
      %v6926 = vrot.slane %v6744, 1
      %v6927 = vsel %vm6886, %v6924, %v6926
      %v6928 = vrot.slane %v6745, 1
      %v6929 = vsel %vm6886, %v6926, %v6928
      %v6930 = vrot.slane %v6746, 1
      %v6931 = vsel %vm6886, %v6928, %v6930
      %v6932 = vrot.slane %v6747, 1
      %v6933 = vsel %vm6886, %v6930, %v6932
      %v6934 = vrot.slane %v6748, 1
      %v6935 = vsel %vm6886, %v6932, %v6934
      %v6936 = vrot.slane %v6749, 1
      %v6937 = vsel %vm6886, %v6934, %v6936
      %v6938 = vrot.slane %v6750, 1
      %v6939 = vsel %vm6886, %v6936, %v6938
      %v6940 = vrot.slane %v6751, 1
      %v6941 = vsel %vm6886, %v6938, %v6940
      %v6942 = vrot.slane %v6752, 1
      %v6943 = vsel %vm6886, %v6940, %v6942
      %v6944 = vrot.slane %v6753, 1
      %v6945 = vsel %vm6886, %v6942, %v6944
      %v6946 = vrot.slane %v6754, 1
      %v6947 = vsel %vm6886, %v6944, %v6946
      %v6948 = vrot.slane %v6755, 1
      %v6949 = vsel %vm6886, %v6946, %v6948
      %v6950 = vrot.slane %v6756, 1
      %v6951 = vsel %vm6886, %v6948, %v6950
      %v6952 = vrot.slane %v6757, 1
      %v6953 = vsel %vm6886, %v6950, %v6952
      %v6954 = vrot.slane %v6758, 1
      %v6955 = vsel %vm6886, %v6952, %v6954
      %v6956 = vrot.slane %v6759, 1
      %v6957 = vsel %vm6886, %v6954, %v6956
      %v6958 = vrot.slane %v6760, 1
      %v6959 = vsel %vm6886, %v6956, %v6958
      %v6960 = vrot.slane %v6761, 1
      %v6961 = vsel %vm6886, %v6958, %v6960
      %v6962 = vrot.slane %v6762, 1
      %v6963 = vsel %vm6886, %v6960, %v6962
      %v6964 = vrot.slane %v6763, 1
      %v6965 = vsel %vm6886, %v6962, %v6964
      %v6966 = vrot.slane %v6764, 1
      %v6967 = vsel %vm6886, %v6964, %v6966
      %v6968 = vrot.slane %v6765, 1
      %v6969 = vsel %vm6886, %v6966, %v6968
      %v6970 = vrot.slane %v6766, 1
      %v6971 = vsel %vm6886, %v6968, %v6970
      %v6972 = vrot.slane %v6767, 1
      %v6973 = vsel %vm6886, %v6970, %v6972
      %v6974 = vrot.slane %v6768, 1
      %v6975 = vsel %vm6886, %v6972, %v6974
      %v6976 = vrot.slane %v6769, 1
      %v6977 = vsel %vm6886, %v6974, %v6976
      %v6978 = vrot.slane %v6770, 1
      %v6979 = vsel %vm6886, %v6976, %v6978
      %v6980 = vrot.slane %v6771, 1
      %v6981 = vsel %vm6886, %v6978, %v6980
      %v6982 = vrot.slane %v6772, 1
      %v6983 = vsel %vm6886, %v6980, %v6982
      %v6984 = vrot.slane %v6773, 1
      %v6985 = vsel %vm6886, %v6982, %v6984
      %v6986 = vrot.slane %v6774, 1
      %v6987 = vsel %vm6886, %v6984, %v6986
      %v6988 = vrot.slane %v6775, 1
      %v6989 = vsel %vm6886, %v6986, %v6988
      %v6990 = vrot.slane %v6776, 1
      %v6991 = vsel %vm6886, %v6988, %v6990
      %v6992 = vrot.slane %v6777, 1
      %v6993 = vsel %vm6886, %v6990, %v6992
      %v6994 = vrot.slane %v6778, 1
      %v6995 = vsel %vm6886, %v6992, %v6994
      %v6996 = vrot.slane %v6779, 1
      %v6997 = vsel %vm6886, %v6994, %v6996
      %v6998 = vrot.slane %v6780, 1
      %v6999 = vsel %vm6886, %v6996, %v6998
      %v7000 = vrot.slane %v6781, 1
      %v7001 = vsel %vm6886, %v6998, %v7000
      %v7002 = vrot.slane %v6782, 1
      %v7003 = vsel %vm6886, %v7000, %v7002
      %v7004 = vrot.slane %v6783, 1
      %v7005 = vsel %vm6886, %v7002, %v7004
      %v7006 = vrot.slane %v6784, 1
      %v7007 = vsel %vm6886, %v7004, %v7006
      %v7008 = vrot.slane %v6785, 1
      %v7009 = vsel %vm6886, %v7006, %v7008
      %v7010 = vrot.slane %v6786, 1
      %v7011 = vsel %vm6886, %v7008, %v7010
      %v7012 = vrot.slane %v6787, 1
      %v7013 = vsel %vm6886, %v7010, %v7012
      %v7014 = vrot.slane %v6788, 1
      %v7015 = vsel %vm6886, %v7012, %v7014
      %v7016 = vrot.slane %v6789, 1
      %v7017 = vsel %vm6886, %v7014, %v7016
      %v7018 = vrot.slane %v6790, 1
      %v7019 = vsel %vm6886, %v7016, %v7018
      %v7020 = vrot.slane %v6791, 1
      %v7021 = vsel %vm6886, %v7018, %v7020
      %v7022 = vrot.slane %v6792, 1
      %v7023 = vsel %vm6886, %v7020, %v7022
      %v7024 = vrot.slane %v6793, 1
      %v7025 = vsel %vm6886, %v7022, %v7024
      %v7026 = vrot.slane %v6794, 1
      %v7027 = vsel %vm6886, %v7024, %v7026
      %v7028 = vrot.slane %v6795, 1
      %v7029 = vsel %vm6886, %v7026, %v7028
      %v7030 = vrot.slane %v6796, 1
      %v7031 = vsel %vm6886, %v7028, %v7030
      %v7032 = vrot.slane %v6797, 1
      %v7033 = vsel %vm6886, %v7030, %v7032
      %v7034 = vrot.slane %v6798, 1
      %v7035 = vsel %vm6886, %v7032, %v7034
      %v7036 = vrot.slane %v6799, 1
      %v7037 = vsel %vm6886, %v7034, %v7036
      %v7038 = vrot.slane %v6800, 1
      %v7039 = vsel %vm6886, %v7036, %v7038
      %v7040 = vrot.slane %v6801, 1
      %v7041 = vsel %vm6886, %v7038, %v7040
      %v7042 = vrot.slane %v6802, 1
      %v7043 = vsel %vm6886, %v7040, %v7042
      %v7044 = vrot.slane %v6803, 1
      %v7045 = vsel %vm6886, %v7042, %v7044
      %v7046 = vrot.slane %v6804, 1
      %v7047 = vsel %vm6886, %v7044, %v7046
      %v7128 = vadd.f32 %v6644, %v6889
      %v7129 = vadd.f32 %v6645, %v6891
      %v7130 = vadd.f32 %v6646, %v6893
      %v7131 = vadd.f32 %v6647, %v6895
      %v7132 = vadd.f32 %v6648, %v6897
      %v7133 = vadd.f32 %v6649, %v6899
      %v7134 = vadd.f32 %v6650, %v6901
      %v7135 = vadd.f32 %v6651, %v6903
      %v7136 = vadd.f32 %v6652, %v6905
      %v7137 = vadd.f32 %v6653, %v6907
      %v7138 = vadd.f32 %v6654, %v6909
      %v7139 = vadd.f32 %v6655, %v6911
      %v7140 = vadd.f32 %v6656, %v6913
      %v7141 = vadd.f32 %v6657, %v6915
      %v7142 = vadd.f32 %v6658, %v6917
      %v7143 = vadd.f32 %v6659, %v6919
      %v7144 = vadd.f32 %v6660, %v6921
      %v7145 = vadd.f32 %v6661, %v6923
      %v7146 = vadd.f32 %v6662, %v6925
      %v7147 = vadd.f32 %v6663, %v6927
      %v7148 = vadd.f32 %v6664, %v6929
      %v7149 = vadd.f32 %v6665, %v6931
      %v7150 = vadd.f32 %v6666, %v6933
      %v7151 = vadd.f32 %v6667, %v6935
      %v7152 = vadd.f32 %v6668, %v6937
      %v7153 = vadd.f32 %v6669, %v6939
      %v7154 = vadd.f32 %v6670, %v6941
      %v7155 = vadd.f32 %v6671, %v6943
      %v7156 = vadd.f32 %v6672, %v6945
      %v7157 = vadd.f32 %v6673, %v6947
      %v7158 = vadd.f32 %v6674, %v6949
      %v7159 = vadd.f32 %v6675, %v6951
      %v7160 = vadd.f32 %v6676, %v6953
      %v7161 = vadd.f32 %v6677, %v6955
      %v7162 = vadd.f32 %v6678, %v6957
      %v7163 = vadd.f32 %v6679, %v6959
      %v7164 = vadd.f32 %v6680, %v6961
      %v7165 = vadd.f32 %v6681, %v6963
      %v7166 = vadd.f32 %v6682, %v6965
      %v7167 = vadd.f32 %v6683, %v6967
      %v7168 = vadd.f32 %v6684, %v6969
      %v7169 = vadd.f32 %v6685, %v6971
      %v7170 = vadd.f32 %v6686, %v6973
      %v7171 = vadd.f32 %v6687, %v6975
      %v7172 = vadd.f32 %v6688, %v6977
      %v7173 = vadd.f32 %v6689, %v6979
      %v7174 = vadd.f32 %v6690, %v6981
      %v7175 = vadd.f32 %v6691, %v6983
      %v7176 = vadd.f32 %v6692, %v6985
      %v7177 = vadd.f32 %v6693, %v6987
      %v7178 = vadd.f32 %v6694, %v6989
      %v7179 = vadd.f32 %v6695, %v6991
      %v7180 = vadd.f32 %v6696, %v6993
      %v7181 = vadd.f32 %v6697, %v6995
      %v7182 = vadd.f32 %v6698, %v6997
      %v7183 = vadd.f32 %v6699, %v6999
      %v7184 = vadd.f32 %v6700, %v7001
      %v7185 = vadd.f32 %v6701, %v7003
      %v7186 = vadd.f32 %v6702, %v7005
      %v7187 = vadd.f32 %v6703, %v7007
      %v7188 = vadd.f32 %v6704, %v7009
      %v7189 = vadd.f32 %v6705, %v7011
      %v7190 = vadd.f32 %v6706, %v7013
      %v7191 = vadd.f32 %v6707, %v7015
      %v7192 = vadd.f32 %v6708, %v7017
      %v7193 = vadd.f32 %v6709, %v7019
      %v7194 = vadd.f32 %v6710, %v7021
      %v7195 = vadd.f32 %v6711, %v7023
      %v7196 = vadd.f32 %v6712, %v7025
      %v7197 = vadd.f32 %v6713, %v7027
      %v7198 = vadd.f32 %v6714, %v7029
      %v7199 = vadd.f32 %v6715, %v7031
      %v7200 = vadd.f32 %v6716, %v7033
      %v7201 = vadd.f32 %v6717, %v7035
      %v7202 = vadd.f32 %v6718, %v7037
      %v7203 = vadd.f32 %v6719, %v7039
      %v7204 = vadd.f32 %v6720, %v7041
      %v7205 = vadd.f32 %v6721, %v7043
      %v7206 = vadd.f32 %v6722, %v7045
      %v7207 = vadd.f32 %v6723, %v7047
      %v7208 = vmax.f32 %v7128, 0.0
      %v7209 = vmax.f32 %v7129, 0.0
      %v7210 = vmax.f32 %v7130, 0.0
      %v7211 = vmax.f32 %v7131, 0.0
      %v7212 = vmax.f32 %v7132, 0.0
      %v7213 = vmax.f32 %v7133, 0.0
      %v7214 = vmax.f32 %v7134, 0.0
      %v7215 = vmax.f32 %v7135, 0.0
      %v7216 = vmax.f32 %v7136, 0.0
      %v7217 = vmax.f32 %v7137, 0.0
      %v7218 = vmax.f32 %v7138, 0.0
      %v7219 = vmax.f32 %v7139, 0.0
      %v7220 = vmax.f32 %v7140, 0.0
      %v7221 = vmax.f32 %v7141, 0.0
      %v7222 = vmax.f32 %v7142, 0.0
      %v7223 = vmax.f32 %v7143, 0.0
      %v7224 = vmax.f32 %v7144, 0.0
      %v7225 = vmax.f32 %v7145, 0.0
      %v7226 = vmax.f32 %v7146, 0.0
      %v7227 = vmax.f32 %v7147, 0.0
      %v7228 = vmax.f32 %v7148, 0.0
      %v7229 = vmax.f32 %v7149, 0.0
      %v7230 = vmax.f32 %v7150, 0.0
      %v7231 = vmax.f32 %v7151, 0.0
      %v7232 = vmax.f32 %v7152, 0.0
      %v7233 = vmax.f32 %v7153, 0.0
      %v7234 = vmax.f32 %v7154, 0.0
      %v7235 = vmax.f32 %v7155, 0.0
      %v7236 = vmax.f32 %v7156, 0.0
      %v7237 = vmax.f32 %v7157, 0.0
      %v7238 = vmax.f32 %v7158, 0.0
      %v7239 = vmax.f32 %v7159, 0.0
      %v7240 = vmax.f32 %v7160, 0.0
      %v7241 = vmax.f32 %v7161, 0.0
      %v7242 = vmax.f32 %v7162, 0.0
      %v7243 = vmax.f32 %v7163, 0.0
      %v7244 = vmax.f32 %v7164, 0.0
      %v7245 = vmax.f32 %v7165, 0.0
      %v7246 = vmax.f32 %v7166, 0.0
      %v7247 = vmax.f32 %v7167, 0.0
      %v7248 = vmax.f32 %v7168, 0.0
      %v7249 = vmax.f32 %v7169, 0.0
      %v7250 = vmax.f32 %v7170, 0.0
      %v7251 = vmax.f32 %v7171, 0.0
      %v7252 = vmax.f32 %v7172, 0.0
      %v7253 = vmax.f32 %v7173, 0.0
      %v7254 = vmax.f32 %v7174, 0.0
      %v7255 = vmax.f32 %v7175, 0.0
      %v7256 = vmax.f32 %v7176, 0.0
      %v7257 = vmax.f32 %v7177, 0.0
      %v7258 = vmax.f32 %v7178, 0.0
      %v7259 = vmax.f32 %v7179, 0.0
      %v7260 = vmax.f32 %v7180, 0.0
      %v7261 = vmax.f32 %v7181, 0.0
      %v7262 = vmax.f32 %v7182, 0.0
      %v7263 = vmax.f32 %v7183, 0.0
      %v7264 = vmax.f32 %v7184, 0.0
      %v7265 = vmax.f32 %v7185, 0.0
      %v7266 = vmax.f32 %v7186, 0.0
      %v7267 = vmax.f32 %v7187, 0.0
      %v7268 = vmax.f32 %v7188, 0.0
      %v7269 = vmax.f32 %v7189, 0.0
      %v7270 = vmax.f32 %v7190, 0.0
      %v7271 = vmax.f32 %v7191, 0.0
      %v7272 = vmax.f32 %v7192, 0.0
      %v7273 = vmax.f32 %v7193, 0.0
      %v7274 = vmax.f32 %v7194, 0.0
      %v7275 = vmax.f32 %v7195, 0.0
      %v7276 = vmax.f32 %v7196, 0.0
      %v7277 = vmax.f32 %v7197, 0.0
      %v7278 = vmax.f32 %v7198, 0.0
      %v7279 = vmax.f32 %v7199, 0.0
      %v7280 = vmax.f32 %v7200, 0.0
      %v7281 = vmax.f32 %v7201, 0.0
      %v7282 = vmax.f32 %v7202, 0.0
      %v7283 = vmax.f32 %v7203, 0.0
      %v7284 = vmax.f32 %v7204, 0.0
      %v7285 = vmax.f32 %v7205, 0.0
      %v7286 = vmax.f32 %v7206, 0.0
      %v7287 = vmax.f32 %v7207, 0.0
      %v7288 = vpack.c.bf16 %v7208, %v7208
      %v7289 = vpack.c.bf16 %v7209, %v7209
      %v7290 = vpack.c.bf16 %v7210, %v7210
      %v7291 = vpack.c.bf16 %v7211, %v7211
      %v7292 = vpack.c.bf16 %v7212, %v7212
      %v7293 = vpack.c.bf16 %v7213, %v7213
      %v7294 = vpack.c.bf16 %v7214, %v7214
      %v7295 = vpack.c.bf16 %v7215, %v7215
      %v7296 = vpack.c.bf16 %v7216, %v7216
      %v7297 = vpack.c.bf16 %v7217, %v7217
      %v7298 = vpack.c.bf16 %v7218, %v7218
      %v7299 = vpack.c.bf16 %v7219, %v7219
      %v7300 = vpack.c.bf16 %v7220, %v7220
      %v7301 = vpack.c.bf16 %v7221, %v7221
      %v7302 = vpack.c.bf16 %v7222, %v7222
      %v7303 = vpack.c.bf16 %v7223, %v7223
      %v7304 = vpack.c.bf16 %v7224, %v7224
      %v7305 = vpack.c.bf16 %v7225, %v7225
      %v7306 = vpack.c.bf16 %v7226, %v7226
      %v7307 = vpack.c.bf16 %v7227, %v7227
      %v7308 = vpack.c.bf16 %v7228, %v7228
      %v7309 = vpack.c.bf16 %v7229, %v7229
      %v7310 = vpack.c.bf16 %v7230, %v7230
      %v7311 = vpack.c.bf16 %v7231, %v7231
      %v7312 = vpack.c.bf16 %v7232, %v7232
      %v7313 = vpack.c.bf16 %v7233, %v7233
      %v7314 = vpack.c.bf16 %v7234, %v7234
      %v7315 = vpack.c.bf16 %v7235, %v7235
      %v7316 = vpack.c.bf16 %v7236, %v7236
      %v7317 = vpack.c.bf16 %v7237, %v7237
      %v7318 = vpack.c.bf16 %v7238, %v7238
      %v7319 = vpack.c.bf16 %v7239, %v7239
      %v7320 = vpack.c.bf16 %v7240, %v7240
      %v7321 = vpack.c.bf16 %v7241, %v7241
      %v7322 = vpack.c.bf16 %v7242, %v7242
      %v7323 = vpack.c.bf16 %v7243, %v7243
      %v7324 = vpack.c.bf16 %v7244, %v7244
      %v7325 = vpack.c.bf16 %v7245, %v7245
      %v7326 = vpack.c.bf16 %v7246, %v7246
      %v7327 = vpack.c.bf16 %v7247, %v7247
      %v7328 = vpack.c.bf16 %v7248, %v7248
      %v7329 = vpack.c.bf16 %v7249, %v7249
      %v7330 = vpack.c.bf16 %v7250, %v7250
      %v7331 = vpack.c.bf16 %v7251, %v7251
      %v7332 = vpack.c.bf16 %v7252, %v7252
      %v7333 = vpack.c.bf16 %v7253, %v7253
      %v7334 = vpack.c.bf16 %v7254, %v7254
      %v7335 = vpack.c.bf16 %v7255, %v7255
      %v7336 = vpack.c.bf16 %v7256, %v7256
      %v7337 = vpack.c.bf16 %v7257, %v7257
      %v7338 = vpack.c.bf16 %v7258, %v7258
      %v7339 = vpack.c.bf16 %v7259, %v7259
      %v7340 = vpack.c.bf16 %v7260, %v7260
      %v7341 = vpack.c.bf16 %v7261, %v7261
      %v7342 = vpack.c.bf16 %v7262, %v7262
      %v7343 = vpack.c.bf16 %v7263, %v7263
      %v7344 = vpack.c.bf16 %v7264, %v7264
      %v7345 = vpack.c.bf16 %v7265, %v7265
      %v7346 = vpack.c.bf16 %v7266, %v7266
      %v7347 = vpack.c.bf16 %v7267, %v7267
      %v7348 = vpack.c.bf16 %v7268, %v7268
      %v7349 = vpack.c.bf16 %v7269, %v7269
      %v7350 = vpack.c.bf16 %v7270, %v7270
      %v7351 = vpack.c.bf16 %v7271, %v7271
      %v7352 = vpack.c.bf16 %v7272, %v7272
      %v7353 = vpack.c.bf16 %v7273, %v7273
      %v7354 = vpack.c.bf16 %v7274, %v7274
      %v7355 = vpack.c.bf16 %v7275, %v7275
      %v7356 = vpack.c.bf16 %v7276, %v7276
      %v7357 = vpack.c.bf16 %v7277, %v7277
      %v7358 = vpack.c.bf16 %v7278, %v7278
      %v7359 = vpack.c.bf16 %v7279, %v7279
      %v7360 = vpack.c.bf16 %v7280, %v7280
      %v7361 = vpack.c.bf16 %v7281, %v7281
      %v7362 = vpack.c.bf16 %v7282, %v7282
      %v7363 = vpack.c.bf16 %v7283, %v7283
      %v7364 = vpack.c.bf16 %v7284, %v7284
      %v7365 = vpack.c.bf16 %v7285, %v7285
      %v7366 = vpack.c.bf16 %v7286, %v7286
      %v7367 = vpack.c.bf16 %v7287, %v7287
      %7368 = vst [vmem:[%s442] sm:$0xf] %v7288
      %7369 = vst [vmem:[%s442 + $0x4] sm:$0xf] %v7289
      %7370 = vst [vmem:[%s442 + $0x8] sm:$0xf] %v7290
      %7371 = vst [vmem:[%s442 + $0xc] sm:$0xf] %v7291
      %7372 = vst [vmem:[%s442 + $0x10] sm:$0xf] %v7292
      %7373 = vst [vmem:[%s442 + $0x14] sm:$0xf] %v7293
      %7374 = vst [vmem:[%s442 + $0x18] sm:$0xf] %v7294
      %7375 = vst [vmem:[%s442 + $0x1c] sm:$0xf] %v7295
      %7376 = vst [vmem:[%s442 + $0x20] sm:$0xf] %v7296
      %7377 = vst [vmem:[%s442 + $0x24] sm:$0xf] %v7297
      %7378 = vst [vmem:[%s442 + $0x28] sm:$0xf] %v7298
      %7379 = vst [vmem:[%s442 + $0x2c] sm:$0xf] %v7299
      %7380 = vst [vmem:[%s442 + $0x30] sm:$0xf] %v7300
      %7381 = vst [vmem:[%s442 + $0x34] sm:$0xf] %v7301
      %7382 = vst [vmem:[%s442 + $0x38] sm:$0xf] %v7302
      %7383 = vst [vmem:[%s442 + $0x3c] sm:$0xf] %v7303
      %7384 = vst [vmem:[%s442 + $0x40] sm:$0xf] %v7304
      %7385 = vst [vmem:[%s442 + $0x44] sm:$0xf] %v7305
      %7386 = vst [vmem:[%s442 + $0x48] sm:$0xf] %v7306
      %7387 = vst [vmem:[%s442 + $0x4c] sm:$0xf] %v7307
      %7388 = vst [vmem:[%s442 + $0x50] sm:$0xf] %v7308
      %7389 = vst [vmem:[%s442 + $0x54] sm:$0xf] %v7309
      %7390 = vst [vmem:[%s442 + $0x58] sm:$0xf] %v7310
      %7391 = vst [vmem:[%s442 + $0x5c] sm:$0xf] %v7311
      %7392 = vst [vmem:[%s442 + $0x60] sm:$0xf] %v7312
      %7393 = vst [vmem:[%s442 + $0x64] sm:$0xf] %v7313
      %7394 = vst [vmem:[%s442 + $0x68] sm:$0xf] %v7314
      %7395 = vst [vmem:[%s442 + $0x6c] sm:$0xf] %v7315
      %7396 = vst [vmem:[%s442 + $0x70] sm:$0xf] %v7316
      %7397 = vst [vmem:[%s442 + $0x74] sm:$0xf] %v7317
      %7398 = vst [vmem:[%s442 + $0x78] sm:$0xf] %v7318
      %7399 = vst [vmem:[%s442 + $0x7c] sm:$0xf] %v7319
      %7400 = vst [vmem:[%s442 + $0x80] sm:$0xf] %v7320
      %7401 = vst [vmem:[%s442 + $0x84] sm:$0xf] %v7321
      %7402 = vst [vmem:[%s442 + $0x88] sm:$0xf] %v7322
      %7403 = vst [vmem:[%s442 + $0x8c] sm:$0xf] %v7323
      %7404 = vst [vmem:[%s442 + $0x90] sm:$0xf] %v7324
      %7405 = vst [vmem:[%s442 + $0x94] sm:$0xf] %v7325
      %7406 = vst [vmem:[%s442 + $0x98] sm:$0xf] %v7326
      %7407 = vst [vmem:[%s442 + $0x9c] sm:$0xf] %v7327
      %7408 = vst [vmem:[%s442 + $0xa0] sm:$0xf] %v7328
      %7409 = vst [vmem:[%s442 + $0xa4] sm:$0xf] %v7329
      %7410 = vst [vmem:[%s442 + $0xa8] sm:$0xf] %v7330
      %7411 = vst [vmem:[%s442 + $0xac] sm:$0xf] %v7331
      %7412 = vst [vmem:[%s442 + $0xb0] sm:$0xf] %v7332
      %7413 = vst [vmem:[%s442 + $0xb4] sm:$0xf] %v7333
      %7414 = vst [vmem:[%s442 + $0xb8] sm:$0xf] %v7334
      %7415 = vst [vmem:[%s442 + $0xbc] sm:$0xf] %v7335
      %7416 = vst [vmem:[%s442 + $0xc0] sm:$0xf] %v7336
      %7417 = vst [vmem:[%s442 + $0xc4] sm:$0xf] %v7337
      %7418 = vst [vmem:[%s442 + $0xc8] sm:$0xf] %v7338
      %7419 = vst [vmem:[%s442 + $0xcc] sm:$0xf] %v7339
      %7420 = vst [vmem:[%s442 + $0xd0] sm:$0xf] %v7340
      %7421 = vst [vmem:[%s442 + $0xd4] sm:$0xf] %v7341
      %7422 = vst [vmem:[%s442 + $0xd8] sm:$0xf] %v7342
      %7423 = vst [vmem:[%s442 + $0xdc] sm:$0xf] %v7343
      %7424 = vst [vmem:[%s442 + $0xe0] sm:$0xf] %v7344
      %7425 = vst [vmem:[%s442 + $0xe4] sm:$0xf] %v7345
      %7426 = vst [vmem:[%s442 + $0xe8] sm:$0xf] %v7346
      %7427 = vst [vmem:[%s442 + $0xec] sm:$0xf] %v7347
      %7428 = vst [vmem:[%s442 + $0xf0] sm:$0xf] %v7348
      %7429 = vst [vmem:[%s442 + $0xf4] sm:$0xf] %v7349
      %7430 = vst [vmem:[%s442 + $0xf8] sm:$0xf] %v7350
      %7431 = vst [vmem:[%s442 + $0xfc] sm:$0xf] %v7351
      %7432 = vst [vmem:[%s442 + $0x100] sm:$0xf] %v7352
      %7433 = vst [vmem:[%s442 + $0x104] sm:$0xf] %v7353
      %7434 = vst [vmem:[%s442 + $0x108] sm:$0xf] %v7354
      %7435 = vst [vmem:[%s442 + $0x10c] sm:$0xf] %v7355
      %7436 = vst [vmem:[%s442 + $0x110] sm:$0xf] %v7356
      %7437 = vst [vmem:[%s442 + $0x114] sm:$0xf] %v7357
      %7438 = vst [vmem:[%s442 + $0x118] sm:$0xf] %v7358
      %7439 = vst [vmem:[%s442 + $0x11c] sm:$0xf] %v7359
      %7440 = vst [vmem:[%s442 + $0x120] sm:$0xf] %v7360
      %7441 = vst [vmem:[%s442 + $0x124] sm:$0xf] %v7361
      %7442 = vst [vmem:[%s442 + $0x128] sm:$0xf] %v7362
      %7443 = vst [vmem:[%s442 + $0x12c] sm:$0xf] %v7363
      %7444 = vst [vmem:[%s442 + $0x130] sm:$0xf] %v7364
      %7445 = vst [vmem:[%s442 + $0x134] sm:$0xf] %v7365
      %7446 = vst [vmem:[%s442 + $0x138] sm:$0xf] %v7366
      %7447 = vst [vmem:[%s442 + $0x13c] sm:$0xf] %v7367
      %s7448 = smul.u32 80, %s27
      %p7449 = scmp.lt.s32.totalorder %s26, 1
      %s7450 = scalar_select %p7449, %s26, 1
      %p7451 = scmp.lt.s32.totalorder %s7448, 159
      %s7452 = scalar_select %p7451, %s7448, 159
      %s7453 = smul.addr %s7450, 160
      %s7454 = sadd.s32 %s7452, %s7453
      %s7455 = smul.addr %s7454, 4
      %s7456 = scalar_lea.vmem %s11, %s7455
      // Predicated region
      $region65: #{_lambda_.1} parent=63 // pred_check
        %p7457 = pneg %p297
      $region66: #{_lambda_.1} parent=63 // pred_check_branch
        %7459 = sbr.rel (%p7457) target = $region68
      $region67: #{_lambda_.1} parent=63 // pred_region
        %s7460 = smul.u32 80, %s27
      $region68: #{_lambda_.1} parent=63 // pred_fallthru
        _
    $region64: #{_lambda_.1} parent=5 // pred_fallthru
      _
    %p7461 = scmp.le.s32.totalorder 2, %s17
    // Predicated region
    $region69: #{_lambda_.1} parent=5 // pred_check
      %p7462 = pneg %p7461
    $region70: #{_lambda_.1} parent=5 // pred_check_branch
      %7464 = sbr.rel (%p7462) target = $region72
    $region71: #{_lambda_.1} parent=5 // pred_region
      %s7465 = ssub.s32 %s17, 2
      // Predicated region
      $region73: #{_lambda_.1} parent=71 // pred_check
        %p7466 = pneg %p303
      $region74: #{_lambda_.1} parent=71 // pred_check_branch
        %7468 = sbr.rel (%p7466) target = $region76
      $region75: #{_lambda_.1} parent=71 // pred_region
        %s7469 = smul.u32 80, %s29
        %p7470 = scmp.lt.s32.totalorder %s28, 1
        %s7471 = scalar_select %p7470, %s28, 1
        %p7472 = scmp.lt.s32.totalorder %s7469, 159
        %s7473 = scalar_select %p7472, %s7469, 159
        %s7474 = smul.addr %s7471, 160
        %s7475 = sadd.s32 %s7473, %s7474
        %s7476 = smul.addr %s7475, 4
        %s7477 = scalar_lea.vmem %s11, %s7476
      $region76: #{_lambda_.1} parent=71 // pred_fallthru
        _
    $region72: #{_lambda_.1} parent=5 // pred_fallthru
      _
  $region6: #{_lambda_.1} parent=0 // loop_footer
    %s21 = sadd.s32 1, %s17
  $region7: #{_lambda_.1} parent=0 // loop_footer_branch
    %16 = sbr.rel target = $region3
  $region8: #{_lambda_.1} parent=0 // loop_exit
    _

</llo_original>
